<compile_context>
chip_gen: v7x
topology: tpu7x:2x2x1
jax: 0.10.0
libtpu: 0.0.40
codegen_flags: <defaults>
</compile_context>

<pallas_src>
import functools

import jax
import jax.numpy as jnp
import numpy as np
from jax.experimental import pallas as pl
from jax.experimental.pallas import tpu as pltpu


# ----------------------------------------------------------------------------
# Kernel: whole Bottleneck block for one batch element.
# ----------------------------------------------------------------------------
def _bottleneck_kernel(x_ref, w1_ref, w2_ref, w3_ref,
                       s1_ref, b1_ref, s2_ref, b2_ref, s3_ref, b3_ref,
                       out_ref, pad_ref, *, H, W, pad_front, no_relu):
    HW = H * W
    cmid = w2_ref.shape[-1]

    x = x_ref[0].astype(jnp.float32)                             # (HW, Cin)

    # ---- conv1 (1x1) + bn1 (folded) + relu -------------------------------
    h1 = jnp.dot(x, w1_ref[...], preferred_element_type=jnp.float32)
    h1 = jnp.maximum(h1 * s1_ref[...] + b1_ref[...], 0.0)        # (HW, Cmid)

    # ---- conv2 (3x3, pad=1, stride=1) + bn2 + relu ------------------------
    # Flat zero-padded buffer: rows [pad_front, pad_front+HW) hold h1, the
    # pad regions stay zero (they provide the top/bottom halo).  A tap
    # (ky, kx) is the window starting at pad_front - (W+1) + ky*W + kx;
    # dx = kx-1 = +/-1 wraps across rows, which the column mask zeroes out.
    pad_ref[...] = jnp.zeros_like(pad_ref)
    pad_ref[pad_front:pad_front + HW, :] = h1

    col = jax.lax.broadcasted_iota(jnp.int32, (HW, 1), 0) % W
    acc = jnp.zeros((HW, cmid), jnp.float32)
    for ky in range(3):
        for kx in range(3):
            dx = kx - 1
            start = pad_front - (W + 1) + ky * W + kx
            win = pad_ref[start:start + HW, :]
            if dx == -1:
                win = jnp.where(col == 0, 0.0, win)
            elif dx == 1:
                win = jnp.where(col == W - 1, 0.0, win)
            acc = acc + jnp.dot(win, w2_ref[3 * ky + kx],
                                preferred_element_type=jnp.float32)
    h2 = jnp.maximum(acc * s2_ref[...] + b2_ref[...], 0.0)       # (HW, Cmid)

    # ---- conv3 (1x1) + bn3 + identity residual ----------------------------
    y = jnp.dot(h2, w3_ref[...], preferred_element_type=jnp.float32)
    y = y * s3_ref[...] + b3_ref[...] + x                        # (HW, Cout)
    if not no_relu:
        y = jnp.maximum(y, 0.0)
    out_ref[0] = y.astype(out_ref.dtype)


# ----------------------------------------------------------------------------
# Wrapper
# ----------------------------------------------------------------------------
def _fold_bn(gamma, beta, mean, var, eps=1e-5):
    scale = gamma / jnp.sqrt(var + eps)
    bias = beta - mean * scale
    return (scale.reshape(1, -1).astype(jnp.float32),
            bias.reshape(1, -1).astype(jnp.float32))


def bottleneck_forward(x_nhwc, params, *, no_relu=True):
    """Bottleneck forward.  Input/output are NHWC (model kept NHWC end-to-end;
    NCHW callers should transpose once at the network boundary, not per block)."""
    N, H, W, Cin = x_nhwc.shape
    w1 = params["w1"]                                  # (Cin, Cmid)
    Cmid = w1.shape[1]
    w2 = params["w2"].reshape(9, Cmid, Cmid)           # HWIO (3,3,Ci,Co) -> (9,Ci,Co)
    w3 = params["w3"]                                  # (Cmid, Cout)
    Cout = w3.shape[1]
    assert Cout == Cin, "identity residual needs inplanes == planes*expansion"
    HW = H * W

    s1, b1 = _fold_bn(params["bn1_gamma"], params["bn1_beta"],
                      params["bn1_mean"], params["bn1_var"])
    s2, b2 = _fold_bn(params["bn2_gamma"], params["bn2_beta"],
                      params["bn2_mean"], params["bn2_var"])
    s3, b3 = _fold_bn(params["bn3_gamma"], params["bn3_beta"],
                      params["bn3_mean"], params["bn3_var"])

    x_flat = x_nhwc.reshape(N, HW, Cin)                # free reshape, no transpose

    # conv2 scratch: front pad rounded up to a sublane multiple so the big
    # center store is aligned; back pad of W+1 zero rows for the bottom halo.
    pad_front = ((W + 1 + 7) // 8) * 8
    pad_rows = pad_front + HW + W + 1

    # explicit VMEM budget (double-buffered x/out + scratch + weights), capped
    # so it is safe on v7x's smaller VMEM as well.
    est = (2 * 2 * HW * max(Cin, Cout) * 4 + pad_rows * Cmid * 4
           + (Cin * Cmid + 9 * Cmid * Cmid + Cmid * Cout + 6 * Cout) * 4)
    vmem_limit = int(min(96 * 2**20, max(8 * 2**20, 4 * est)))

    kernel = functools.partial(_bottleneck_kernel, H=H, W=W,
                               pad_front=pad_front, no_relu=no_relu)

    out = pl.pallas_call(
        kernel,
        out_shape=jax.ShapeDtypeStruct((N, HW, Cout), x_nhwc.dtype),
        grid_spec=pltpu.PrefetchScalarGridSpec(
            num_scalar_prefetch=0,
            grid=(N,),
            in_specs=[
                pl.BlockSpec((1, HW, Cin), lambda n: (n, 0, 0)),
                pl.BlockSpec((Cin, Cmid), lambda n: (0, 0)),
                pl.BlockSpec((9, Cmid, Cmid), lambda n: (0, 0, 0)),
                pl.BlockSpec((Cmid, Cout), lambda n: (0, 0)),
                pl.BlockSpec((1, Cmid), lambda n: (0, 0)),
                pl.BlockSpec((1, Cmid), lambda n: (0, 0)),
                pl.BlockSpec((1, Cmid), lambda n: (0, 0)),
                pl.BlockSpec((1, Cmid), lambda n: (0, 0)),
                pl.BlockSpec((1, Cout), lambda n: (0, 0)),
                pl.BlockSpec((1, Cout), lambda n: (0, 0)),
            ],
            out_specs=pl.BlockSpec((1, HW, Cout), lambda n: (n, 0, 0)),
            scratch_shapes=[pltpu.VMEM((pad_rows, Cmid), jnp.float32)],
        ),
        compiler_params=pltpu.CompilerParams(
            dimension_semantics=("parallel",),
            vmem_limit_bytes=vmem_limit),
    )(x_flat, w1, w2, w3, s1, b1, s2, b2, s3, b3)

    return out.reshape(N, H, W, Cout)


# ----------------------------------------------------------------------------
# Parameter init (kaiming_normal_(a=1): std = 1/sqrt(fan_in)) + eval-mode BN.
# ----------------------------------------------------------------------------
def init_params(key, inplanes, planes, expansion=2):
    cout = planes * expansion
    ks = jax.random.split(key, 6)

    def kaiming(rng, shape, fan_in):
        return jax.random.normal(rng, shape, jnp.float32) / np.sqrt(fan_in)

    params = {
        "w1": kaiming(ks[0], (inplanes, planes), inplanes),
        "w2": kaiming(ks[1], (3, 3, planes, planes), planes * 9),   # HWIO
        "w3": kaiming(ks[2], (planes, cout), planes),
    }
    # randomized eval-mode running stats so BN folding is actually exercised
    for i, (name, c) in enumerate([("bn1", planes), ("bn2", planes),
                                   ("bn3", cout)]):
        kg, kb, km, kv = jax.random.split(ks[3 + i], 4)
        params[f"{name}_gamma"] = 1.0 + 0.1 * jax.random.normal(kg, (c,), jnp.float32)
        params[f"{name}_beta"] = 0.1 * jax.random.normal(kb, (c,), jnp.float32)
        params[f"{name}_mean"] = 0.1 * jax.random.normal(km, (c,), jnp.float32)
        params[f"{name}_var"] = jnp.abs(1.0 + 0.1 * jax.random.normal(kv, (c,), jnp.float32))
    return params


# ----------------------------------------------------------------------------
# Pure-JAX reference (eval-mode BN), NHWC.
# ----------------------------------------------------------------------------
def _reference(x_nhwc, params, *, no_relu=True):
    eps = 1e-5
    hi = jax.lax.Precision.HIGHEST

    def bn(y, p):
        return ((y - params[p + "_mean"]) / jnp.sqrt(params[p + "_var"] + eps)
                * params[p + "_gamma"] + params[p + "_beta"])

    h = jnp.einsum("nhwc,cd->nhwd", x_nhwc, params["w1"], precision=hi)
    h = jax.nn.relu(bn(h, "bn1"))
    h = jax.lax.conv_general_dilated(
        h, params["w2"], window_strides=(1, 1), padding="SAME",
        dimension_numbers=("NHWC", "HWIO", "NHWC"), precision=hi)
    h = jax.nn.relu(bn(h, "bn2"))
    y = jnp.einsum("nhwc,cd->nhwd", h, params["w3"], precision=hi)
    y = bn(y, "bn3") + x_nhwc
    return y if no_relu else jax.nn.relu(y)


if __name__ == "__main__":
    key = jax.random.PRNGKey(0)
    kp, kx = jax.random.split(key)

    N, H, W = 2, 16, 16
    planes = 8
    inplanes = planes * 2      # 16 -> identity residual (downsample=None)

    params = init_params(kp, inplanes, planes)
    x = jax.random.normal(kx, (N, H, W, inplanes), jnp.float32)

    out = bottleneck_forward(x, params, no_relu=True)
    out = jax.block_until_ready(out)

    ref = _reference(x, params, no_relu=True)
    np.testing.assert_allclose(np.asarray(out), np.asarray(ref),
                               rtol=1e-4, atol=1e-4)
    print("KERNEL_OK")
</pallas_src>

<mosaic_0001>
module attributes {stable_mosaic.version = 11 : i64} {
  func.func @_bottleneck_kernel(%arg0: i32, %arg1: memref<1x256x16xf32, #tpu.memory_space<vmem>>, %arg2: memref<16x8xf32, #tpu.memory_space<vmem>>, %arg3: memref<9x8x8xf32, #tpu.memory_space<vmem>>, %arg4: memref<8x16xf32, #tpu.memory_space<vmem>>, %arg5: memref<1x8xf32, #tpu.memory_space<vmem>>, %arg6: memref<1x8xf32, #tpu.memory_space<vmem>>, %arg7: memref<1x8xf32, #tpu.memory_space<vmem>>, %arg8: memref<1x8xf32, #tpu.memory_space<vmem>>, %arg9: memref<1x16xf32, #tpu.memory_space<vmem>>, %arg10: memref<1x16xf32, #tpu.memory_space<vmem>>, %arg11: memref<1x256x16xf32, #tpu.memory_space<vmem>>, %arg12: memref<297x8xf32, #tpu.memory_space<vmem>>) attributes {dimension_semantics = [#tpu.dimension_semantics<parallel>], iteration_bounds = array<i64: 2>, scalar_prefetch = 0 : i64, scratch_operands = 1 : i64, tpu.core_type = #tpu.core_type<tc>, window_params = [{transform_indices = @transform_0, window_bounds = array<i64: 1, 256, 16>}, {pipeline_mode = #tpu.pipeline_mode<synchronous>, transform_indices = @transform_1, window_bounds = array<i64: 16, 8>}, {pipeline_mode = #tpu.pipeline_mode<synchronous>, transform_indices = @transform_2, window_bounds = array<i64: 9, 8, 8>}, {pipeline_mode = #tpu.pipeline_mode<synchronous>, transform_indices = @transform_3, window_bounds = array<i64: 8, 16>}, {pipeline_mode = #tpu.pipeline_mode<synchronous>, transform_indices = @transform_4, window_bounds = array<i64: 1, 8>}, {pipeline_mode = #tpu.pipeline_mode<synchronous>, transform_indices = @transform_5, window_bounds = array<i64: 1, 8>}, {pipeline_mode = #tpu.pipeline_mode<synchronous>, transform_indices = @transform_6, window_bounds = array<i64: 1, 8>}, {pipeline_mode = #tpu.pipeline_mode<synchronous>, transform_indices = @transform_7, window_bounds = array<i64: 1, 8>}, {pipeline_mode = #tpu.pipeline_mode<synchronous>, transform_indices = @transform_8, window_bounds = array<i64: 1, 16>}, {pipeline_mode = #tpu.pipeline_mode<synchronous>, transform_indices = @transform_9, window_bounds = array<i64: 1, 16>}, {transform_indices = @transform_10, window_bounds = array<i64: 1, 256, 16>}]} {
    %c0 = arith.constant 0 : index
    %c0_0 = arith.constant 0 : index
    %c0_1 = arith.constant 0 : index
    %0 = vector.load %arg1[%c0, %c0_0, %c0_1] : memref<1x256x16xf32, #tpu.memory_space<vmem>>, vector<1x256x16xf32>
    %1 = vector.shape_cast %0 : vector<1x256x16xf32> to vector<256x16xf32>
    %c0_2 = arith.constant 0 : index
    %c0_3 = arith.constant 0 : index
    %2 = vector.load %arg2[%c0_2, %c0_3] : memref<16x8xf32, #tpu.memory_space<vmem>>, vector<16x8xf32>
    %cst = arith.constant dense<0.000000e+00> : vector<256x8xf32>
    %3 = tpu.matmul %1, %2, %cst {dimension_numbers = #tpu.dot_dimension_numbers<[1], [0], [0], [1], [0, 0, 1, 1], [], []>} : vector<256x16xf32>, vector<16x8xf32>, vector<256x8xf32> -> vector<256x8xf32>
    %c0_4 = arith.constant 0 : index
    %c0_5 = arith.constant 0 : index
    %4 = vector.load %arg5[%c0_4, %c0_5] : memref<1x8xf32, #tpu.memory_space<vmem>>, vector<1x8xf32>
    %5 = vector.broadcast %4 : vector<1x8xf32> to vector<256x8xf32>
    %6 = arith.mulf %3, %5 : vector<256x8xf32>
    %c0_6 = arith.constant 0 : index
    %c0_7 = arith.constant 0 : index
    %7 = vector.load %arg6[%c0_6, %c0_7] : memref<1x8xf32, #tpu.memory_space<vmem>>, vector<1x8xf32>
    %8 = vector.broadcast %7 : vector<1x8xf32> to vector<256x8xf32>
    %9 = arith.addf %6, %8 : vector<256x8xf32>
    %cst_8 = arith.constant 0.000000e+00 : f32
    %10 = vector.broadcast %cst_8 : f32 to vector<256x8xf32>
    %11 = arith.maximumf %9, %10 : vector<256x8xf32>
    %cst_9 = arith.constant 0.000000e+00 : f32
    %12 = vector.broadcast %cst_9 : f32 to vector<297x8xf32>
    %c0_10 = arith.constant 0 : index
    %c0_11 = arith.constant 0 : index
    %13 = vector.load %arg12[%c0_10, %c0_11] : memref<297x8xf32, #tpu.memory_space<vmem>>, vector<297x8xf32>
    tpu.vector_store %arg12[%c0_10, %c0_11], %12 {strides = array<i32>} : memref<297x8xf32, #tpu.memory_space<vmem>>, vector<297x8xf32>,
    %c24 = arith.constant 24 : index
    %c0_12 = arith.constant 0 : index
    %14 = vector.load %arg12[%c24, %c0_12] : memref<297x8xf32, #tpu.memory_space<vmem>>, vector<256x8xf32>
    tpu.vector_store %arg12[%c24, %c0_12], %11 {strides = array<i32>} : memref<297x8xf32, #tpu.memory_space<vmem>>, vector<256x8xf32>,
    %15 = tpu.iota {dimensions = array<i32: 0>} : vector<256x1xi32>
    %c16_i32 = arith.constant 16 : i32
    %c0_i32 = arith.constant 0 : i32
    %16 = arith.cmpi eq, %c16_i32, %c0_i32 : i32
    %c1_i32 = arith.constant 1 : i32
    %17 = arith.select %16, %c1_i32, %c16_i32 : i32
    %18 = vector.broadcast %17 : i32 to vector<256x1xi32>
    %19 = arith.remsi %15, %18 : vector<256x1xi32>
    %c0_i32_13 = arith.constant 0 : i32
    %20 = vector.broadcast %c0_i32_13 : i32 to vector<256x1xi32>
    %21 = arith.cmpi ne, %19, %20 : vector<256x1xi32>
    %c0_i32_14 = arith.constant 0 : i32
    %22 = vector.broadcast %c0_i32_14 : i32 to vector<256x1xi32>
    %23 = arith.cmpi slt, %19, %22 : vector<256x1xi32>
    %c0_i32_15 = arith.constant 0 : i32
    %24 = arith.cmpi slt, %17, %c0_i32_15 : i32
    %25 = vector.broadcast %24 : i1 to vector<256x1xi1>
    %26 = vector.broadcast %25 : vector<256x1xi1> to vector<256x1xi1>
    %27 = arith.xori %23, %26 : vector<256x1xi1>
    %28 = arith.andi %27, %21 : vector<256x1xi1>
    %29 = vector.broadcast %17 : i32 to vector<256x1xi32>
    %30 = arith.addi %19, %29 : vector<256x1xi32>
    %31 = arith.select %28, %30, %19 : vector<256x1xi1>, vector<256x1xi32>
    %cst_16 = arith.constant 0.000000e+00 : f32
    %32 = vector.broadcast %cst_16 : f32 to vector<256x8xf32>
    %c7 = arith.constant 7 : index
    %c0_17 = arith.constant 0 : index
    %33 = vector.load %arg12[%c7, %c0_17] : memref<297x8xf32, #tpu.memory_space<vmem>>, vector<256x8xf32>
    %c0_i32_18 = arith.constant 0 : i32
    %34 = vector.broadcast %c0_i32_18 : i32 to vector<256x1xi32>
    %35 = arith.cmpi eq, %31, %34 : vector<256x1xi32>
    %cst_19 = arith.constant 0.000000e+00 : f32
    %36 = vector.shape_cast %35 : vector<256x1xi1> to vector<256x1xi1>
    %37 = vector.broadcast %36 : vector<256x1xi1> to vector<256x8xi1>
    %38 = vector.broadcast %cst_19 : f32 to vector<256x8xf32>
    %39 = arith.select %37, %38, %33 : vector<256x8xi1>, vector<256x8xf32>
    %c0_20 = arith.constant 0 : index
    %c0_21 = arith.constant 0 : index
    %c0_22 = arith.constant 0 : index
    %40 = vector.load %arg3[%c0_20, %c0_21, %c0_22] : memref<9x8x8xf32, #tpu.memory_space<vmem>>, vector<1x8x8xf32>
    %41 = vector.shape_cast %40 : vector<1x8x8xf32> to vector<8x8xf32>
    %cst_23 = arith.constant dense<0.000000e+00> : vector<256x8xf32>
    %42 = tpu.matmul %39, %41, %cst_23 {dimension_numbers = #tpu.dot_dimension_numbers<[1], [0], [0], [1], [0, 0, 1, 1], [], []>} : vector<256x8xf32>, vector<8x8xf32>, vector<256x8xf32> -> vector<256x8xf32>
    %43 = arith.addf %32, %42 : vector<256x8xf32>
    %c8 = arith.constant 8 : index
    %c0_24 = arith.constant 0 : index
    %44 = vector.load %arg12[%c8, %c0_24] : memref<297x8xf32, #tpu.memory_space<vmem>>, vector<256x8xf32>
    %c1 = arith.constant 1 : index
    %c0_25 = arith.constant 0 : index
    %c0_26 = arith.constant 0 : index
    %45 = vector.load %arg3[%c1, %c0_25, %c0_26] : memref<9x8x8xf32, #tpu.memory_space<vmem>>, vector<1x8x8xf32>
    %46 = vector.shape_cast %45 : vector<1x8x8xf32> to vector<8x8xf32>
    %cst_27 = arith.constant dense<0.000000e+00> : vector<256x8xf32>
    %47 = tpu.matmul %44, %46, %cst_27 {dimension_numbers = #tpu.dot_dimension_numbers<[1], [0], [0], [1], [0, 0, 1, 1], [], []>} : vector<256x8xf32>, vector<8x8xf32>, vector<256x8xf32> -> vector<256x8xf32>
    %48 = arith.addf %43, %47 : vector<256x8xf32>
    %c9 = arith.constant 9 : index
    %c0_28 = arith.constant 0 : index
    %49 = vector.load %arg12[%c9, %c0_28] : memref<297x8xf32, #tpu.memory_space<vmem>>, vector<256x8xf32>
    %c15_i32 = arith.constant 15 : i32
    %50 = vector.broadcast %c15_i32 : i32 to vector<256x1xi32>
    %51 = arith.cmpi eq, %31, %50 : vector<256x1xi32>
    %cst_29 = arith.constant 0.000000e+00 : f32
    %52 = vector.shape_cast %51 : vector<256x1xi1> to vector<256x1xi1>
    %53 = vector.broadcast %52 : vector<256x1xi1> to vector<256x8xi1>
    %54 = vector.broadcast %cst_29 : f32 to vector<256x8xf32>
    %55 = arith.select %53, %54, %49 : vector<256x8xi1>, vector<256x8xf32>
    %c2 = arith.constant 2 : index
    %c0_30 = arith.constant 0 : index
    %c0_31 = arith.constant 0 : index
    %56 = vector.load %arg3[%c2, %c0_30, %c0_31] : memref<9x8x8xf32, #tpu.memory_space<vmem>>, vector<1x8x8xf32>
    %57 = vector.shape_cast %56 : vector<1x8x8xf32> to vector<8x8xf32>
    %cst_32 = arith.constant dense<0.000000e+00> : vector<256x8xf32>
    %58 = tpu.matmul %55, %57, %cst_32 {dimension_numbers = #tpu.dot_dimension_numbers<[1], [0], [0], [1], [0, 0, 1, 1], [], []>} : vector<256x8xf32>, vector<8x8xf32>, vector<256x8xf32> -> vector<256x8xf32>
    %59 = arith.addf %48, %58 : vector<256x8xf32>
    %c23 = arith.constant 23 : index
    %c0_33 = arith.constant 0 : index
    %60 = vector.load %arg12[%c23, %c0_33] : memref<297x8xf32, #tpu.memory_space<vmem>>, vector<256x8xf32>
    %c0_i32_34 = arith.constant 0 : i32
    %61 = vector.broadcast %c0_i32_34 : i32 to vector<256x1xi32>
    %62 = arith.cmpi eq, %31, %61 : vector<256x1xi32>
    %cst_35 = arith.constant 0.000000e+00 : f32
    %63 = vector.shape_cast %62 : vector<256x1xi1> to vector<256x1xi1>
    %64 = vector.broadcast %63 : vector<256x1xi1> to vector<256x8xi1>
    %65 = vector.broadcast %cst_35 : f32 to vector<256x8xf32>
    %66 = arith.select %64, %65, %60 : vector<256x8xi1>, vector<256x8xf32>
    %c3 = arith.constant 3 : index
    %c0_36 = arith.constant 0 : index
    %c0_37 = arith.constant 0 : index
    %67 = vector.load %arg3[%c3, %c0_36, %c0_37] : memref<9x8x8xf32, #tpu.memory_space<vmem>>, vector<1x8x8xf32>
    %68 = vector.shape_cast %67 : vector<1x8x8xf32> to vector<8x8xf32>
    %cst_38 = arith.constant dense<0.000000e+00> : vector<256x8xf32>
    %69 = tpu.matmul %66, %68, %cst_38 {dimension_numbers = #tpu.dot_dimension_numbers<[1], [0], [0], [1], [0, 0, 1, 1], [], []>} : vector<256x8xf32>, vector<8x8xf32>, vector<256x8xf32> -> vector<256x8xf32>
    %70 = arith.addf %59, %69 : vector<256x8xf32>
    %c24_39 = arith.constant 24 : index
    %c0_40 = arith.constant 0 : index
    %71 = vector.load %arg12[%c24_39, %c0_40] : memref<297x8xf32, #tpu.memory_space<vmem>>, vector<256x8xf32>
    %c4 = arith.constant 4 : index
    %c0_41 = arith.constant 0 : index
    %c0_42 = arith.constant 0 : index
    %72 = vector.load %arg3[%c4, %c0_41, %c0_42] : memref<9x8x8xf32, #tpu.memory_space<vmem>>, vector<1x8x8xf32>
    %73 = vector.shape_cast %72 : vector<1x8x8xf32> to vector<8x8xf32>
    %cst_43 = arith.constant dense<0.000000e+00> : vector<256x8xf32>
    %74 = tpu.matmul %71, %73, %cst_43 {dimension_numbers = #tpu.dot_dimension_numbers<[1], [0], [0], [1], [0, 0, 1, 1], [], []>} : vector<256x8xf32>, vector<8x8xf32>, vector<256x8xf32> -> vector<256x8xf32>
    %75 = arith.addf %70, %74 : vector<256x8xf32>
    %c25 = arith.constant 25 : index
    %c0_44 = arith.constant 0 : index
    %76 = vector.load %arg12[%c25, %c0_44] : memref<297x8xf32, #tpu.memory_space<vmem>>, vector<256x8xf32>
    %c15_i32_45 = arith.constant 15 : i32
    %77 = vector.broadcast %c15_i32_45 : i32 to vector<256x1xi32>
    %78 = arith.cmpi eq, %31, %77 : vector<256x1xi32>
    %cst_46 = arith.constant 0.000000e+00 : f32
    %79 = vector.shape_cast %78 : vector<256x1xi1> to vector<256x1xi1>
    %80 = vector.broadcast %79 : vector<256x1xi1> to vector<256x8xi1>
    %81 = vector.broadcast %cst_46 : f32 to vector<256x8xf32>
    %82 = arith.select %80, %81, %76 : vector<256x8xi1>, vector<256x8xf32>
    %c5 = arith.constant 5 : index
    %c0_47 = arith.constant 0 : index
    %c0_48 = arith.constant 0 : index
    %83 = vector.load %arg3[%c5, %c0_47, %c0_48] : memref<9x8x8xf32, #tpu.memory_space<vmem>>, vector<1x8x8xf32>
    %84 = vector.shape_cast %83 : vector<1x8x8xf32> to vector<8x8xf32>
    %cst_49 = arith.constant dense<0.000000e+00> : vector<256x8xf32>
    %85 = tpu.matmul %82, %84, %cst_49 {dimension_numbers = #tpu.dot_dimension_numbers<[1], [0], [0], [1], [0, 0, 1, 1], [], []>} : vector<256x8xf32>, vector<8x8xf32>, vector<256x8xf32> -> vector<256x8xf32>
    %86 = arith.addf %75, %85 : vector<256x8xf32>
    %c39 = arith.constant 39 : index
    %c0_50 = arith.constant 0 : index
    %87 = vector.load %arg12[%c39, %c0_50] : memref<297x8xf32, #tpu.memory_space<vmem>>, vector<256x8xf32>
    %c0_i32_51 = arith.constant 0 : i32
    %88 = vector.broadcast %c0_i32_51 : i32 to vector<256x1xi32>
    %89 = arith.cmpi eq, %31, %88 : vector<256x1xi32>
    %cst_52 = arith.constant 0.000000e+00 : f32
    %90 = vector.shape_cast %89 : vector<256x1xi1> to vector<256x1xi1>
    %91 = vector.broadcast %90 : vector<256x1xi1> to vector<256x8xi1>
    %92 = vector.broadcast %cst_52 : f32 to vector<256x8xf32>
    %93 = arith.select %91, %92, %87 : vector<256x8xi1>, vector<256x8xf32>
    %c6 = arith.constant 6 : index
    %c0_53 = arith.constant 0 : index
    %c0_54 = arith.constant 0 : index
    %94 = vector.load %arg3[%c6, %c0_53, %c0_54] : memref<9x8x8xf32, #tpu.memory_space<vmem>>, vector<1x8x8xf32>
    %95 = vector.shape_cast %94 : vector<1x8x8xf32> to vector<8x8xf32>
    %cst_55 = arith.constant dense<0.000000e+00> : vector<256x8xf32>
    %96 = tpu.matmul %93, %95, %cst_55 {dimension_numbers = #tpu.dot_dimension_numbers<[1], [0], [0], [1], [0, 0, 1, 1], [], []>} : vector<256x8xf32>, vector<8x8xf32>, vector<256x8xf32> -> vector<256x8xf32>
    %97 = arith.addf %86, %96 : vector<256x8xf32>
    %c40 = arith.constant 40 : index
    %c0_56 = arith.constant 0 : index
    %98 = vector.load %arg12[%c40, %c0_56] : memref<297x8xf32, #tpu.memory_space<vmem>>, vector<256x8xf32>
    %c7_57 = arith.constant 7 : index
    %c0_58 = arith.constant 0 : index
    %c0_59 = arith.constant 0 : index
    %99 = vector.load %arg3[%c7_57, %c0_58, %c0_59] : memref<9x8x8xf32, #tpu.memory_space<vmem>>, vector<1x8x8xf32>
    %100 = vector.shape_cast %99 : vector<1x8x8xf32> to vector<8x8xf32>
    %cst_60 = arith.constant dense<0.000000e+00> : vector<256x8xf32>
    %101 = tpu.matmul %98, %100, %cst_60 {dimension_numbers = #tpu.dot_dimension_numbers<[1], [0], [0], [1], [0, 0, 1, 1], [], []>} : vector<256x8xf32>, vector<8x8xf32>, vector<256x8xf32> -> vector<256x8xf32>
    %102 = arith.addf %97, %101 : vector<256x8xf32>
    %c41 = arith.constant 41 : index
    %c0_61 = arith.constant 0 : index
    %103 = vector.load %arg12[%c41, %c0_61] : memref<297x8xf32, #tpu.memory_space<vmem>>, vector<256x8xf32>
    %c15_i32_62 = arith.constant 15 : i32
    %104 = vector.broadcast %c15_i32_62 : i32 to vector<256x1xi32>
    %105 = arith.cmpi eq, %31, %104 : vector<256x1xi32>
    %cst_63 = arith.constant 0.000000e+00 : f32
    %106 = vector.shape_cast %105 : vector<256x1xi1> to vector<256x1xi1>
    %107 = vector.broadcast %106 : vector<256x1xi1> to vector<256x8xi1>
    %108 = vector.broadcast %cst_63 : f32 to vector<256x8xf32>
    %109 = arith.select %107, %108, %103 : vector<256x8xi1>, vector<256x8xf32>
    %c8_64 = arith.constant 8 : index
    %c0_65 = arith.constant 0 : index
    %c0_66 = arith.constant 0 : index
    %110 = vector.load %arg3[%c8_64, %c0_65, %c0_66] : memref<9x8x8xf32, #tpu.memory_space<vmem>>, vector<1x8x8xf32>
    %111 = vector.shape_cast %110 : vector<1x8x8xf32> to vector<8x8xf32>
    %cst_67 = arith.constant dense<0.000000e+00> : vector<256x8xf32>
    %112 = tpu.matmul %109, %111, %cst_67 {dimension_numbers = #tpu.dot_dimension_numbers<[1], [0], [0], [1], [0, 0, 1, 1], [], []>} : vector<256x8xf32>, vector<8x8xf32>, vector<256x8xf32> -> vector<256x8xf32>
    %113 = arith.addf %102, %112 : vector<256x8xf32>
    %c0_68 = arith.constant 0 : index
    %c0_69 = arith.constant 0 : index
    %114 = vector.load %arg7[%c0_68, %c0_69] : memref<1x8xf32, #tpu.memory_space<vmem>>, vector<1x8xf32>
    %115 = vector.broadcast %114 : vector<1x8xf32> to vector<256x8xf32>
    %116 = arith.mulf %113, %115 : vector<256x8xf32>
    %c0_70 = arith.constant 0 : index
    %c0_71 = arith.constant 0 : index
    %117 = vector.load %arg8[%c0_70, %c0_71] : memref<1x8xf32, #tpu.memory_space<vmem>>, vector<1x8xf32>
    %118 = vector.broadcast %117 : vector<1x8xf32> to vector<256x8xf32>
    %119 = arith.addf %116, %118 : vector<256x8xf32>
    %cst_72 = arith.constant 0.000000e+00 : f32
    %120 = vector.broadcast %cst_72 : f32 to vector<256x8xf32>
    %121 = arith.maximumf %119, %120 : vector<256x8xf32>
    %c0_73 = arith.constant 0 : index
    %c0_74 = arith.constant 0 : index
    %122 = vector.load %arg4[%c0_73, %c0_74] : memref<8x16xf32, #tpu.memory_space<vmem>>, vector<8x16xf32>
    %cst_75 = arith.constant dense<0.000000e+00> : vector<256x16xf32>
    %123 = tpu.matmul %121, %122, %cst_75 {dimension_numbers = #tpu.dot_dimension_numbers<[1], [0], [0], [1], [0, 0, 1, 1], [], []>} : vector<256x8xf32>, vector<8x16xf32>, vector<256x16xf32> -> vector<256x16xf32>
    %c0_76 = arith.constant 0 : index
    %c0_77 = arith.constant 0 : index
    %124 = vector.load %arg9[%c0_76, %c0_77] : memref<1x16xf32, #tpu.memory_space<vmem>>, vector<1x16xf32>
    %125 = vector.broadcast %124 : vector<1x16xf32> to vector<256x16xf32>
    %126 = arith.mulf %123, %125 : vector<256x16xf32>
    %c0_78 = arith.constant 0 : index
    %c0_79 = arith.constant 0 : index
    %127 = vector.load %arg10[%c0_78, %c0_79] : memref<1x16xf32, #tpu.memory_space<vmem>>, vector<1x16xf32>
    %128 = vector.broadcast %127 : vector<1x16xf32> to vector<256x16xf32>
    %129 = arith.addf %126, %128 : vector<256x16xf32>
    %130 = arith.addf %129, %1 : vector<256x16xf32>
    %c0_80 = arith.constant 0 : index
    %c0_81 = arith.constant 0 : index
    %c0_82 = arith.constant 0 : index
    %131 = vector.load %arg11[%c0_80, %c0_81, %c0_82] : memref<1x256x16xf32, #tpu.memory_space<vmem>>, vector<1x256x16xf32>
    %132 = vector.shape_cast %131 : vector<1x256x16xf32> to vector<256x16xf32>
    %133 = vector.shape_cast %130 : vector<256x16xf32> to vector<1x256x16xf32>
    tpu.vector_store %arg11[%c0_80, %c0_81, %c0_82], %133 {strides = array<i32>} : memref<1x256x16xf32, #tpu.memory_space<vmem>>, vector<1x256x16xf32>,
    return
  }
  func.func @transform_0(%arg0: i32) -> (i32, i32, i32) {
    %c0_i32 = arith.constant 0 : i32
    %c0_i32_0 = arith.constant 0 : i32
    %c0_i32_1 = arith.constant 0 : i32
    return %arg0, %c0_i32, %c0_i32_0 : i32, i32, i32
  }
  func.func @transform_1(%arg0: i32) -> (i32, i32) {
    %c0_i32 = arith.constant 0 : i32
    %c0_i32_0 = arith.constant 0 : i32
    %c0_i32_1 = arith.constant 0 : i32
    return %c0_i32, %c0_i32_0 : i32, i32
  }
  func.func @transform_2(%arg0: i32) -> (i32, i32, i32) {
    %c0_i32 = arith.constant 0 : i32
    %c0_i32_0 = arith.constant 0 : i32
    %c0_i32_1 = arith.constant 0 : i32
    %c0_i32_2 = arith.constant 0 : i32
    return %c0_i32, %c0_i32_0, %c0_i32_1 : i32, i32, i32
  }
  func.func @transform_3(%arg0: i32) -> (i32, i32) {
    %c0_i32 = arith.constant 0 : i32
    %c0_i32_0 = arith.constant 0 : i32
    %c0_i32_1 = arith.constant 0 : i32
    return %c0_i32, %c0_i32_0 : i32, i32
  }
  func.func @transform_4(%arg0: i32) -> (i32, i32) {
    %c0_i32 = arith.constant 0 : i32
    %c0_i32_0 = arith.constant 0 : i32
    %c0_i32_1 = arith.constant 0 : i32
    return %c0_i32, %c0_i32_0 : i32, i32
  }
  func.func @transform_5(%arg0: i32) -> (i32, i32) {
    %c0_i32 = arith.constant 0 : i32
    %c0_i32_0 = arith.constant 0 : i32
    %c0_i32_1 = arith.constant 0 : i32
    return %c0_i32, %c0_i32_0 : i32, i32
  }
  func.func @transform_6(%arg0: i32) -> (i32, i32) {
    %c0_i32 = arith.constant 0 : i32
    %c0_i32_0 = arith.constant 0 : i32
    %c0_i32_1 = arith.constant 0 : i32
    return %c0_i32, %c0_i32_0 : i32, i32
  }
  func.func @transform_7(%arg0: i32) -> (i32, i32) {
    %c0_i32 = arith.constant 0 : i32
    %c0_i32_0 = arith.constant 0 : i32
    %c0_i32_1 = arith.constant 0 : i32
    return %c0_i32, %c0_i32_0 : i32, i32
  }
  func.func @transform_8(%arg0: i32) -> (i32, i32) {
    %c0_i32 = arith.constant 0 : i32
    %c0_i32_0 = arith.constant 0 : i32
    %c0_i32_1 = arith.constant 0 : i32
    return %c0_i32, %c0_i32_0 : i32, i32
  }
  func.func @transform_9(%arg0: i32) -> (i32, i32) {
    %c0_i32 = arith.constant 0 : i32
    %c0_i32_0 = arith.constant 0 : i32
    %c0_i32_1 = arith.constant 0 : i32
    return %c0_i32, %c0_i32_0 : i32, i32
  }
  func.func @transform_10(%arg0: i32) -> (i32, i32, i32) {
    %c0_i32 = arith.constant 0 : i32
    %c0_i32_0 = arith.constant 0 : i32
    %c0_i32_1 = arith.constant 0 : i32
    return %arg0, %c0_i32, %c0_i32_0 : i32, i32, i32
  }
}

</mosaic_0001>

<llo_original>
// kernel: tpu_custom_call.1
$region0: #{tpu_custom_call.1}
  #allocation0 [shape = 'u32[]', space=smem, size = 0x4, offset = 0x4, fixed_abs, tag = 'smem constant byte address 0x4 - core index']
  #allocation1 [shape = 'u32[144,128]{1,0:T(1,128)}', space=vmem, size = 0x12000, scoped, tag = 'internal scratch']
  #allocation2 [shape = 'f32[297,8]{1,0:T(8,128)}', space=vmem, size = 0x26000, scoped, tag = 'scratch operand']
  %s0 = inlined_call_operand.vmem [shape: f32[2,256,16], index: 0, kind: input, shape index: {}]
  %s1 = inlined_call_operand.vmem [shape: f32[16,8], index: 1, kind: input, shape index: {}]
  %s2 = inlined_call_operand.vmem [shape: f32[9,8,8], index: 2, kind: input, shape index: {}]
  %s3 = inlined_call_operand.vmem [shape: f32[8,16], index: 3, kind: input, shape index: {}]
  %s4 = inlined_call_operand.vmem [shape: f32[1,8], index: 4, kind: input, shape index: {}]
  %s5 = inlined_call_operand.vmem [shape: f32[1,8], index: 5, kind: input, shape index: {}]
  %s6 = inlined_call_operand.vmem [shape: f32[1,8], index: 6, kind: input, shape index: {}]
  %s7 = inlined_call_operand.vmem [shape: f32[1,8], index: 7, kind: input, shape index: {}]
  %s8 = inlined_call_operand.vmem [shape: f32[1,16], index: 8, kind: input, shape index: {}]
  %s9 = inlined_call_operand.vmem [shape: f32[1,16], index: 9, kind: input, shape index: {}]
  %s10 = inlined_call_operand.vmem [shape: f32[2,256,16], index: 10, kind: output, shape index: {}]
  %s11 = sld [smem:[#allocation0]]
  $region73: #{tpu_custom_call.1} parent=0
    _
  %s13 = ssub.s32 1, %s11
  %s14 = scalar_select 0, %s13, %s11
  loop: start=0, step=1, limit=4
  $region2: #{tpu_custom_call.1} parent=0 // loop_pre_header
    _
  $region3: #{tpu_custom_call.1} parent=0 // loop_header
    %s16 = sphi 0, %s20
    %p17 = scmp.ge.s32.totalorder %s16, 4
    %s26 = sphi 0, %s28
    %s29 = sphi 0, %s26
    %s30 = sphi 0, %s29
    %s46 = sphi 0, %s30
    %s50 = sphi 0, %s50
    %s52 = sphi 0, %s50
    %s53 = sphi 0, %s52
    %s67 = sphi 0, %s53
    %s71 = sphi 0, %s71
    %s73 = sphi 0, %s71
    %s74 = sphi 0, %s73
    %s88 = sphi 0, %s74
    %s92 = sphi 0, %s92
    %s94 = sphi 0, %s92
    %s95 = sphi 0, %s94
    %s109 = sphi 0, %s95
    %s113 = sphi 0, %s113
    %s115 = sphi 0, %s113
    %s116 = sphi 0, %s115
    %s130 = sphi 0, %s116
    %s134 = sphi 0, %s134
    %s136 = sphi 0, %s134
    %s137 = sphi 0, %s136
    %s151 = sphi 0, %s137
    %s155 = sphi 0, %s155
    %s157 = sphi 0, %s155
    %s158 = sphi 0, %s157
    %s172 = sphi 0, %s158
    %s176 = sphi 0, %s176
    %s178 = sphi 0, %s176
    %s179 = sphi 0, %s178
    %s193 = sphi 0, %s179
    %s197 = sphi 0, %s197
    %s199 = sphi 0, %s197
    %s200 = sphi 0, %s199
    %s214 = sphi 0, %s200
    %s218 = sphi 0, %s218
    %s220 = sphi 0, %s218
    %s221 = sphi 0, %s220
    %s235 = sphi 0, %s221
    %s241 = sphi 0, %s243
    %s244 = sphi 0, %s241
    %s245 = sphi 0, %s244
    %s261 = sphi 0, %s245
  $region4: #{tpu_custom_call.1} parent=0 // loop_header_branch
    %19 = sbr.rel (%p17) target = $region8
  $region5: #{tpu_custom_call.1} parent=0 // loop_body
    %s21 = ssub.s32 %s16, 1
    %s22 = ssub.s32 %s16, 2
    %s23 = sadd.s32 %s16, 1
    %s24 = ssub.s32 %s16, %s23
    %p25 = scmp.eq.s32.totalorder %s24, 0
    %s27 = sadd.s32 %s26, 1
    %s28 = scalar_select %p25, %s26, %s27
    %p31 = pneg %p25
    %p32 = scmp.eq.s32.totalorder %s16, 1
    %p33 = por %p31, %p32
    %p34 = scmp.ne.s32.totalorder %s26, %s29
    %p35 = scmp.eq.s32.totalorder %s16, 0
    %p36 = por %p34, %p35
    %p37 = scmp.ne.s32.totalorder %s26, %s29
    %p38 = scmp.eq.s32.totalorder %s21, 1
    %p39 = por %p37, %p38
    %p40 = scmp.ne.s32.totalorder %s29, %s30
    %p41 = scmp.eq.s32.totalorder %s21, 0
    %p42 = por %p40, %p41
    %p43 = scmp.ne.s32.totalorder %s29, %s30
    %p44 = scmp.eq.s32.totalorder %s22, 1
    %p45 = por %p43, %p44
    %p47 = scmp.ne.s32.totalorder %s30, %s46
    %p48 = scmp.eq.s32.totalorder %s22, 0
    %p49 = por %p47, %p48
    %s51 = sadd.s32 %s50, 1
    %p54 = scmp.eq.s32.totalorder %s16, 1
    %p55 = scmp.ne.s32.totalorder %s50, %s52
    %p56 = scmp.eq.s32.totalorder %s16, 0
    %p57 = por %p55, %p56
    %p58 = scmp.ne.s32.totalorder %s50, %s52
    %p59 = scmp.eq.s32.totalorder %s21, 1
    %p60 = por %p58, %p59
    %p61 = scmp.ne.s32.totalorder %s52, %s53
    %p62 = scmp.eq.s32.totalorder %s21, 0
    %p63 = por %p61, %p62
    %p64 = scmp.ne.s32.totalorder %s52, %s53
    %p65 = scmp.eq.s32.totalorder %s22, 1
    %p66 = por %p64, %p65
    %p68 = scmp.ne.s32.totalorder %s53, %s67
    %p69 = scmp.eq.s32.totalorder %s22, 0
    %p70 = por %p68, %p69
    %s72 = sadd.s32 %s71, 1
    %p75 = scmp.eq.s32.totalorder %s16, 1
    %p76 = scmp.ne.s32.totalorder %s71, %s73
    %p77 = scmp.eq.s32.totalorder %s16, 0
    %p78 = por %p76, %p77
    %p79 = scmp.ne.s32.totalorder %s71, %s73
    %p80 = scmp.eq.s32.totalorder %s21, 1
    %p81 = por %p79, %p80
    %p82 = scmp.ne.s32.totalorder %s73, %s74
    %p83 = scmp.eq.s32.totalorder %s21, 0
    %p84 = por %p82, %p83
    %p85 = scmp.ne.s32.totalorder %s73, %s74
    %p86 = scmp.eq.s32.totalorder %s22, 1
    %p87 = por %p85, %p86
    %p89 = scmp.ne.s32.totalorder %s74, %s88
    %p90 = scmp.eq.s32.totalorder %s22, 0
    %p91 = por %p89, %p90
    %s93 = sadd.s32 %s92, 1
    %p96 = scmp.eq.s32.totalorder %s16, 1
    %p97 = scmp.ne.s32.totalorder %s92, %s94
    %p98 = scmp.eq.s32.totalorder %s16, 0
    %p99 = por %p97, %p98
    %p100 = scmp.ne.s32.totalorder %s92, %s94
    %p101 = scmp.eq.s32.totalorder %s21, 1
    %p102 = por %p100, %p101
    %p103 = scmp.ne.s32.totalorder %s94, %s95
    %p104 = scmp.eq.s32.totalorder %s21, 0
    %p105 = por %p103, %p104
    %p106 = scmp.ne.s32.totalorder %s94, %s95
    %p107 = scmp.eq.s32.totalorder %s22, 1
    %p108 = por %p106, %p107
    %p110 = scmp.ne.s32.totalorder %s95, %s109
    %p111 = scmp.eq.s32.totalorder %s22, 0
    %p112 = por %p110, %p111
    %s114 = sadd.s32 %s113, 1
    %p117 = scmp.eq.s32.totalorder %s16, 1
    %p118 = scmp.ne.s32.totalorder %s113, %s115
    %p119 = scmp.eq.s32.totalorder %s16, 0
    %p120 = por %p118, %p119
    %p121 = scmp.ne.s32.totalorder %s113, %s115
    %p122 = scmp.eq.s32.totalorder %s21, 1
    %p123 = por %p121, %p122
    %p124 = scmp.ne.s32.totalorder %s115, %s116
    %p125 = scmp.eq.s32.totalorder %s21, 0
    %p126 = por %p124, %p125
    %p127 = scmp.ne.s32.totalorder %s115, %s116
    %p128 = scmp.eq.s32.totalorder %s22, 1
    %p129 = por %p127, %p128
    %p131 = scmp.ne.s32.totalorder %s116, %s130
    %p132 = scmp.eq.s32.totalorder %s22, 0
    %p133 = por %p131, %p132
    %s135 = sadd.s32 %s134, 1
    %p138 = scmp.eq.s32.totalorder %s16, 1
    %p139 = scmp.ne.s32.totalorder %s134, %s136
    %p140 = scmp.eq.s32.totalorder %s16, 0
    %p141 = por %p139, %p140
    %p142 = scmp.ne.s32.totalorder %s134, %s136
    %p143 = scmp.eq.s32.totalorder %s21, 1
    %p144 = por %p142, %p143
    %p145 = scmp.ne.s32.totalorder %s136, %s137
    %p146 = scmp.eq.s32.totalorder %s21, 0
    %p147 = por %p145, %p146
    %p148 = scmp.ne.s32.totalorder %s136, %s137
    %p149 = scmp.eq.s32.totalorder %s22, 1
    %p150 = por %p148, %p149
    %p152 = scmp.ne.s32.totalorder %s137, %s151
    %p153 = scmp.eq.s32.totalorder %s22, 0
    %p154 = por %p152, %p153
    %s156 = sadd.s32 %s155, 1
    %p159 = scmp.eq.s32.totalorder %s16, 1
    %p160 = scmp.ne.s32.totalorder %s155, %s157
    %p161 = scmp.eq.s32.totalorder %s16, 0
    %p162 = por %p160, %p161
    %p163 = scmp.ne.s32.totalorder %s155, %s157
    %p164 = scmp.eq.s32.totalorder %s21, 1
    %p165 = por %p163, %p164
    %p166 = scmp.ne.s32.totalorder %s157, %s158
    %p167 = scmp.eq.s32.totalorder %s21, 0
    %p168 = por %p166, %p167
    %p169 = scmp.ne.s32.totalorder %s157, %s158
    %p170 = scmp.eq.s32.totalorder %s22, 1
    %p171 = por %p169, %p170
    %p173 = scmp.ne.s32.totalorder %s158, %s172
    %p174 = scmp.eq.s32.totalorder %s22, 0
    %p175 = por %p173, %p174
    %s177 = sadd.s32 %s176, 1
    %p180 = scmp.eq.s32.totalorder %s16, 1
    %p181 = scmp.ne.s32.totalorder %s176, %s178
    %p182 = scmp.eq.s32.totalorder %s16, 0
    %p183 = por %p181, %p182
    %p184 = scmp.ne.s32.totalorder %s176, %s178
    %p185 = scmp.eq.s32.totalorder %s21, 1
    %p186 = por %p184, %p185
    %p187 = scmp.ne.s32.totalorder %s178, %s179
    %p188 = scmp.eq.s32.totalorder %s21, 0
    %p189 = por %p187, %p188
    %p190 = scmp.ne.s32.totalorder %s178, %s179
    %p191 = scmp.eq.s32.totalorder %s22, 1
    %p192 = por %p190, %p191
    %p194 = scmp.ne.s32.totalorder %s179, %s193
    %p195 = scmp.eq.s32.totalorder %s22, 0
    %p196 = por %p194, %p195
    %s198 = sadd.s32 %s197, 1
    %p201 = scmp.eq.s32.totalorder %s16, 1
    %p202 = scmp.ne.s32.totalorder %s197, %s199
    %p203 = scmp.eq.s32.totalorder %s16, 0
    %p204 = por %p202, %p203
    %p205 = scmp.ne.s32.totalorder %s197, %s199
    %p206 = scmp.eq.s32.totalorder %s21, 1
    %p207 = por %p205, %p206
    %p208 = scmp.ne.s32.totalorder %s199, %s200
    %p209 = scmp.eq.s32.totalorder %s21, 0
    %p210 = por %p208, %p209
    %p211 = scmp.ne.s32.totalorder %s199, %s200
    %p212 = scmp.eq.s32.totalorder %s22, 1
    %p213 = por %p211, %p212
    %p215 = scmp.ne.s32.totalorder %s200, %s214
    %p216 = scmp.eq.s32.totalorder %s22, 0
    %p217 = por %p215, %p216
    %s219 = sadd.s32 %s218, 1
    %p222 = scmp.eq.s32.totalorder %s16, 1
    %p223 = scmp.ne.s32.totalorder %s218, %s220
    %p224 = scmp.eq.s32.totalorder %s16, 0
    %p225 = por %p223, %p224
    %p226 = scmp.ne.s32.totalorder %s218, %s220
    %p227 = scmp.eq.s32.totalorder %s21, 1
    %p228 = por %p226, %p227
    %p229 = scmp.ne.s32.totalorder %s220, %s221
    %p230 = scmp.eq.s32.totalorder %s21, 0
    %p231 = por %p229, %p230
    %p232 = scmp.ne.s32.totalorder %s220, %s221
    %p233 = scmp.eq.s32.totalorder %s22, 1
    %p234 = por %p232, %p233
    %p236 = scmp.ne.s32.totalorder %s221, %s235
    %p237 = scmp.eq.s32.totalorder %s22, 0
    %p238 = por %p236, %p237
    %s239 = ssub.s32 %s16, %s23
    %p240 = scmp.eq.s32.totalorder %s239, 0
    %s242 = sadd.s32 %s241, 1
    %s243 = scalar_select %p240, %s241, %s242
    %p246 = pneg %p240
    %p247 = scmp.eq.s32.totalorder %s16, 1
    %p248 = por %p246, %p247
    %p249 = scmp.ne.s32.totalorder %s241, %s244
    %p250 = scmp.eq.s32.totalorder %s16, 0
    %p251 = por %p249, %p250
    %p252 = scmp.ne.s32.totalorder %s241, %s244
    %p253 = scmp.eq.s32.totalorder %s21, 1
    %p254 = por %p252, %p253
    %p255 = scmp.ne.s32.totalorder %s244, %s245
    %p256 = scmp.eq.s32.totalorder %s21, 0
    %p257 = por %p255, %p256
    %p258 = scmp.ne.s32.totalorder %s244, %s245
    %p259 = scmp.eq.s32.totalorder %s22, 1
    %p260 = por %p258, %p259
    %p262 = scmp.ne.s32.totalorder %s245, %s261
    %p263 = scmp.eq.s32.totalorder %s22, 0
    %p264 = por %p262, %p263
    %p265 = scmp.le.s32.totalorder 1, %s16
    %p266 = scmp.lt.s32.totalorder %s16, 3
    %p267 = pnand %p265, %p266
    %p268 = pneg %p267
    // Predicated region
    $region9: #{tpu_custom_call.1} parent=5 // pred_check
      _
    $region10: #{tpu_custom_call.1} parent=5 // pred_check_branch
      %270 = sbr.rel (%p267) target = $region12
    $region11: #{tpu_custom_call.1} parent=5 // pred_region
      %s271 = ssub.s32 %s16, 1
      // Predicated region
      $region13: #{tpu_custom_call.1} parent=11 // pred_check
        %p272 = pneg %p63
      $region14: #{tpu_custom_call.1} parent=11 // pred_check_branch
        %274 = sbr.rel (%p272) target = $region16
      $region15: #{tpu_custom_call.1} parent=11 // pred_region
        _
      $region16: #{tpu_custom_call.1} parent=11 // pred_fallthru
        _
      // Predicated region
      $region17: #{tpu_custom_call.1} parent=11 // pred_check
        %p275 = pneg %p84
      $region18: #{tpu_custom_call.1} parent=11 // pred_check_branch
        %277 = sbr.rel (%p275) target = $region20
      $region19: #{tpu_custom_call.1} parent=11 // pred_region
        _
      $region20: #{tpu_custom_call.1} parent=11 // pred_fallthru
        _
      // Predicated region
      $region21: #{tpu_custom_call.1} parent=11 // pred_check
        %p278 = pneg %p105
      $region22: #{tpu_custom_call.1} parent=11 // pred_check_branch
        %280 = sbr.rel (%p278) target = $region24
      $region23: #{tpu_custom_call.1} parent=11 // pred_region
        _
      $region24: #{tpu_custom_call.1} parent=11 // pred_fallthru
        _
      // Predicated region
      $region25: #{tpu_custom_call.1} parent=11 // pred_check
        %p281 = pneg %p126
      $region26: #{tpu_custom_call.1} parent=11 // pred_check_branch
        %283 = sbr.rel (%p281) target = $region28
      $region27: #{tpu_custom_call.1} parent=11 // pred_region
        _
      $region28: #{tpu_custom_call.1} parent=11 // pred_fallthru
        _
      // Predicated region
      $region29: #{tpu_custom_call.1} parent=11 // pred_check
        %p284 = pneg %p147
      $region30: #{tpu_custom_call.1} parent=11 // pred_check_branch
        %286 = sbr.rel (%p284) target = $region32
      $region31: #{tpu_custom_call.1} parent=11 // pred_region
        _
      $region32: #{tpu_custom_call.1} parent=11 // pred_fallthru
        _
      // Predicated region
      $region33: #{tpu_custom_call.1} parent=11 // pred_check
        %p287 = pneg %p168
      $region34: #{tpu_custom_call.1} parent=11 // pred_check_branch
        %289 = sbr.rel (%p287) target = $region36
      $region35: #{tpu_custom_call.1} parent=11 // pred_region
        _
      $region36: #{tpu_custom_call.1} parent=11 // pred_fallthru
        _
      // Predicated region
      $region37: #{tpu_custom_call.1} parent=11 // pred_check
        %p290 = pneg %p189
      $region38: #{tpu_custom_call.1} parent=11 // pred_check_branch
        %292 = sbr.rel (%p290) target = $region40
      $region39: #{tpu_custom_call.1} parent=11 // pred_region
        _
      $region40: #{tpu_custom_call.1} parent=11 // pred_fallthru
        _
      // Predicated region
      $region41: #{tpu_custom_call.1} parent=11 // pred_check
        %p293 = pneg %p210
      $region42: #{tpu_custom_call.1} parent=11 // pred_check_branch
        %295 = sbr.rel (%p293) target = $region44
      $region43: #{tpu_custom_call.1} parent=11 // pred_region
        _
      $region44: #{tpu_custom_call.1} parent=11 // pred_fallthru
        _
      // Predicated region
      $region45: #{tpu_custom_call.1} parent=11 // pred_check
        %p296 = pneg %p231
      $region46: #{tpu_custom_call.1} parent=11 // pred_check_branch
        %298 = sbr.rel (%p296) target = $region48
      $region47: #{tpu_custom_call.1} parent=11 // pred_region
        _
      $region48: #{tpu_custom_call.1} parent=11 // pred_fallthru
        _
    $region12: #{tpu_custom_call.1} parent=5 // pred_fallthru
      _
    %p299 = scmp.lt.s32.totalorder %s16, 2
    // Predicated region
    $region49: #{tpu_custom_call.1} parent=5 // pred_check
      %p300 = pneg %p299
    $region50: #{tpu_custom_call.1} parent=5 // pred_check_branch
      %302 = sbr.rel (%p300) target = $region52
    $region51: #{tpu_custom_call.1} parent=5 // pred_region
      // Predicated region
      $region53: #{tpu_custom_call.1} parent=51 // pred_check
        %p303 = pneg %p36
      $region54: #{tpu_custom_call.1} parent=51 // pred_check_branch
        %305 = sbr.rel (%p303) target = $region56
      $region55: #{tpu_custom_call.1} parent=51 // pred_region
        %p306 = scmp.lt.s32.totalorder %s16, 1
        %s307 = scalar_select %p306, %s16, 1
        %s308 = smul.addr %s307, 32
        %s309 = smul.addr %s308, 8
        %s310 = scalar_lea.vmem %s0, %s309
      $region56: #{tpu_custom_call.1} parent=51 // pred_fallthru
        _
    $region52: #{tpu_custom_call.1} parent=5 // pred_fallthru
      _
    %p311 = scmp.le.s32.totalorder 1, %s16
    %p312 = scmp.lt.s32.totalorder %s16, 3
    %p313 = pnand %p311, %p312
    %p314 = pneg %p313
    // Predicated region
    $region57: #{tpu_custom_call.1} parent=5 // pred_check
      _
    $region58: #{tpu_custom_call.1} parent=5 // pred_check_branch
      %316 = sbr.rel (%p313) target = $region60
    $region59: #{tpu_custom_call.1} parent=5 // pred_region
      %s317 = ssub.s32 %s16, 1
      %p318 = scmp.lt.s32.totalorder %s21, 1
      %s319 = scalar_select %p318, %s21, 1
      %s320 = smul.addr %s319, 32
      %s321 = smul.addr %s320, 8
      %s322 = scalar_lea.vmem %s0, %s321
      %p323 = pneg %p42
      %p324 = pneg %p39
      %p325 = pneg %p63
      %p326 = pneg %p60
      %p327 = pneg %p84
      %p328 = pneg %p81
      %p329 = pneg %p105
      %p330 = pneg %p102
      %p331 = pneg %p126
      %p332 = pneg %p123
      %p333 = pneg %p147
      %p334 = pneg %p144
      %p335 = pneg %p168
      %p336 = pneg %p165
      %p337 = pneg %p189
      %p338 = pneg %p186
      %p339 = pneg %p210
      %p340 = pneg %p207
      %p341 = pneg %p231
      %p342 = pneg %p228
      %p343 = pneg %p257
      %p344 = pneg %p254
      %p345 = scmp.lt.s32.totalorder %s21, 1
      %s346 = scalar_select %p345, %s21, 1
      %s347 = smul.addr %s346, 32
      %s348 = smul.addr %s347, 8
      %s349 = scalar_lea.vmem %s10, %s348
      %p350 = scmp.lt.s32.totalorder %s21, 1
      %s351 = scalar_select %p350, %s21, 1
      %s352 = smul.addr %s351, 32
      %s353 = smul.addr %s352, 8
      %s354 = scalar_lea.vmem %s0, %s353
      %p355 = scmp.lt.s32.totalorder %s21, 1
      %s356 = scalar_select %p355, %s21, 1
      %s357 = smul.addr %s356, 32
      %s358 = smul.addr %s357, 8
      %s359 = scalar_lea.vmem %s10, %s358
      %v360 = vld [vmem:[%s354] sm:$0xff]
      %v361 = vld [vmem:[%s354 + $0x8] sm:$0xff]
      %v362 = vld [vmem:[%s354 + $0x10] sm:$0xff]
      %v363 = vld [vmem:[%s354 + $0x18] sm:$0xff]
      %v364 = vld [vmem:[%s354 + $0x20] sm:$0xff]
      %v365 = vld [vmem:[%s354 + $0x28] sm:$0xff]
      %v366 = vld [vmem:[%s354 + $0x30] sm:$0xff]
      %v367 = vld [vmem:[%s354 + $0x38] sm:$0xff]
      %v368 = vld [vmem:[%s354 + $0x40] sm:$0xff]
      %v369 = vld [vmem:[%s354 + $0x48] sm:$0xff]
      %v370 = vld [vmem:[%s354 + $0x50] sm:$0xff]
      %v371 = vld [vmem:[%s354 + $0x58] sm:$0xff]
      %v372 = vld [vmem:[%s354 + $0x60] sm:$0xff]
      %v373 = vld [vmem:[%s354 + $0x68] sm:$0xff]
      %v374 = vld [vmem:[%s354 + $0x70] sm:$0xff]
      %v375 = vld [vmem:[%s354 + $0x78] sm:$0xff]
      %v376 = vld [vmem:[%s354 + $0x80] sm:$0xff]
      %v377 = vld [vmem:[%s354 + $0x88] sm:$0xff]
      %v378 = vld [vmem:[%s354 + $0x90] sm:$0xff]
      %v379 = vld [vmem:[%s354 + $0x98] sm:$0xff]
      %v380 = vld [vmem:[%s354 + $0xa0] sm:$0xff]
      %v381 = vld [vmem:[%s354 + $0xa8] sm:$0xff]
      %v382 = vld [vmem:[%s354 + $0xb0] sm:$0xff]
      %v383 = vld [vmem:[%s354 + $0xb8] sm:$0xff]
      %v384 = vld [vmem:[%s354 + $0xc0] sm:$0xff]
      %v385 = vld [vmem:[%s354 + $0xc8] sm:$0xff]
      %v386 = vld [vmem:[%s354 + $0xd0] sm:$0xff]
      %v387 = vld [vmem:[%s354 + $0xd8] sm:$0xff]
      %v388 = vld [vmem:[%s354 + $0xe0] sm:$0xff]
      %v389 = vld [vmem:[%s354 + $0xe8] sm:$0xff]
      %v390 = vld [vmem:[%s354 + $0xf0] sm:$0xff]
      %v391 = vld [vmem:[%s354 + $0xf8] sm:$0xff]
      %v392 = vld [vmem:[%s1] sm:$0xff]
      %v393 = vld [vmem:[%s1 + $0x8] sm:$0xff]
      %vm394 = vcmask 130048
      %v396 = vsel %vm394, %v360, 0
      %v399 = vsel %vm394, %v361, 0
      %v402 = vsel %vm394, %v362, 0
      %v405 = vsel %vm394, %v363, 0
      %v408 = vsel %vm394, %v364, 0
      %v411 = vsel %vm394, %v365, 0
      %v414 = vsel %vm394, %v366, 0
      %v417 = vsel %vm394, %v367, 0
      %v420 = vsel %vm394, %v368, 0
      %v423 = vsel %vm394, %v369, 0
      %v426 = vsel %vm394, %v370, 0
      %v429 = vsel %vm394, %v371, 0
      %v432 = vsel %vm394, %v372, 0
      %v435 = vsel %vm394, %v373, 0
      %v438 = vsel %vm394, %v374, 0
      %v441 = vsel %vm394, %v375, 0
      %v444 = vsel %vm394, %v376, 0
      %v447 = vsel %vm394, %v377, 0
      %v450 = vsel %vm394, %v378, 0
      %v453 = vsel %vm394, %v379, 0
      %v456 = vsel %vm394, %v380, 0
      %v459 = vsel %vm394, %v381, 0
      %v462 = vsel %vm394, %v382, 0
      %v465 = vsel %vm394, %v383, 0
      %v468 = vsel %vm394, %v384, 0
      %v471 = vsel %vm394, %v385, 0
      %v474 = vsel %vm394, %v386, 0
      %v477 = vsel %vm394, %v387, 0
      %v480 = vsel %vm394, %v388, 0
      %v483 = vsel %vm394, %v389, 0
      %v486 = vsel %vm394, %v390, 0
      %v489 = vsel %vm394, %v391, 0
      %491 = vmatprep.subr.mxu0 0.0
      %492 = vmatpush1.msra.mxu0 %v392
      %493 = vmatprep.subr.mxu0 0.0
      %494 = vmatpush1.msra.mxu0 %v393
      %495 = vmatprep.subr.mxu0 0.0
      %496 = vmatpush1.msra.mxu0 0.0
      %497 = vmatprep.subr.mxu0 0.0
      %498 = vmatpush1.msra.mxu0 0.0
      %499 = vmatprep.subr.mxu0 0.0
      %500 = vmatpush1.msra.mxu0 0.0
      %501 = vmatprep.subr.mxu0 0.0
      %502 = vmatpush1.msra.mxu0 0.0
      %503 = vmatprep.subr.mxu0 0.0
      %504 = vmatpush1.msra.mxu0 0.0
      %505 = vmatprep.subr.mxu0 0.0
      %506 = vmatpush1.msra.mxu0 0.0
      %507 = vmatprep.subr.mxu0 0.0
      %508 = vmatpush1.msra.mxu0 0.0
      %509 = vmatprep.subr.mxu0 0.0
      %510 = vmatpush1.msra.mxu0 0.0
      %511 = vmatprep.subr.mxu0 0.0
      %512 = vmatpush1.msra.mxu0 0.0
      %513 = vmatprep.subr.mxu0 0.0
      %514 = vmatpush1.msra.mxu0 0.0
      %515 = vmatprep.subr.mxu0 0.0
      %516 = vmatpush1.msra.mxu0 0.0
      %517 = vmatprep.subr.mxu0 0.0
      %518 = vmatpush1.msra.mxu0 0.0
      %519 = vmatprep.subr.mxu0 0.0
      %520 = vmatpush1.msra.mxu0 0.0
      %521 = vmatprep.subr.mxu0 0.0
      %522 = vmatpush1.msra.mxu0 0.0
      %523 = vmatprep.subr.mxu0 0.0
      %524 = vmatpush1.msra.mxu0 0.0
      %525 = vmatprep.subr.mxu0 0.0
      %526 = vmatpush1.msra.mxu0 0.0
      %527 = vmatprep.subr.mxu0 0.0
      %528 = vmatpush1.msra.mxu0 0.0
      %529 = vmatprep.subr.mxu0 0.0
      %530 = vmatpush1.msra.mxu0 0.0
      %531 = vmatprep.subr.mxu0 0.0
      %532 = vmatpush1.msra.mxu0 0.0
      %533 = vmatprep.subr.mxu0 0.0
      %534 = vmatpush1.msra.mxu0 0.0
      %535 = vmatprep.subr.mxu0 0.0
      %536 = vmatpush1.msra.mxu0 0.0
      %537 = vmatprep.subr.mxu0 0.0
      %538 = vmatpush1.msra.mxu0 0.0
      %539 = vmatprep.subr.mxu0 0.0
      %540 = vmatpush1.msra.mxu0 0.0
      %541 = vmatprep.subr.mxu0 0.0
      %542 = vmatpush1.msra.mxu0 0.0
      %543 = vmatprep.subr.mxu0 0.0
      %544 = vmatpush1.msra.mxu0 0.0
      %545 = vmatprep.subr.mxu0 0.0
      %546 = vmatpush1.msra.mxu0 0.0
      %547 = vmatprep.subr.mxu0 0.0
      %548 = vmatpush1.msra.mxu0 0.0
      %549 = vmatprep.subr.mxu0 0.0
      %550 = vmatpush1.msra.mxu0 0.0
      %551 = vmatprep.subr.mxu0 0.0
      %552 = vmatpush1.msra.mxu0 0.0
      %553 = vmatprep.subr.mxu0 0.0
      %554 = vmatpush1.msra.mxu0 0.0
      %555 = vmatprep.mubr.f32.mxu0 0.0
      %556 = vmatmul.mubr.f32.gmra.mrb[0].mxu0 %v396
      %v557 = vpop.f32.mrb[0].mxu0
      %v558 = vadd.f32 0.0, %v557
      %v559 = vpop.f32.mrb[0].mxu0
      %560 = vmatprep.mubr.f32.mxu0 0.0
      %561 = vmatmul.mubr.f32.gmra.mrb[0].mxu0 %v399
      %v562 = vpop.f32.mrb[0].mxu0
      %v563 = vadd.f32 0.0, %v562
      %v564 = vpop.f32.mrb[0].mxu0
      %565 = vmatprep.mubr.f32.mxu0 0.0
      %566 = vmatmul.mubr.f32.gmra.mrb[0].mxu0 %v402
      %v567 = vpop.f32.mrb[0].mxu0
      %v568 = vadd.f32 0.0, %v567
      %v569 = vpop.f32.mrb[0].mxu0
      %570 = vmatprep.mubr.f32.mxu0 0.0
      %571 = vmatmul.mubr.f32.gmra.mrb[0].mxu0 %v405
      %v572 = vpop.f32.mrb[0].mxu0
      %v573 = vadd.f32 0.0, %v572
      %v574 = vpop.f32.mrb[0].mxu0
      %575 = vmatprep.mubr.f32.mxu0 0.0
      %576 = vmatmul.mubr.f32.gmra.mrb[0].mxu0 %v408
      %v577 = vpop.f32.mrb[0].mxu0
      %v578 = vadd.f32 0.0, %v577
      %v579 = vpop.f32.mrb[0].mxu0
      %580 = vmatprep.mubr.f32.mxu0 0.0
      %581 = vmatmul.mubr.f32.gmra.mrb[0].mxu0 %v411
      %v582 = vpop.f32.mrb[0].mxu0
      %v583 = vadd.f32 0.0, %v582
      %v584 = vpop.f32.mrb[0].mxu0
      %585 = vmatprep.mubr.f32.mxu0 0.0
      %586 = vmatmul.mubr.f32.gmra.mrb[0].mxu0 %v414
      %v587 = vpop.f32.mrb[0].mxu0
      %v588 = vadd.f32 0.0, %v587
      %v589 = vpop.f32.mrb[0].mxu0
      %590 = vmatprep.mubr.f32.mxu0 0.0
      %591 = vmatmul.mubr.f32.gmra.mrb[0].mxu0 %v417
      %v592 = vpop.f32.mrb[0].mxu0
      %v593 = vadd.f32 0.0, %v592
      %v594 = vpop.f32.mrb[0].mxu0
      %595 = vmatprep.mubr.f32.mxu0 0.0
      %596 = vmatmul.mubr.f32.gmra.mrb[0].mxu0 %v420
      %v597 = vpop.f32.mrb[0].mxu0
      %v598 = vadd.f32 0.0, %v597
      %v599 = vpop.f32.mrb[0].mxu0
      %600 = vmatprep.mubr.f32.mxu0 0.0
      %601 = vmatmul.mubr.f32.gmra.mrb[0].mxu0 %v423
      %v602 = vpop.f32.mrb[0].mxu0
      %v603 = vadd.f32 0.0, %v602
      %v604 = vpop.f32.mrb[0].mxu0
      %605 = vmatprep.mubr.f32.mxu0 0.0
      %606 = vmatmul.mubr.f32.gmra.mrb[0].mxu0 %v426
      %v607 = vpop.f32.mrb[0].mxu0
      %v608 = vadd.f32 0.0, %v607
      %v609 = vpop.f32.mrb[0].mxu0
      %610 = vmatprep.mubr.f32.mxu0 0.0
      %611 = vmatmul.mubr.f32.gmra.mrb[0].mxu0 %v429
      %v612 = vpop.f32.mrb[0].mxu0
      %v613 = vadd.f32 0.0, %v612
      %v614 = vpop.f32.mrb[0].mxu0
      %615 = vmatprep.mubr.f32.mxu0 0.0
      %616 = vmatmul.mubr.f32.gmra.mrb[0].mxu0 %v432
      %v617 = vpop.f32.mrb[0].mxu0
      %v618 = vadd.f32 0.0, %v617
      %v619 = vpop.f32.mrb[0].mxu0
      %620 = vmatprep.mubr.f32.mxu0 0.0
      %621 = vmatmul.mubr.f32.gmra.mrb[0].mxu0 %v435
      %v622 = vpop.f32.mrb[0].mxu0
      %v623 = vadd.f32 0.0, %v622
      %v624 = vpop.f32.mrb[0].mxu0
      %625 = vmatprep.mubr.f32.mxu0 0.0
      %626 = vmatmul.mubr.f32.gmra.mrb[0].mxu0 %v438
      %v627 = vpop.f32.mrb[0].mxu0
      %v628 = vadd.f32 0.0, %v627
      %v629 = vpop.f32.mrb[0].mxu0
      %630 = vmatprep.mubr.f32.mxu0 0.0
      %631 = vmatmul.mubr.f32.gmra.mrb[0].mxu0 %v441
      %v632 = vpop.f32.mrb[0].mxu0
      %v633 = vadd.f32 0.0, %v632
      %v634 = vpop.f32.mrb[0].mxu0
      %635 = vmatprep.mubr.f32.mxu0 0.0
      %636 = vmatmul.mubr.f32.gmra.mrb[0].mxu0 %v444
      %v637 = vpop.f32.mrb[0].mxu0
      %v638 = vadd.f32 0.0, %v637
      %v639 = vpop.f32.mrb[0].mxu0
      %640 = vmatprep.mubr.f32.mxu0 0.0
      %641 = vmatmul.mubr.f32.gmra.mrb[0].mxu0 %v447
      %v642 = vpop.f32.mrb[0].mxu0
      %v643 = vadd.f32 0.0, %v642
      %v644 = vpop.f32.mrb[0].mxu0
      %645 = vmatprep.mubr.f32.mxu0 0.0
      %646 = vmatmul.mubr.f32.gmra.mrb[0].mxu0 %v450
      %v647 = vpop.f32.mrb[0].mxu0
      %v648 = vadd.f32 0.0, %v647
      %v649 = vpop.f32.mrb[0].mxu0
      %650 = vmatprep.mubr.f32.mxu0 0.0
      %651 = vmatmul.mubr.f32.gmra.mrb[0].mxu0 %v453
      %v652 = vpop.f32.mrb[0].mxu0
      %v653 = vadd.f32 0.0, %v652
      %v654 = vpop.f32.mrb[0].mxu0
      %655 = vmatprep.mubr.f32.mxu0 0.0
      %656 = vmatmul.mubr.f32.gmra.mrb[0].mxu0 %v456
      %v657 = vpop.f32.mrb[0].mxu0
      %v658 = vadd.f32 0.0, %v657
      %v659 = vpop.f32.mrb[0].mxu0
      %660 = vmatprep.mubr.f32.mxu0 0.0
      %661 = vmatmul.mubr.f32.gmra.mrb[0].mxu0 %v459
      %v662 = vpop.f32.mrb[0].mxu0
      %v663 = vadd.f32 0.0, %v662
      %v664 = vpop.f32.mrb[0].mxu0
      %665 = vmatprep.mubr.f32.mxu0 0.0
      %666 = vmatmul.mubr.f32.gmra.mrb[0].mxu0 %v462
      %v667 = vpop.f32.mrb[0].mxu0
      %v668 = vadd.f32 0.0, %v667
      %v669 = vpop.f32.mrb[0].mxu0
      %670 = vmatprep.mubr.f32.mxu0 0.0
      %671 = vmatmul.mubr.f32.gmra.mrb[0].mxu0 %v465
      %v672 = vpop.f32.mrb[0].mxu0
      %v673 = vadd.f32 0.0, %v672
      %v674 = vpop.f32.mrb[0].mxu0
      %675 = vmatprep.mubr.f32.mxu0 0.0
      %676 = vmatmul.mubr.f32.gmra.mrb[0].mxu0 %v468
      %v677 = vpop.f32.mrb[0].mxu0
      %v678 = vadd.f32 0.0, %v677
      %v679 = vpop.f32.mrb[0].mxu0
      %680 = vmatprep.mubr.f32.mxu0 0.0
      %681 = vmatmul.mubr.f32.gmra.mrb[0].mxu0 %v471
      %v682 = vpop.f32.mrb[0].mxu0
      %v683 = vadd.f32 0.0, %v682
      %v684 = vpop.f32.mrb[0].mxu0
      %685 = vmatprep.mubr.f32.mxu0 0.0
      %686 = vmatmul.mubr.f32.gmra.mrb[0].mxu0 %v474
      %v687 = vpop.f32.mrb[0].mxu0
      %v688 = vadd.f32 0.0, %v687
      %v689 = vpop.f32.mrb[0].mxu0
      %690 = vmatprep.mubr.f32.mxu0 0.0
      %691 = vmatmul.mubr.f32.gmra.mrb[0].mxu0 %v477
      %v692 = vpop.f32.mrb[0].mxu0
      %v693 = vadd.f32 0.0, %v692
      %v694 = vpop.f32.mrb[0].mxu0
      %695 = vmatprep.mubr.f32.mxu0 0.0
      %696 = vmatmul.mubr.f32.gmra.mrb[0].mxu0 %v480
      %v697 = vpop.f32.mrb[0].mxu0
      %v698 = vadd.f32 0.0, %v697
      %v699 = vpop.f32.mrb[0].mxu0
      %700 = vmatprep.mubr.f32.mxu0 0.0
      %701 = vmatmul.mubr.f32.gmra.mrb[0].mxu0 %v483
      %v702 = vpop.f32.mrb[0].mxu0
      %v703 = vadd.f32 0.0, %v702
      %v704 = vpop.f32.mrb[0].mxu0
      %705 = vmatprep.mubr.f32.mxu0 0.0
      %706 = vmatmul.mubr.f32.gmra.mrb[0].mxu0 %v486
      %v707 = vpop.f32.mrb[0].mxu0
      %v708 = vadd.f32 0.0, %v707
      %v709 = vpop.f32.mrb[0].mxu0
      %710 = vmatprep.mubr.f32.mxu0 0.0
      %711 = vmatmul.mubr.f32.gmra.mrb[0].mxu0 %v489
      %v712 = vpop.f32.mrb[0].mxu0
      %v713 = vadd.f32 0.0, %v712
      %v714 = vpop.f32.mrb[0].mxu0
      %715 = vdwg.mxu0
      %v716 = vld [vmem:[%s4] sm:$0x1]
      %v718 = vlaneseq
      %v719 = vshrl.u32 %v718, 7
      %v720 = vsub.s32 0, %v719
      %v721 = vrot.slane %v716, %v720
      %v723 = vmul.f32 %v558, %v721
      %v724 = vmul.f32 %v563, %v721
      %v725 = vmul.f32 %v568, %v721
      %v726 = vmul.f32 %v573, %v721
      %v727 = vmul.f32 %v578, %v721
      %v728 = vmul.f32 %v583, %v721
      %v729 = vmul.f32 %v588, %v721
      %v730 = vmul.f32 %v593, %v721
      %v731 = vmul.f32 %v598, %v721
      %v732 = vmul.f32 %v603, %v721
      %v733 = vmul.f32 %v608, %v721
      %v734 = vmul.f32 %v613, %v721
      %v735 = vmul.f32 %v618, %v721
      %v736 = vmul.f32 %v623, %v721
      %v737 = vmul.f32 %v628, %v721
      %v738 = vmul.f32 %v633, %v721
      %v739 = vmul.f32 %v638, %v721
      %v740 = vmul.f32 %v643, %v721
      %v741 = vmul.f32 %v648, %v721
      %v742 = vmul.f32 %v653, %v721
      %v743 = vmul.f32 %v658, %v721
      %v744 = vmul.f32 %v663, %v721
      %v745 = vmul.f32 %v668, %v721
      %v746 = vmul.f32 %v673, %v721
      %v747 = vmul.f32 %v678, %v721
      %v748 = vmul.f32 %v683, %v721
      %v749 = vmul.f32 %v688, %v721
      %v750 = vmul.f32 %v693, %v721
      %v751 = vmul.f32 %v698, %v721
      %v752 = vmul.f32 %v703, %v721
      %v753 = vmul.f32 %v708, %v721
      %v754 = vmul.f32 %v713, %v721
      %v755 = vld [vmem:[%s5] sm:$0x1]
      %v757 = vlaneseq
      %v758 = vshrl.u32 %v757, 7
      %v759 = vsub.s32 0, %v758
      %v760 = vrot.slane %v755, %v759
      %v762 = vadd.f32 %v723, %v760
      %v763 = vadd.f32 %v724, %v760
      %v764 = vadd.f32 %v725, %v760
      %v765 = vadd.f32 %v726, %v760
      %v766 = vadd.f32 %v727, %v760
      %v767 = vadd.f32 %v728, %v760
      %v768 = vadd.f32 %v729, %v760
      %v769 = vadd.f32 %v730, %v760
      %v770 = vadd.f32 %v731, %v760
      %v771 = vadd.f32 %v732, %v760
      %v772 = vadd.f32 %v733, %v760
      %v773 = vadd.f32 %v734, %v760
      %v774 = vadd.f32 %v735, %v760
      %v775 = vadd.f32 %v736, %v760
      %v776 = vadd.f32 %v737, %v760
      %v777 = vadd.f32 %v738, %v760
      %v778 = vadd.f32 %v739, %v760
      %v779 = vadd.f32 %v740, %v760
      %v780 = vadd.f32 %v741, %v760
      %v781 = vadd.f32 %v742, %v760
      %v782 = vadd.f32 %v743, %v760
      %v783 = vadd.f32 %v744, %v760
      %v784 = vadd.f32 %v745, %v760
      %v785 = vadd.f32 %v746, %v760
      %v786 = vadd.f32 %v747, %v760
      %v787 = vadd.f32 %v748, %v760
      %v788 = vadd.f32 %v749, %v760
      %v789 = vadd.f32 %v750, %v760
      %v790 = vadd.f32 %v751, %v760
      %v791 = vadd.f32 %v752, %v760
      %v792 = vadd.f32 %v753, %v760
      %v793 = vadd.f32 %v754, %v760
      %v794 = vmax.f32 %v762, 0.0
      %v795 = vmax.f32 %v763, 0.0
      %v796 = vmax.f32 %v764, 0.0
      %v797 = vmax.f32 %v765, 0.0
      %v798 = vmax.f32 %v766, 0.0
      %v799 = vmax.f32 %v767, 0.0
      %v800 = vmax.f32 %v768, 0.0
      %v801 = vmax.f32 %v769, 0.0
      %v802 = vmax.f32 %v770, 0.0
      %v803 = vmax.f32 %v771, 0.0
      %v804 = vmax.f32 %v772, 0.0
      %v805 = vmax.f32 %v773, 0.0
      %v806 = vmax.f32 %v774, 0.0
      %v807 = vmax.f32 %v775, 0.0
      %v808 = vmax.f32 %v776, 0.0
      %v809 = vmax.f32 %v777, 0.0
      %v810 = vmax.f32 %v778, 0.0
      %v811 = vmax.f32 %v779, 0.0
      %v812 = vmax.f32 %v780, 0.0
      %v813 = vmax.f32 %v781, 0.0
      %v814 = vmax.f32 %v782, 0.0
      %v815 = vmax.f32 %v783, 0.0
      %v816 = vmax.f32 %v784, 0.0
      %v817 = vmax.f32 %v785, 0.0
      %v818 = vmax.f32 %v786, 0.0
      %v819 = vmax.f32 %v787, 0.0
      %v820 = vmax.f32 %v788, 0.0
      %v821 = vmax.f32 %v789, 0.0
      %v822 = vmax.f32 %v790, 0.0
      %v823 = vmax.f32 %v791, 0.0
      %v824 = vmax.f32 %v792, 0.0
      %v825 = vmax.f32 %v793, 0.0
      %vm826 = vcmask 64512
      %827 = vst.msk [vmem:[#allocation2] sm:$0xff] %vm826, 0.0
      %828 = vst.msk [vmem:[#allocation2 + $0x8] sm:$0xff] %vm826, 0.0
      %829 = vst.msk [vmem:[#allocation2 + $0x10] sm:$0xff] %vm826, 0.0
      %830 = vst.msk [vmem:[#allocation2 + $0x18] sm:$0xff] %vm826, 0.0
      %831 = vst.msk [vmem:[#allocation2 + $0x20] sm:$0xff] %vm826, 0.0
      %832 = vst.msk [vmem:[#allocation2 + $0x28] sm:$0xff] %vm826, 0.0
      %833 = vst.msk [vmem:[#allocation2 + $0x30] sm:$0xff] %vm826, 0.0
      %834 = vst.msk [vmem:[#allocation2 + $0x38] sm:$0xff] %vm826, 0.0
      %835 = vst.msk [vmem:[#allocation2 + $0x40] sm:$0xff] %vm826, 0.0
      %836 = vst.msk [vmem:[#allocation2 + $0x48] sm:$0xff] %vm826, 0.0
      %837 = vst.msk [vmem:[#allocation2 + $0x50] sm:$0xff] %vm826, 0.0
      %838 = vst.msk [vmem:[#allocation2 + $0x58] sm:$0xff] %vm826, 0.0
      %839 = vst.msk [vmem:[#allocation2 + $0x60] sm:$0xff] %vm826, 0.0
      %840 = vst.msk [vmem:[#allocation2 + $0x68] sm:$0xff] %vm826, 0.0
      %841 = vst.msk [vmem:[#allocation2 + $0x70] sm:$0xff] %vm826, 0.0
      %842 = vst.msk [vmem:[#allocation2 + $0x78] sm:$0xff] %vm826, 0.0
      %843 = vst.msk [vmem:[#allocation2 + $0x80] sm:$0xff] %vm826, 0.0
      %844 = vst.msk [vmem:[#allocation2 + $0x88] sm:$0xff] %vm826, 0.0
      %845 = vst.msk [vmem:[#allocation2 + $0x90] sm:$0xff] %vm826, 0.0
      %846 = vst.msk [vmem:[#allocation2 + $0x98] sm:$0xff] %vm826, 0.0
      %847 = vst.msk [vmem:[#allocation2 + $0xa0] sm:$0xff] %vm826, 0.0
      %848 = vst.msk [vmem:[#allocation2 + $0xa8] sm:$0xff] %vm826, 0.0
      %849 = vst.msk [vmem:[#allocation2 + $0xb0] sm:$0xff] %vm826, 0.0
      %850 = vst.msk [vmem:[#allocation2 + $0xb8] sm:$0xff] %vm826, 0.0
      %851 = vst.msk [vmem:[#allocation2 + $0xc0] sm:$0xff] %vm826, 0.0
      %852 = vst.msk [vmem:[#allocation2 + $0xc8] sm:$0xff] %vm826, 0.0
      %853 = vst.msk [vmem:[#allocation2 + $0xd0] sm:$0xff] %vm826, 0.0
      %854 = vst.msk [vmem:[#allocation2 + $0xd8] sm:$0xff] %vm826, 0.0
      %855 = vst.msk [vmem:[#allocation2 + $0xe0] sm:$0xff] %vm826, 0.0
      %856 = vst.msk [vmem:[#allocation2 + $0xe8] sm:$0xff] %vm826, 0.0
      %857 = vst.msk [vmem:[#allocation2 + $0xf0] sm:$0xff] %vm826, 0.0
      %858 = vst.msk [vmem:[#allocation2 + $0xf8] sm:$0xff] %vm826, 0.0
      %859 = vst.msk [vmem:[#allocation2 + $0x100] sm:$0xff] %vm826, 0.0
      %860 = vst.msk [vmem:[#allocation2 + $0x108] sm:$0xff] %vm826, 0.0
      %861 = vst.msk [vmem:[#allocation2 + $0x110] sm:$0xff] %vm826, 0.0
      %862 = vst.msk [vmem:[#allocation2 + $0x118] sm:$0xff] %vm826, 0.0
      %863 = vst.msk [vmem:[#allocation2 + $0x120] sm:$0xff] %vm826, 0.0
      %vm864 = vcmask 57344
      %865 = vst.msk [vmem:[#allocation2 + $0x128] sm:$0x1] %vm864, 0.0
      %866 = vst.msk [vmem:[#allocation2 + $0x18] sm:$0xff] %vm826, %v794
      %867 = vst.msk [vmem:[#allocation2 + $0x20] sm:$0xff] %vm826, %v795
      %868 = vst.msk [vmem:[#allocation2 + $0x28] sm:$0xff] %vm826, %v796
      %869 = vst.msk [vmem:[#allocation2 + $0x30] sm:$0xff] %vm826, %v797
      %870 = vst.msk [vmem:[#allocation2 + $0x38] sm:$0xff] %vm826, %v798
      %871 = vst.msk [vmem:[#allocation2 + $0x40] sm:$0xff] %vm826, %v799
      %872 = vst.msk [vmem:[#allocation2 + $0x48] sm:$0xff] %vm826, %v800
      %873 = vst.msk [vmem:[#allocation2 + $0x50] sm:$0xff] %vm826, %v801
      %874 = vst.msk [vmem:[#allocation2 + $0x58] sm:$0xff] %vm826, %v802
      %875 = vst.msk [vmem:[#allocation2 + $0x60] sm:$0xff] %vm826, %v803
      %876 = vst.msk [vmem:[#allocation2 + $0x68] sm:$0xff] %vm826, %v804
      %877 = vst.msk [vmem:[#allocation2 + $0x70] sm:$0xff] %vm826, %v805
      %878 = vst.msk [vmem:[#allocation2 + $0x78] sm:$0xff] %vm826, %v806
      %879 = vst.msk [vmem:[#allocation2 + $0x80] sm:$0xff] %vm826, %v807
      %880 = vst.msk [vmem:[#allocation2 + $0x88] sm:$0xff] %vm826, %v808
      %881 = vst.msk [vmem:[#allocation2 + $0x90] sm:$0xff] %vm826, %v809
      %882 = vst.msk [vmem:[#allocation2 + $0x98] sm:$0xff] %vm826, %v810
      %883 = vst.msk [vmem:[#allocation2 + $0xa0] sm:$0xff] %vm826, %v811
      %884 = vst.msk [vmem:[#allocation2 + $0xa8] sm:$0xff] %vm826, %v812
      %885 = vst.msk [vmem:[#allocation2 + $0xb0] sm:$0xff] %vm826, %v813
      %886 = vst.msk [vmem:[#allocation2 + $0xb8] sm:$0xff] %vm826, %v814
      %887 = vst.msk [vmem:[#allocation2 + $0xc0] sm:$0xff] %vm826, %v815
      %888 = vst.msk [vmem:[#allocation2 + $0xc8] sm:$0xff] %vm826, %v816
      %889 = vst.msk [vmem:[#allocation2 + $0xd0] sm:$0xff] %vm826, %v817
      %890 = vst.msk [vmem:[#allocation2 + $0xd8] sm:$0xff] %vm826, %v818
      %891 = vst.msk [vmem:[#allocation2 + $0xe0] sm:$0xff] %vm826, %v819
      %892 = vst.msk [vmem:[#allocation2 + $0xe8] sm:$0xff] %vm826, %v820
      %893 = vst.msk [vmem:[#allocation2 + $0xf0] sm:$0xff] %vm826, %v821
      %894 = vst.msk [vmem:[#allocation2 + $0xf8] sm:$0xff] %vm826, %v822
      %895 = vst.msk [vmem:[#allocation2 + $0x100] sm:$0xff] %vm826, %v823
      %896 = vst.msk [vmem:[#allocation2 + $0x108] sm:$0xff] %vm826, %v824
      %897 = vst.msk [vmem:[#allocation2 + $0x110] sm:$0xff] %vm826, %v825
      %v898 = vlaneseq
      %v899 = vshrl.u32 %v898, 7
      %v900 = vadd.s32 %v899, 8
      %v901 = vadd.s32 %v899, 16
      %v902 = vadd.s32 %v899, 24
      %v903 = vadd.s32 %v899, 32
      %v904 = vadd.s32 %v899, 40
      %v905 = vadd.s32 %v899, 48
      %v906 = vadd.s32 %v899, 56
      %v907 = vadd.s32 %v899, 64
      %v908 = vadd.s32 %v899, 72
      %v909 = vadd.s32 %v899, 80
      %v910 = vadd.s32 %v899, 88
      %v911 = vadd.s32 %v899, 96
      %v912 = vadd.s32 %v899, 104
      %v913 = vadd.s32 %v899, 112
      %v914 = vadd.s32 %v899, 120
      %v915 = vadd.s32 %v899, 128
      %v916 = vadd.s32 %v899, 136
      %v917 = vadd.s32 %v899, 144
      %v918 = vadd.s32 %v899, 152
      %v919 = vadd.s32 %v899, 160
      %v920 = vadd.s32 %v899, 168
      %v921 = vadd.s32 %v899, 176
      %v922 = vadd.s32 %v899, 184
      %v923 = vadd.s32 %v899, 192
      %v924 = vadd.s32 %v899, 200
      %v925 = vadd.s32 %v899, 208
      %v926 = vadd.s32 %v899, 216
      %v927 = vadd.s32 %v899, 224
      %v928 = vadd.s32 %v899, 232
      %v929 = vadd.s32 %v899, 240
      %v930 = vadd.s32 %v899, 248
      %vm931 = vcmp.lt.s32.totalorder %v899, 0
      %v932 = vsub.s32 0, %v899
      %v933 = vsel %vm931, %v932, %v899
      %v934 = vshrl.u32 %v933, 4
      %v935 = vand.u32 %v933, 15
      %v936 = vsub.s32 0, %v935
      %v937 = vsel %vm931, %v936, %v935
      %vm938 = vcmp.lt.s32.totalorder %v900, 0
      %v939 = vsub.s32 0, %v900
      %v940 = vsel %vm938, %v939, %v900
      %v941 = vshrl.u32 %v940, 4
      %v942 = vand.u32 %v940, 15
      %v943 = vsub.s32 0, %v942
      %v944 = vsel %vm938, %v943, %v942
      %vm945 = vcmp.lt.s32.totalorder %v901, 0
      %v946 = vsub.s32 0, %v901
      %v947 = vsel %vm945, %v946, %v901
      %v948 = vshrl.u32 %v947, 4
      %v949 = vand.u32 %v947, 15
      %v950 = vsub.s32 0, %v949
      %v951 = vsel %vm945, %v950, %v949
      %vm952 = vcmp.lt.s32.totalorder %v902, 0
      %v953 = vsub.s32 0, %v902
      %v954 = vsel %vm952, %v953, %v902
      %v955 = vshrl.u32 %v954, 4
      %v956 = vand.u32 %v954, 15
      %v957 = vsub.s32 0, %v956
      %v958 = vsel %vm952, %v957, %v956
      %vm959 = vcmp.lt.s32.totalorder %v903, 0
      %v960 = vsub.s32 0, %v903
      %v961 = vsel %vm959, %v960, %v903
      %v962 = vshrl.u32 %v961, 4
      %v963 = vand.u32 %v961, 15
      %v964 = vsub.s32 0, %v963
      %v965 = vsel %vm959, %v964, %v963
      %vm966 = vcmp.lt.s32.totalorder %v904, 0
      %v967 = vsub.s32 0, %v904
      %v968 = vsel %vm966, %v967, %v904
      %v969 = vshrl.u32 %v968, 4
      %v970 = vand.u32 %v968, 15
      %v971 = vsub.s32 0, %v970
      %v972 = vsel %vm966, %v971, %v970
      %vm973 = vcmp.lt.s32.totalorder %v905, 0
      %v974 = vsub.s32 0, %v905
      %v975 = vsel %vm973, %v974, %v905
      %v976 = vshrl.u32 %v975, 4
      %v977 = vand.u32 %v975, 15
      %v978 = vsub.s32 0, %v977
      %v979 = vsel %vm973, %v978, %v977
      %vm980 = vcmp.lt.s32.totalorder %v906, 0
      %v981 = vsub.s32 0, %v906
      %v982 = vsel %vm980, %v981, %v906
      %v983 = vshrl.u32 %v982, 4
      %v984 = vand.u32 %v982, 15
      %v985 = vsub.s32 0, %v984
      %v986 = vsel %vm980, %v985, %v984
      %vm987 = vcmp.lt.s32.totalorder %v907, 0
      %v988 = vsub.s32 0, %v907
      %v989 = vsel %vm987, %v988, %v907
      %v990 = vshrl.u32 %v989, 4
      %v991 = vand.u32 %v989, 15
      %v992 = vsub.s32 0, %v991
      %v993 = vsel %vm987, %v992, %v991
      %vm994 = vcmp.lt.s32.totalorder %v908, 0
      %v995 = vsub.s32 0, %v908
      %v996 = vsel %vm994, %v995, %v908
      %v997 = vshrl.u32 %v996, 4
      %v998 = vand.u32 %v996, 15
      %v999 = vsub.s32 0, %v998
      %v1000 = vsel %vm994, %v999, %v998
      %vm1001 = vcmp.lt.s32.totalorder %v909, 0
      %v1002 = vsub.s32 0, %v909
      %v1003 = vsel %vm1001, %v1002, %v909
      %v1004 = vshrl.u32 %v1003, 4
      %v1005 = vand.u32 %v1003, 15
      %v1006 = vsub.s32 0, %v1005
      %v1007 = vsel %vm1001, %v1006, %v1005
      %vm1008 = vcmp.lt.s32.totalorder %v910, 0
      %v1009 = vsub.s32 0, %v910
      %v1010 = vsel %vm1008, %v1009, %v910
      %v1011 = vshrl.u32 %v1010, 4
      %v1012 = vand.u32 %v1010, 15
      %v1013 = vsub.s32 0, %v1012
      %v1014 = vsel %vm1008, %v1013, %v1012
      %vm1015 = vcmp.lt.s32.totalorder %v911, 0
      %v1016 = vsub.s32 0, %v911
      %v1017 = vsel %vm1015, %v1016, %v911
      %v1018 = vshrl.u32 %v1017, 4
      %v1019 = vand.u32 %v1017, 15
      %v1020 = vsub.s32 0, %v1019
      %v1021 = vsel %vm1015, %v1020, %v1019
      %vm1022 = vcmp.lt.s32.totalorder %v912, 0
      %v1023 = vsub.s32 0, %v912
      %v1024 = vsel %vm1022, %v1023, %v912
      %v1025 = vshrl.u32 %v1024, 4
      %v1026 = vand.u32 %v1024, 15
      %v1027 = vsub.s32 0, %v1026
      %v1028 = vsel %vm1022, %v1027, %v1026
      %vm1029 = vcmp.lt.s32.totalorder %v913, 0
      %v1030 = vsub.s32 0, %v913
      %v1031 = vsel %vm1029, %v1030, %v913
      %v1032 = vshrl.u32 %v1031, 4
      %v1033 = vand.u32 %v1031, 15
      %v1034 = vsub.s32 0, %v1033
      %v1035 = vsel %vm1029, %v1034, %v1033
      %vm1036 = vcmp.lt.s32.totalorder %v914, 0
      %v1037 = vsub.s32 0, %v914
      %v1038 = vsel %vm1036, %v1037, %v914
      %v1039 = vshrl.u32 %v1038, 4
      %v1040 = vand.u32 %v1038, 15
      %v1041 = vsub.s32 0, %v1040
      %v1042 = vsel %vm1036, %v1041, %v1040
      %vm1043 = vcmp.lt.s32.totalorder %v915, 0
      %v1044 = vsub.s32 0, %v915
      %v1045 = vsel %vm1043, %v1044, %v915
      %v1046 = vshrl.u32 %v1045, 4
      %v1047 = vand.u32 %v1045, 15
      %v1048 = vsub.s32 0, %v1047
      %v1049 = vsel %vm1043, %v1048, %v1047
      %vm1050 = vcmp.lt.s32.totalorder %v916, 0
      %v1051 = vsub.s32 0, %v916
      %v1052 = vsel %vm1050, %v1051, %v916
      %v1053 = vshrl.u32 %v1052, 4
      %v1054 = vand.u32 %v1052, 15
      %v1055 = vsub.s32 0, %v1054
      %v1056 = vsel %vm1050, %v1055, %v1054
      %vm1057 = vcmp.lt.s32.totalorder %v917, 0
      %v1058 = vsub.s32 0, %v917
      %v1059 = vsel %vm1057, %v1058, %v917
      %v1060 = vshrl.u32 %v1059, 4
      %v1061 = vand.u32 %v1059, 15
      %v1062 = vsub.s32 0, %v1061
      %v1063 = vsel %vm1057, %v1062, %v1061
      %vm1064 = vcmp.lt.s32.totalorder %v918, 0
      %v1065 = vsub.s32 0, %v918
      %v1066 = vsel %vm1064, %v1065, %v918
      %v1067 = vshrl.u32 %v1066, 4
      %v1068 = vand.u32 %v1066, 15
      %v1069 = vsub.s32 0, %v1068
      %v1070 = vsel %vm1064, %v1069, %v1068
      %vm1071 = vcmp.lt.s32.totalorder %v919, 0
      %v1072 = vsub.s32 0, %v919
      %v1073 = vsel %vm1071, %v1072, %v919
      %v1074 = vshrl.u32 %v1073, 4
      %v1075 = vand.u32 %v1073, 15
      %v1076 = vsub.s32 0, %v1075
      %v1077 = vsel %vm1071, %v1076, %v1075
      %vm1078 = vcmp.lt.s32.totalorder %v920, 0
      %v1079 = vsub.s32 0, %v920
      %v1080 = vsel %vm1078, %v1079, %v920
      %v1081 = vshrl.u32 %v1080, 4
      %v1082 = vand.u32 %v1080, 15
      %v1083 = vsub.s32 0, %v1082
      %v1084 = vsel %vm1078, %v1083, %v1082
      %vm1085 = vcmp.lt.s32.totalorder %v921, 0
      %v1086 = vsub.s32 0, %v921
      %v1087 = vsel %vm1085, %v1086, %v921
      %v1088 = vshrl.u32 %v1087, 4
      %v1089 = vand.u32 %v1087, 15
      %v1090 = vsub.s32 0, %v1089
      %v1091 = vsel %vm1085, %v1090, %v1089
      %vm1092 = vcmp.lt.s32.totalorder %v922, 0
      %v1093 = vsub.s32 0, %v922
      %v1094 = vsel %vm1092, %v1093, %v922
      %v1095 = vshrl.u32 %v1094, 4
      %v1096 = vand.u32 %v1094, 15
      %v1097 = vsub.s32 0, %v1096
      %v1098 = vsel %vm1092, %v1097, %v1096
      %vm1099 = vcmp.lt.s32.totalorder %v923, 0
      %v1100 = vsub.s32 0, %v923
      %v1101 = vsel %vm1099, %v1100, %v923
      %v1102 = vshrl.u32 %v1101, 4
      %v1103 = vand.u32 %v1101, 15
      %v1104 = vsub.s32 0, %v1103
      %v1105 = vsel %vm1099, %v1104, %v1103
      %vm1106 = vcmp.lt.s32.totalorder %v924, 0
      %v1107 = vsub.s32 0, %v924
      %v1108 = vsel %vm1106, %v1107, %v924
      %v1109 = vshrl.u32 %v1108, 4
      %v1110 = vand.u32 %v1108, 15
      %v1111 = vsub.s32 0, %v1110
      %v1112 = vsel %vm1106, %v1111, %v1110
      %vm1113 = vcmp.lt.s32.totalorder %v925, 0
      %v1114 = vsub.s32 0, %v925
      %v1115 = vsel %vm1113, %v1114, %v925
      %v1116 = vshrl.u32 %v1115, 4
      %v1117 = vand.u32 %v1115, 15
      %v1118 = vsub.s32 0, %v1117
      %v1119 = vsel %vm1113, %v1118, %v1117
      %vm1120 = vcmp.lt.s32.totalorder %v926, 0
      %v1121 = vsub.s32 0, %v926
      %v1122 = vsel %vm1120, %v1121, %v926
      %v1123 = vshrl.u32 %v1122, 4
      %v1124 = vand.u32 %v1122, 15
      %v1125 = vsub.s32 0, %v1124
      %v1126 = vsel %vm1120, %v1125, %v1124
      %vm1127 = vcmp.lt.s32.totalorder %v927, 0
      %v1128 = vsub.s32 0, %v927
      %v1129 = vsel %vm1127, %v1128, %v927
      %v1130 = vshrl.u32 %v1129, 4
      %v1131 = vand.u32 %v1129, 15
      %v1132 = vsub.s32 0, %v1131
      %v1133 = vsel %vm1127, %v1132, %v1131
      %vm1134 = vcmp.lt.s32.totalorder %v928, 0
      %v1135 = vsub.s32 0, %v928
      %v1136 = vsel %vm1134, %v1135, %v928
      %v1137 = vshrl.u32 %v1136, 4
      %v1138 = vand.u32 %v1136, 15
      %v1139 = vsub.s32 0, %v1138
      %v1140 = vsel %vm1134, %v1139, %v1138
      %vm1141 = vcmp.lt.s32.totalorder %v929, 0
      %v1142 = vsub.s32 0, %v929
      %v1143 = vsel %vm1141, %v1142, %v929
      %v1144 = vshrl.u32 %v1143, 4
      %v1145 = vand.u32 %v1143, 15
      %v1146 = vsub.s32 0, %v1145
      %v1147 = vsel %vm1141, %v1146, %v1145
      %vm1148 = vcmp.lt.s32.totalorder %v930, 0
      %v1149 = vsub.s32 0, %v930
      %v1150 = vsel %vm1148, %v1149, %v930
      %v1151 = vshrl.u32 %v1150, 4
      %v1152 = vand.u32 %v1150, 15
      %v1153 = vsub.s32 0, %v1152
      %v1154 = vsel %vm1148, %v1153, %v1152
      %vm1155 = vcmp.ne.s32.totalorder %v937, 0
      %vm1156 = vcmp.ne.s32.totalorder %v944, 0
      %vm1157 = vcmp.ne.s32.totalorder %v951, 0
      %vm1158 = vcmp.ne.s32.totalorder %v958, 0
      %vm1159 = vcmp.ne.s32.totalorder %v965, 0
      %vm1160 = vcmp.ne.s32.totalorder %v972, 0
      %vm1161 = vcmp.ne.s32.totalorder %v979, 0
      %vm1162 = vcmp.ne.s32.totalorder %v986, 0
      %vm1163 = vcmp.ne.s32.totalorder %v993, 0
      %vm1164 = vcmp.ne.s32.totalorder %v1000, 0
      %vm1165 = vcmp.ne.s32.totalorder %v1007, 0
      %vm1166 = vcmp.ne.s32.totalorder %v1014, 0
      %vm1167 = vcmp.ne.s32.totalorder %v1021, 0
      %vm1168 = vcmp.ne.s32.totalorder %v1028, 0
      %vm1169 = vcmp.ne.s32.totalorder %v1035, 0
      %vm1170 = vcmp.ne.s32.totalorder %v1042, 0
      %vm1171 = vcmp.ne.s32.totalorder %v1049, 0
      %vm1172 = vcmp.ne.s32.totalorder %v1056, 0
      %vm1173 = vcmp.ne.s32.totalorder %v1063, 0
      %vm1174 = vcmp.ne.s32.totalorder %v1070, 0
      %vm1175 = vcmp.ne.s32.totalorder %v1077, 0
      %vm1176 = vcmp.ne.s32.totalorder %v1084, 0
      %vm1177 = vcmp.ne.s32.totalorder %v1091, 0
      %vm1178 = vcmp.ne.s32.totalorder %v1098, 0
      %vm1179 = vcmp.ne.s32.totalorder %v1105, 0
      %vm1180 = vcmp.ne.s32.totalorder %v1112, 0
      %vm1181 = vcmp.ne.s32.totalorder %v1119, 0
      %vm1182 = vcmp.ne.s32.totalorder %v1126, 0
      %vm1183 = vcmp.ne.s32.totalorder %v1133, 0
      %vm1184 = vcmp.ne.s32.totalorder %v1140, 0
      %vm1185 = vcmp.ne.s32.totalorder %v1147, 0
      %vm1186 = vcmp.ne.s32.totalorder %v1154, 0
      %vm1187 = vcmp.lt.s32.totalorder %v937, 0
      %vm1188 = vcmp.lt.s32.totalorder %v944, 0
      %vm1189 = vcmp.lt.s32.totalorder %v951, 0
      %vm1190 = vcmp.lt.s32.totalorder %v958, 0
      %vm1191 = vcmp.lt.s32.totalorder %v965, 0
      %vm1192 = vcmp.lt.s32.totalorder %v972, 0
      %vm1193 = vcmp.lt.s32.totalorder %v979, 0
      %vm1194 = vcmp.lt.s32.totalorder %v986, 0
      %vm1195 = vcmp.lt.s32.totalorder %v993, 0
      %vm1196 = vcmp.lt.s32.totalorder %v1000, 0
      %vm1197 = vcmp.lt.s32.totalorder %v1007, 0
      %vm1198 = vcmp.lt.s32.totalorder %v1014, 0
      %vm1199 = vcmp.lt.s32.totalorder %v1021, 0
      %vm1200 = vcmp.lt.s32.totalorder %v1028, 0
      %vm1201 = vcmp.lt.s32.totalorder %v1035, 0
      %vm1202 = vcmp.lt.s32.totalorder %v1042, 0
      %vm1203 = vcmp.lt.s32.totalorder %v1049, 0
      %vm1204 = vcmp.lt.s32.totalorder %v1056, 0
      %vm1205 = vcmp.lt.s32.totalorder %v1063, 0
      %vm1206 = vcmp.lt.s32.totalorder %v1070, 0
      %vm1207 = vcmp.lt.s32.totalorder %v1077, 0
      %vm1208 = vcmp.lt.s32.totalorder %v1084, 0
      %vm1209 = vcmp.lt.s32.totalorder %v1091, 0
      %vm1210 = vcmp.lt.s32.totalorder %v1098, 0
      %vm1211 = vcmp.lt.s32.totalorder %v1105, 0
      %vm1212 = vcmp.lt.s32.totalorder %v1112, 0
      %vm1213 = vcmp.lt.s32.totalorder %v1119, 0
      %vm1214 = vcmp.lt.s32.totalorder %v1126, 0
      %vm1215 = vcmp.lt.s32.totalorder %v1133, 0
      %vm1216 = vcmp.lt.s32.totalorder %v1140, 0
      %vm1217 = vcmp.lt.s32.totalorder %v1147, 0
      %vm1218 = vcmp.lt.s32.totalorder %v1154, 0
      %vm1219 = vmand %vm1187, %vm1155
      %vm1220 = vmand %vm1188, %vm1156
      %vm1221 = vmand %vm1189, %vm1157
      %vm1222 = vmand %vm1190, %vm1158
      %vm1223 = vmand %vm1191, %vm1159
      %vm1224 = vmand %vm1192, %vm1160
      %vm1225 = vmand %vm1193, %vm1161
      %vm1226 = vmand %vm1194, %vm1162
      %vm1227 = vmand %vm1195, %vm1163
      %vm1228 = vmand %vm1196, %vm1164
      %vm1229 = vmand %vm1197, %vm1165
      %vm1230 = vmand %vm1198, %vm1166
      %vm1231 = vmand %vm1199, %vm1167
      %vm1232 = vmand %vm1200, %vm1168
      %vm1233 = vmand %vm1201, %vm1169
      %vm1234 = vmand %vm1202, %vm1170
      %vm1235 = vmand %vm1203, %vm1171
      %vm1236 = vmand %vm1204, %vm1172
      %vm1237 = vmand %vm1205, %vm1173
      %vm1238 = vmand %vm1206, %vm1174
      %vm1239 = vmand %vm1207, %vm1175
      %vm1240 = vmand %vm1208, %vm1176
      %vm1241 = vmand %vm1209, %vm1177
      %vm1242 = vmand %vm1210, %vm1178
      %vm1243 = vmand %vm1211, %vm1179
      %vm1244 = vmand %vm1212, %vm1180
      %vm1245 = vmand %vm1213, %vm1181
      %vm1246 = vmand %vm1214, %vm1182
      %vm1247 = vmand %vm1215, %vm1183
      %vm1248 = vmand %vm1216, %vm1184
      %vm1249 = vmand %vm1217, %vm1185
      %vm1250 = vmand %vm1218, %vm1186
      %v1251 = vadd.s32 %v937, 16
      %v1252 = vadd.s32 %v944, 16
      %v1253 = vadd.s32 %v951, 16
      %v1254 = vadd.s32 %v958, 16
      %v1255 = vadd.s32 %v965, 16
      %v1256 = vadd.s32 %v972, 16
      %v1257 = vadd.s32 %v979, 16
      %v1258 = vadd.s32 %v986, 16
      %v1259 = vadd.s32 %v993, 16
      %v1260 = vadd.s32 %v1000, 16
      %v1261 = vadd.s32 %v1007, 16
      %v1262 = vadd.s32 %v1014, 16
      %v1263 = vadd.s32 %v1021, 16
      %v1264 = vadd.s32 %v1028, 16
      %v1265 = vadd.s32 %v1035, 16
      %v1266 = vadd.s32 %v1042, 16
      %v1267 = vadd.s32 %v1049, 16
      %v1268 = vadd.s32 %v1056, 16
      %v1269 = vadd.s32 %v1063, 16
      %v1270 = vadd.s32 %v1070, 16
      %v1271 = vadd.s32 %v1077, 16
      %v1272 = vadd.s32 %v1084, 16
      %v1273 = vadd.s32 %v1091, 16
      %v1274 = vadd.s32 %v1098, 16
      %v1275 = vadd.s32 %v1105, 16
      %v1276 = vadd.s32 %v1112, 16
      %v1277 = vadd.s32 %v1119, 16
      %v1278 = vadd.s32 %v1126, 16
      %v1279 = vadd.s32 %v1133, 16
      %v1280 = vadd.s32 %v1140, 16
      %v1281 = vadd.s32 %v1147, 16
      %v1282 = vadd.s32 %v1154, 16
      %v1283 = vsel %vm1219, %v1251, %v937
      %v1284 = vsel %vm1220, %v1252, %v944
      %v1285 = vsel %vm1221, %v1253, %v951
      %v1286 = vsel %vm1222, %v1254, %v958
      %v1287 = vsel %vm1223, %v1255, %v965
      %v1288 = vsel %vm1224, %v1256, %v972
      %v1289 = vsel %vm1225, %v1257, %v979
      %v1290 = vsel %vm1226, %v1258, %v986
      %v1291 = vsel %vm1227, %v1259, %v993
      %v1292 = vsel %vm1228, %v1260, %v1000
      %v1293 = vsel %vm1229, %v1261, %v1007
      %v1294 = vsel %vm1230, %v1262, %v1014
      %v1295 = vsel %vm1231, %v1263, %v1021
      %v1296 = vsel %vm1232, %v1264, %v1028
      %v1297 = vsel %vm1233, %v1265, %v1035
      %v1298 = vsel %vm1234, %v1266, %v1042
      %v1299 = vsel %vm1235, %v1267, %v1049
      %v1300 = vsel %vm1236, %v1268, %v1056
      %v1301 = vsel %vm1237, %v1269, %v1063
      %v1302 = vsel %vm1238, %v1270, %v1070
      %v1303 = vsel %vm1239, %v1271, %v1077
      %v1304 = vsel %vm1240, %v1272, %v1084
      %v1305 = vsel %vm1241, %v1273, %v1091
      %v1306 = vsel %vm1242, %v1274, %v1098
      %v1307 = vsel %vm1243, %v1275, %v1105
      %v1308 = vsel %vm1244, %v1276, %v1112
      %v1309 = vsel %vm1245, %v1277, %v1119
      %v1310 = vsel %vm1246, %v1278, %v1126
      %v1311 = vsel %vm1247, %v1279, %v1133
      %v1312 = vsel %vm1248, %v1280, %v1140
      %v1313 = vsel %vm1249, %v1281, %v1147
      %v1314 = vsel %vm1250, %v1282, %v1154
      %v1315 = vld [vmem:[#allocation2 + $0x7] sm:$0xff]
      %v1316 = vld [vmem:[#allocation2 + $0xf] sm:$0xff]
      %v1317 = vld [vmem:[#allocation2 + $0x17] sm:$0xff]
      %v1318 = vld [vmem:[#allocation2 + $0x1f] sm:$0xff]
      %v1319 = vld [vmem:[#allocation2 + $0x27] sm:$0xff]
      %v1320 = vld [vmem:[#allocation2 + $0x2f] sm:$0xff]
      %v1321 = vld [vmem:[#allocation2 + $0x37] sm:$0xff]
      %v1322 = vld [vmem:[#allocation2 + $0x3f] sm:$0xff]
      %v1323 = vld [vmem:[#allocation2 + $0x47] sm:$0xff]
      %v1324 = vld [vmem:[#allocation2 + $0x4f] sm:$0xff]
      %v1325 = vld [vmem:[#allocation2 + $0x57] sm:$0xff]
      %v1326 = vld [vmem:[#allocation2 + $0x5f] sm:$0xff]
      %v1327 = vld [vmem:[#allocation2 + $0x67] sm:$0xff]
      %v1328 = vld [vmem:[#allocation2 + $0x6f] sm:$0xff]
      %v1329 = vld [vmem:[#allocation2 + $0x77] sm:$0xff]
      %v1330 = vld [vmem:[#allocation2 + $0x7f] sm:$0xff]
      %v1331 = vld [vmem:[#allocation2 + $0x87] sm:$0xff]
      %v1332 = vld [vmem:[#allocation2 + $0x8f] sm:$0xff]
      %v1333 = vld [vmem:[#allocation2 + $0x97] sm:$0xff]
      %v1334 = vld [vmem:[#allocation2 + $0x9f] sm:$0xff]
      %v1335 = vld [vmem:[#allocation2 + $0xa7] sm:$0xff]
      %v1336 = vld [vmem:[#allocation2 + $0xaf] sm:$0xff]
      %v1337 = vld [vmem:[#allocation2 + $0xb7] sm:$0xff]
      %v1338 = vld [vmem:[#allocation2 + $0xbf] sm:$0xff]
      %v1339 = vld [vmem:[#allocation2 + $0xc7] sm:$0xff]
      %v1340 = vld [vmem:[#allocation2 + $0xcf] sm:$0xff]
      %v1341 = vld [vmem:[#allocation2 + $0xd7] sm:$0xff]
      %v1342 = vld [vmem:[#allocation2 + $0xdf] sm:$0xff]
      %v1343 = vld [vmem:[#allocation2 + $0xe7] sm:$0xff]
      %v1344 = vld [vmem:[#allocation2 + $0xef] sm:$0xff]
      %v1345 = vld [vmem:[#allocation2 + $0xf7] sm:$0xff]
      %v1346 = vld [vmem:[#allocation2 + $0xff] sm:$0xff]
      %vm1347 = vcmp.eq.s32.totalorder %v1283, 0
      %vm1348 = vcmp.eq.s32.totalorder %v1284, 0
      %vm1349 = vcmp.eq.s32.totalorder %v1285, 0
      %vm1350 = vcmp.eq.s32.totalorder %v1286, 0
      %vm1351 = vcmp.eq.s32.totalorder %v1287, 0
      %vm1352 = vcmp.eq.s32.totalorder %v1288, 0
      %vm1353 = vcmp.eq.s32.totalorder %v1289, 0
      %vm1354 = vcmp.eq.s32.totalorder %v1290, 0
      %vm1355 = vcmp.eq.s32.totalorder %v1291, 0
      %vm1356 = vcmp.eq.s32.totalorder %v1292, 0
      %vm1357 = vcmp.eq.s32.totalorder %v1293, 0
      %vm1358 = vcmp.eq.s32.totalorder %v1294, 0
      %vm1359 = vcmp.eq.s32.totalorder %v1295, 0
      %vm1360 = vcmp.eq.s32.totalorder %v1296, 0
      %vm1361 = vcmp.eq.s32.totalorder %v1297, 0
      %vm1362 = vcmp.eq.s32.totalorder %v1298, 0
      %vm1363 = vcmp.eq.s32.totalorder %v1299, 0
      %vm1364 = vcmp.eq.s32.totalorder %v1300, 0
      %vm1365 = vcmp.eq.s32.totalorder %v1301, 0
      %vm1366 = vcmp.eq.s32.totalorder %v1302, 0
      %vm1367 = vcmp.eq.s32.totalorder %v1303, 0
      %vm1368 = vcmp.eq.s32.totalorder %v1304, 0
      %vm1369 = vcmp.eq.s32.totalorder %v1305, 0
      %vm1370 = vcmp.eq.s32.totalorder %v1306, 0
      %vm1371 = vcmp.eq.s32.totalorder %v1307, 0
      %vm1372 = vcmp.eq.s32.totalorder %v1308, 0
      %vm1373 = vcmp.eq.s32.totalorder %v1309, 0
      %vm1374 = vcmp.eq.s32.totalorder %v1310, 0
      %vm1375 = vcmp.eq.s32.totalorder %v1311, 0
      %vm1376 = vcmp.eq.s32.totalorder %v1312, 0
      %vm1377 = vcmp.eq.s32.totalorder %v1313, 0
      %vm1378 = vcmp.eq.s32.totalorder %v1314, 0
      %v1379 = vsel %vm1347, 1, 0
      %v1380 = vsel %vm1348, 1, 0
      %v1381 = vsel %vm1349, 1, 0
      %v1382 = vsel %vm1350, 1, 0
      %v1383 = vsel %vm1351, 1, 0
      %v1384 = vsel %vm1352, 1, 0
      %v1385 = vsel %vm1353, 1, 0
      %v1386 = vsel %vm1354, 1, 0
      %v1387 = vsel %vm1355, 1, 0
      %v1388 = vsel %vm1356, 1, 0
      %v1389 = vsel %vm1357, 1, 0
      %v1390 = vsel %vm1358, 1, 0
      %v1391 = vsel %vm1359, 1, 0
      %v1392 = vsel %vm1360, 1, 0
      %v1393 = vsel %vm1361, 1, 0
      %v1394 = vsel %vm1362, 1, 0
      %v1395 = vsel %vm1363, 1, 0
      %v1396 = vsel %vm1364, 1, 0
      %v1397 = vsel %vm1365, 1, 0
      %v1398 = vsel %vm1366, 1, 0
      %v1399 = vsel %vm1367, 1, 0
      %v1400 = vsel %vm1368, 1, 0
      %v1401 = vsel %vm1369, 1, 0
      %v1402 = vsel %vm1370, 1, 0
      %v1403 = vsel %vm1371, 1, 0
      %v1404 = vsel %vm1372, 1, 0
      %v1405 = vsel %vm1373, 1, 0
      %v1406 = vsel %vm1374, 1, 0
      %v1407 = vsel %vm1375, 1, 0
      %v1408 = vsel %vm1376, 1, 0
      %v1409 = vsel %vm1377, 1, 0
      %v1410 = vsel %vm1378, 1, 0
      %vm1411 = vcmp.eq.s32.totalorder %v1379, 1
      %vm1412 = vcmp.eq.s32.totalorder %v1380, 1
      %vm1413 = vcmp.eq.s32.totalorder %v1381, 1
      %vm1414 = vcmp.eq.s32.totalorder %v1382, 1
      %vm1415 = vcmp.eq.s32.totalorder %v1383, 1
      %vm1416 = vcmp.eq.s32.totalorder %v1384, 1
      %vm1417 = vcmp.eq.s32.totalorder %v1385, 1
      %vm1418 = vcmp.eq.s32.totalorder %v1386, 1
      %vm1419 = vcmp.eq.s32.totalorder %v1387, 1
      %vm1420 = vcmp.eq.s32.totalorder %v1388, 1
      %vm1421 = vcmp.eq.s32.totalorder %v1389, 1
      %vm1422 = vcmp.eq.s32.totalorder %v1390, 1
      %vm1423 = vcmp.eq.s32.totalorder %v1391, 1
      %vm1424 = vcmp.eq.s32.totalorder %v1392, 1
      %vm1425 = vcmp.eq.s32.totalorder %v1393, 1
      %vm1426 = vcmp.eq.s32.totalorder %v1394, 1
      %vm1427 = vcmp.eq.s32.totalorder %v1395, 1
      %vm1428 = vcmp.eq.s32.totalorder %v1396, 1
      %vm1429 = vcmp.eq.s32.totalorder %v1397, 1
      %vm1430 = vcmp.eq.s32.totalorder %v1398, 1
      %vm1431 = vcmp.eq.s32.totalorder %v1399, 1
      %vm1432 = vcmp.eq.s32.totalorder %v1400, 1
      %vm1433 = vcmp.eq.s32.totalorder %v1401, 1
      %vm1434 = vcmp.eq.s32.totalorder %v1402, 1
      %vm1435 = vcmp.eq.s32.totalorder %v1403, 1
      %vm1436 = vcmp.eq.s32.totalorder %v1404, 1
      %vm1437 = vcmp.eq.s32.totalorder %v1405, 1
      %vm1438 = vcmp.eq.s32.totalorder %v1406, 1
      %vm1439 = vcmp.eq.s32.totalorder %v1407, 1
      %vm1440 = vcmp.eq.s32.totalorder %v1408, 1
      %vm1441 = vcmp.eq.s32.totalorder %v1409, 1
      %vm1442 = vcmp.eq.s32.totalorder %v1410, 1
      %v1443 = vsel %vm1411, 0.0, %v1315
      %v1444 = vsel %vm1412, 0.0, %v1316
      %v1445 = vsel %vm1413, 0.0, %v1317
      %v1446 = vsel %vm1414, 0.0, %v1318
      %v1447 = vsel %vm1415, 0.0, %v1319
      %v1448 = vsel %vm1416, 0.0, %v1320
      %v1449 = vsel %vm1417, 0.0, %v1321
      %v1450 = vsel %vm1418, 0.0, %v1322
      %v1451 = vsel %vm1419, 0.0, %v1323
      %v1452 = vsel %vm1420, 0.0, %v1324
      %v1453 = vsel %vm1421, 0.0, %v1325
      %v1454 = vsel %vm1422, 0.0, %v1326
      %v1455 = vsel %vm1423, 0.0, %v1327
      %v1456 = vsel %vm1424, 0.0, %v1328
      %v1457 = vsel %vm1425, 0.0, %v1329
      %v1458 = vsel %vm1426, 0.0, %v1330
      %v1459 = vsel %vm1427, 0.0, %v1331
      %v1460 = vsel %vm1428, 0.0, %v1332
      %v1461 = vsel %vm1429, 0.0, %v1333
      %v1462 = vsel %vm1430, 0.0, %v1334
      %v1463 = vsel %vm1431, 0.0, %v1335
      %v1464 = vsel %vm1432, 0.0, %v1336
      %v1465 = vsel %vm1433, 0.0, %v1337
      %v1466 = vsel %vm1434, 0.0, %v1338
      %v1467 = vsel %vm1435, 0.0, %v1339
      %v1468 = vsel %vm1436, 0.0, %v1340
      %v1469 = vsel %vm1437, 0.0, %v1341
      %v1470 = vsel %vm1438, 0.0, %v1342
      %v1471 = vsel %vm1439, 0.0, %v1343
      %v1472 = vsel %vm1440, 0.0, %v1344
      %v1473 = vsel %vm1441, 0.0, %v1345
      %v1474 = vsel %vm1442, 0.0, %v1346
      %v1475 = vld [vmem:[%s2] sm:$0xff]
      %v1476 = vld [vmem:[#allocation2 + $0x8] sm:$0xff]
      %v1477 = vld [vmem:[#allocation2 + $0x10] sm:$0xff]
      %v1478 = vld [vmem:[#allocation2 + $0x18] sm:$0xff]
      %v1479 = vld [vmem:[#allocation2 + $0x20] sm:$0xff]
      %v1480 = vld [vmem:[#allocation2 + $0x28] sm:$0xff]
      %v1481 = vld [vmem:[#allocation2 + $0x30] sm:$0xff]
      %v1482 = vld [vmem:[#allocation2 + $0x38] sm:$0xff]
      %v1483 = vld [vmem:[#allocation2 + $0x40] sm:$0xff]
      %v1484 = vld [vmem:[#allocation2 + $0x48] sm:$0xff]
      %v1485 = vld [vmem:[#allocation2 + $0x50] sm:$0xff]
      %v1486 = vld [vmem:[#allocation2 + $0x58] sm:$0xff]
      %v1487 = vld [vmem:[#allocation2 + $0x60] sm:$0xff]
      %v1488 = vld [vmem:[#allocation2 + $0x68] sm:$0xff]
      %v1489 = vld [vmem:[#allocation2 + $0x70] sm:$0xff]
      %v1490 = vld [vmem:[#allocation2 + $0x78] sm:$0xff]
      %v1491 = vld [vmem:[#allocation2 + $0x80] sm:$0xff]
      %v1492 = vld [vmem:[#allocation2 + $0x88] sm:$0xff]
      %v1493 = vld [vmem:[#allocation2 + $0x90] sm:$0xff]
      %v1494 = vld [vmem:[#allocation2 + $0x98] sm:$0xff]
      %v1495 = vld [vmem:[#allocation2 + $0xa0] sm:$0xff]
      %v1496 = vld [vmem:[#allocation2 + $0xa8] sm:$0xff]
      %v1497 = vld [vmem:[#allocation2 + $0xb0] sm:$0xff]
      %v1498 = vld [vmem:[#allocation2 + $0xb8] sm:$0xff]
      %v1499 = vld [vmem:[#allocation2 + $0xc0] sm:$0xff]
      %v1500 = vld [vmem:[#allocation2 + $0xc8] sm:$0xff]
      %v1501 = vld [vmem:[#allocation2 + $0xd0] sm:$0xff]
      %v1502 = vld [vmem:[#allocation2 + $0xd8] sm:$0xff]
      %v1503 = vld [vmem:[#allocation2 + $0xe0] sm:$0xff]
      %v1504 = vld [vmem:[#allocation2 + $0xe8] sm:$0xff]
      %v1505 = vld [vmem:[#allocation2 + $0xf0] sm:$0xff]
      %v1506 = vld [vmem:[#allocation2 + $0xf8] sm:$0xff]
      %v1507 = vld [vmem:[#allocation2 + $0x100] sm:$0xff]
      %s1508 = scalar_lea.vmem %s2, 8
      %v1509 = vld [vmem:[%s1508] sm:$0xff]
      %v1511 = vsel %vm826, %v1476, 0
      %v1514 = vsel %vm826, %v1477, 0
      %v1517 = vsel %vm826, %v1478, 0
      %v1520 = vsel %vm826, %v1479, 0
      %v1523 = vsel %vm826, %v1480, 0
      %v1526 = vsel %vm826, %v1481, 0
      %v1529 = vsel %vm826, %v1482, 0
      %v1532 = vsel %vm826, %v1483, 0
      %v1535 = vsel %vm826, %v1484, 0
      %v1538 = vsel %vm826, %v1485, 0
      %v1541 = vsel %vm826, %v1486, 0
      %v1544 = vsel %vm826, %v1487, 0
      %v1547 = vsel %vm826, %v1488, 0
      %v1550 = vsel %vm826, %v1489, 0
      %v1553 = vsel %vm826, %v1490, 0
      %v1556 = vsel %vm826, %v1491, 0
      %v1559 = vsel %vm826, %v1492, 0
      %v1562 = vsel %vm826, %v1493, 0
      %v1565 = vsel %vm826, %v1494, 0
      %v1568 = vsel %vm826, %v1495, 0
      %v1571 = vsel %vm826, %v1496, 0
      %v1574 = vsel %vm826, %v1497, 0
      %v1577 = vsel %vm826, %v1498, 0
      %v1580 = vsel %vm826, %v1499, 0
      %v1583 = vsel %vm826, %v1500, 0
      %v1586 = vsel %vm826, %v1501, 0
      %v1589 = vsel %vm826, %v1502, 0
      %v1592 = vsel %vm826, %v1503, 0
      %v1595 = vsel %vm826, %v1504, 0
      %v1598 = vsel %vm826, %v1505, 0
      %v1601 = vsel %vm826, %v1506, 0
      %v1604 = vsel %vm826, %v1507, 0
      %1606 = vmatprep.subr.mxu0 0.0
      %1607 = vmatpush1.msra.mxu0 %v1509
      %1608 = vmatprep.subr.mxu0 0.0
      %1609 = vmatpush1.msra.mxu0 0.0
      %1610 = vmatprep.subr.mxu0 0.0
      %1611 = vmatpush1.msra.mxu0 0.0
      %1612 = vmatprep.subr.mxu0 0.0
      %1613 = vmatpush1.msra.mxu0 0.0
      %1614 = vmatprep.subr.mxu0 0.0
      %1615 = vmatpush1.msra.mxu0 0.0
      %1616 = vmatprep.subr.mxu0 0.0
      %1617 = vmatpush1.msra.mxu0 0.0
      %1618 = vmatprep.subr.mxu0 0.0
      %1619 = vmatpush1.msra.mxu0 0.0
      %1620 = vmatprep.subr.mxu0 0.0
      %1621 = vmatpush1.msra.mxu0 0.0
      %1622 = vmatprep.subr.mxu0 0.0
      %1623 = vmatpush1.msra.mxu0 0.0
      %1624 = vmatprep.subr.mxu0 0.0
      %1625 = vmatpush1.msra.mxu0 0.0
      %1626 = vmatprep.subr.mxu0 0.0
      %1627 = vmatpush1.msra.mxu0 0.0
      %1628 = vmatprep.subr.mxu0 0.0
      %1629 = vmatpush1.msra.mxu0 0.0
      %1630 = vmatprep.subr.mxu0 0.0
      %1631 = vmatpush1.msra.mxu0 0.0
      %1632 = vmatprep.subr.mxu0 0.0
      %1633 = vmatpush1.msra.mxu0 0.0
      %1634 = vmatprep.subr.mxu0 0.0
      %1635 = vmatpush1.msra.mxu0 0.0
      %1636 = vmatprep.subr.mxu0 0.0
      %1637 = vmatpush1.msra.mxu0 0.0
      %1638 = vmatprep.subr.mxu0 0.0
      %1639 = vmatpush1.msra.mxu0 0.0
      %1640 = vmatprep.subr.mxu0 0.0
      %1641 = vmatpush1.msra.mxu0 0.0
      %1642 = vmatprep.subr.mxu0 0.0
      %1643 = vmatpush1.msra.mxu0 0.0
      %1644 = vmatprep.subr.mxu0 0.0
      %1645 = vmatpush1.msra.mxu0 0.0
      %1646 = vmatprep.subr.mxu0 0.0
      %1647 = vmatpush1.msra.mxu0 0.0
      %1648 = vmatprep.subr.mxu0 0.0
      %1649 = vmatpush1.msra.mxu0 0.0
      %1650 = vmatprep.subr.mxu0 0.0
      %1651 = vmatpush1.msra.mxu0 0.0
      %1652 = vmatprep.subr.mxu0 0.0
      %1653 = vmatpush1.msra.mxu0 0.0
      %1654 = vmatprep.subr.mxu0 0.0
      %1655 = vmatpush1.msra.mxu0 0.0
      %1656 = vmatprep.subr.mxu0 0.0
      %1657 = vmatpush1.msra.mxu0 0.0
      %1658 = vmatprep.subr.mxu0 0.0
      %1659 = vmatpush1.msra.mxu0 0.0
      %1660 = vmatprep.subr.mxu0 0.0
      %1661 = vmatpush1.msra.mxu0 0.0
      %1662 = vmatprep.subr.mxu0 0.0
      %1663 = vmatpush1.msra.mxu0 0.0
      %1664 = vmatprep.subr.mxu0 0.0
      %1665 = vmatpush1.msra.mxu0 0.0
      %1666 = vmatprep.subr.mxu0 0.0
      %1667 = vmatpush1.msra.mxu0 0.0
      %1668 = vmatprep.subr.mxu0 0.0
      %1669 = vmatpush1.msra.mxu0 0.0
      %1670 = vmatprep.mubr.f32.mxu0 0.0
      %1671 = vmatmul.mubr.f32.gmra.mrb[0].mxu0 %v1511
      %v1672 = vpop.f32.mrb[0].mxu0
      %v1673 = vadd.f32 0.0, %v1672
      %v1674 = vpop.f32.mrb[0].mxu0
      %1675 = vmatprep.mubr.f32.mxu0 0.0
      %1676 = vmatmul.mubr.f32.gmra.mrb[0].mxu0 %v1514
      %v1677 = vpop.f32.mrb[0].mxu0
      %v1678 = vadd.f32 0.0, %v1677
      %v1679 = vpop.f32.mrb[0].mxu0
      %1680 = vmatprep.mubr.f32.mxu0 0.0
      %1681 = vmatmul.mubr.f32.gmra.mrb[0].mxu0 %v1517
      %v1682 = vpop.f32.mrb[0].mxu0
      %v1683 = vadd.f32 0.0, %v1682
      %v1684 = vpop.f32.mrb[0].mxu0
      %1685 = vmatprep.mubr.f32.mxu0 0.0
      %1686 = vmatmul.mubr.f32.gmra.mrb[0].mxu0 %v1520
      %v1687 = vpop.f32.mrb[0].mxu0
      %v1688 = vadd.f32 0.0, %v1687
      %v1689 = vpop.f32.mrb[0].mxu0
      %1690 = vmatprep.mubr.f32.mxu0 0.0
      %1691 = vmatmul.mubr.f32.gmra.mrb[0].mxu0 %v1523
      %v1692 = vpop.f32.mrb[0].mxu0
      %v1693 = vadd.f32 0.0, %v1692
      %v1694 = vpop.f32.mrb[0].mxu0
      %1695 = vmatprep.mubr.f32.mxu0 0.0
      %1696 = vmatmul.mubr.f32.gmra.mrb[0].mxu0 %v1526
      %v1697 = vpop.f32.mrb[0].mxu0
      %v1698 = vadd.f32 0.0, %v1697
      %v1699 = vpop.f32.mrb[0].mxu0
      %1700 = vmatprep.mubr.f32.mxu0 0.0
      %1701 = vmatmul.mubr.f32.gmra.mrb[0].mxu0 %v1529
      %v1702 = vpop.f32.mrb[0].mxu0
      %v1703 = vadd.f32 0.0, %v1702
      %v1704 = vpop.f32.mrb[0].mxu0
      %1705 = vmatprep.mubr.f32.mxu0 0.0
      %1706 = vmatmul.mubr.f32.gmra.mrb[0].mxu0 %v1532
      %v1707 = vpop.f32.mrb[0].mxu0
      %v1708 = vadd.f32 0.0, %v1707
      %v1709 = vpop.f32.mrb[0].mxu0
      %1710 = vmatprep.mubr.f32.mxu0 0.0
      %1711 = vmatmul.mubr.f32.gmra.mrb[0].mxu0 %v1535
      %v1712 = vpop.f32.mrb[0].mxu0
      %v1713 = vadd.f32 0.0, %v1712
      %v1714 = vpop.f32.mrb[0].mxu0
      %1715 = vmatprep.mubr.f32.mxu0 0.0
      %1716 = vmatmul.mubr.f32.gmra.mrb[0].mxu0 %v1538
      %v1717 = vpop.f32.mrb[0].mxu0
      %v1718 = vadd.f32 0.0, %v1717
      %v1719 = vpop.f32.mrb[0].mxu0
      %1720 = vmatprep.mubr.f32.mxu0 0.0
      %1721 = vmatmul.mubr.f32.gmra.mrb[0].mxu0 %v1541
      %v1722 = vpop.f32.mrb[0].mxu0
      %v1723 = vadd.f32 0.0, %v1722
      %v1724 = vpop.f32.mrb[0].mxu0
      %1725 = vmatprep.mubr.f32.mxu0 0.0
      %1726 = vmatmul.mubr.f32.gmra.mrb[0].mxu0 %v1544
      %v1727 = vpop.f32.mrb[0].mxu0
      %v1728 = vadd.f32 0.0, %v1727
      %v1729 = vpop.f32.mrb[0].mxu0
      %1730 = vmatprep.mubr.f32.mxu0 0.0
      %1731 = vmatmul.mubr.f32.gmra.mrb[0].mxu0 %v1547
      %v1732 = vpop.f32.mrb[0].mxu0
      %v1733 = vadd.f32 0.0, %v1732
      %v1734 = vpop.f32.mrb[0].mxu0
      %1735 = vmatprep.mubr.f32.mxu0 0.0
      %1736 = vmatmul.mubr.f32.gmra.mrb[0].mxu0 %v1550
      %v1737 = vpop.f32.mrb[0].mxu0
      %v1738 = vadd.f32 0.0, %v1737
      %v1739 = vpop.f32.mrb[0].mxu0
      %1740 = vmatprep.mubr.f32.mxu0 0.0
      %1741 = vmatmul.mubr.f32.gmra.mrb[0].mxu0 %v1553
      %v1742 = vpop.f32.mrb[0].mxu0
      %v1743 = vadd.f32 0.0, %v1742
      %v1744 = vpop.f32.mrb[0].mxu0
      %1745 = vmatprep.mubr.f32.mxu0 0.0
      %1746 = vmatmul.mubr.f32.gmra.mrb[0].mxu0 %v1556
      %v1747 = vpop.f32.mrb[0].mxu0
      %v1748 = vadd.f32 0.0, %v1747
      %v1749 = vpop.f32.mrb[0].mxu0
      %1750 = vmatprep.mubr.f32.mxu0 0.0
      %1751 = vmatmul.mubr.f32.gmra.mrb[0].mxu0 %v1559
      %v1752 = vpop.f32.mrb[0].mxu0
      %v1753 = vadd.f32 0.0, %v1752
      %v1754 = vpop.f32.mrb[0].mxu0
      %1755 = vmatprep.mubr.f32.mxu0 0.0
      %1756 = vmatmul.mubr.f32.gmra.mrb[0].mxu0 %v1562
      %v1757 = vpop.f32.mrb[0].mxu0
      %v1758 = vadd.f32 0.0, %v1757
      %v1759 = vpop.f32.mrb[0].mxu0
      %1760 = vmatprep.mubr.f32.mxu0 0.0
      %1761 = vmatmul.mubr.f32.gmra.mrb[0].mxu0 %v1565
      %v1762 = vpop.f32.mrb[0].mxu0
      %v1763 = vadd.f32 0.0, %v1762
      %v1764 = vpop.f32.mrb[0].mxu0
      %1765 = vmatprep.mubr.f32.mxu0 0.0
      %1766 = vmatmul.mubr.f32.gmra.mrb[0].mxu0 %v1568
      %v1767 = vpop.f32.mrb[0].mxu0
      %v1768 = vadd.f32 0.0, %v1767
      %v1769 = vpop.f32.mrb[0].mxu0
      %1770 = vmatprep.mubr.f32.mxu0 0.0
      %1771 = vmatmul.mubr.f32.gmra.mrb[0].mxu0 %v1571
      %v1772 = vpop.f32.mrb[0].mxu0
      %v1773 = vadd.f32 0.0, %v1772
      %v1774 = vpop.f32.mrb[0].mxu0
      %1775 = vmatprep.mubr.f32.mxu0 0.0
      %1776 = vmatmul.mubr.f32.gmra.mrb[0].mxu0 %v1574
      %v1777 = vpop.f32.mrb[0].mxu0
      %v1778 = vadd.f32 0.0, %v1777
      %v1779 = vpop.f32.mrb[0].mxu0
      %1780 = vmatprep.mubr.f32.mxu0 0.0
      %1781 = vmatmul.mubr.f32.gmra.mrb[0].mxu0 %v1577
      %v1782 = vpop.f32.mrb[0].mxu0
      %v1783 = vadd.f32 0.0, %v1782
      %v1784 = vpop.f32.mrb[0].mxu0
      %1785 = vmatprep.mubr.f32.mxu0 0.0
      %1786 = vmatmul.mubr.f32.gmra.mrb[0].mxu0 %v1580
      %v1787 = vpop.f32.mrb[0].mxu0
      %v1788 = vadd.f32 0.0, %v1787
      %v1789 = vpop.f32.mrb[0].mxu0
      %1790 = vmatprep.mubr.f32.mxu0 0.0
      %1791 = vmatmul.mubr.f32.gmra.mrb[0].mxu0 %v1583
      %v1792 = vpop.f32.mrb[0].mxu0
      %v1793 = vadd.f32 0.0, %v1792
      %v1794 = vpop.f32.mrb[0].mxu0
      %1795 = vmatprep.mubr.f32.mxu0 0.0
      %1796 = vmatmul.mubr.f32.gmra.mrb[0].mxu0 %v1586
      %v1797 = vpop.f32.mrb[0].mxu0
      %v1798 = vadd.f32 0.0, %v1797
      %v1799 = vpop.f32.mrb[0].mxu0
      %1800 = vmatprep.mubr.f32.mxu0 0.0
      %1801 = vmatmul.mubr.f32.gmra.mrb[0].mxu0 %v1589
      %v1802 = vpop.f32.mrb[0].mxu0
      %v1803 = vadd.f32 0.0, %v1802
      %v1804 = vpop.f32.mrb[0].mxu0
      %1805 = vmatprep.mubr.f32.mxu0 0.0
      %1806 = vmatmul.mubr.f32.gmra.mrb[0].mxu0 %v1592
      %v1807 = vpop.f32.mrb[0].mxu0
      %v1808 = vadd.f32 0.0, %v1807
      %v1809 = vpop.f32.mrb[0].mxu0
      %1810 = vmatprep.mubr.f32.mxu0 0.0
      %1811 = vmatmul.mubr.f32.gmra.mrb[0].mxu0 %v1595
      %v1812 = vpop.f32.mrb[0].mxu0
      %v1813 = vadd.f32 0.0, %v1812
      %v1814 = vpop.f32.mrb[0].mxu0
      %1815 = vmatprep.mubr.f32.mxu0 0.0
      %1816 = vmatmul.mubr.f32.gmra.mrb[0].mxu0 %v1598
      %v1817 = vpop.f32.mrb[0].mxu0
      %v1818 = vadd.f32 0.0, %v1817
      %v1819 = vpop.f32.mrb[0].mxu0
      %1820 = vmatprep.mubr.f32.mxu0 0.0
      %1821 = vmatmul.mubr.f32.gmra.mrb[0].mxu0 %v1601
      %v1822 = vpop.f32.mrb[0].mxu0
      %v1823 = vadd.f32 0.0, %v1822
      %v1824 = vpop.f32.mrb[0].mxu0
      %1825 = vmatprep.mubr.f32.mxu0 0.0
      %1826 = vmatmul.mubr.f32.gmra.mrb[0].mxu0 %v1604
      %v1827 = vpop.f32.mrb[0].mxu0
      %v1828 = vadd.f32 0.0, %v1827
      %v1829 = vpop.f32.mrb[0].mxu0
      %1830 = vdwg.mxu0
      %v1832 = vsel %vm826, %v1443, 0
      %v1835 = vsel %vm826, %v1444, 0
      %v1838 = vsel %vm826, %v1445, 0
      %v1841 = vsel %vm826, %v1446, 0
      %v1844 = vsel %vm826, %v1447, 0
      %v1847 = vsel %vm826, %v1448, 0
      %v1850 = vsel %vm826, %v1449, 0
      %v1853 = vsel %vm826, %v1450, 0
      %v1856 = vsel %vm826, %v1451, 0
      %v1859 = vsel %vm826, %v1452, 0
      %v1862 = vsel %vm826, %v1453, 0
      %v1865 = vsel %vm826, %v1454, 0
      %v1868 = vsel %vm826, %v1455, 0
      %v1871 = vsel %vm826, %v1456, 0
      %v1874 = vsel %vm826, %v1457, 0
      %v1877 = vsel %vm826, %v1458, 0
      %v1880 = vsel %vm826, %v1459, 0
      %v1883 = vsel %vm826, %v1460, 0
      %v1886 = vsel %vm826, %v1461, 0
      %v1889 = vsel %vm826, %v1462, 0
      %v1892 = vsel %vm826, %v1463, 0
      %v1895 = vsel %vm826, %v1464, 0
      %v1898 = vsel %vm826, %v1465, 0
      %v1901 = vsel %vm826, %v1466, 0
      %v1904 = vsel %vm826, %v1467, 0
      %v1907 = vsel %vm826, %v1468, 0
      %v1910 = vsel %vm826, %v1469, 0
      %v1913 = vsel %vm826, %v1470, 0
      %v1916 = vsel %vm826, %v1471, 0
      %v1919 = vsel %vm826, %v1472, 0
      %v1922 = vsel %vm826, %v1473, 0
      %v1925 = vsel %vm826, %v1474, 0
      %1927 = vmatprep.subr.mxu0 0.0
      %1928 = vmatpush1.msra.mxu0 %v1475
      %1929 = vmatprep.subr.mxu0 0.0
      %1930 = vmatpush1.msra.mxu0 0.0
      %1931 = vmatprep.subr.mxu0 0.0
      %1932 = vmatpush1.msra.mxu0 0.0
      %1933 = vmatprep.subr.mxu0 0.0
      %1934 = vmatpush1.msra.mxu0 0.0
      %1935 = vmatprep.subr.mxu0 0.0
      %1936 = vmatpush1.msra.mxu0 0.0
      %1937 = vmatprep.subr.mxu0 0.0
      %1938 = vmatpush1.msra.mxu0 0.0
      %1939 = vmatprep.subr.mxu0 0.0
      %1940 = vmatpush1.msra.mxu0 0.0
      %1941 = vmatprep.subr.mxu0 0.0
      %1942 = vmatpush1.msra.mxu0 0.0
      %1943 = vmatprep.subr.mxu0 0.0
      %1944 = vmatpush1.msra.mxu0 0.0
      %1945 = vmatprep.subr.mxu0 0.0
      %1946 = vmatpush1.msra.mxu0 0.0
      %1947 = vmatprep.subr.mxu0 0.0
      %1948 = vmatpush1.msra.mxu0 0.0
      %1949 = vmatprep.subr.mxu0 0.0
      %1950 = vmatpush1.msra.mxu0 0.0
      %1951 = vmatprep.subr.mxu0 0.0
      %1952 = vmatpush1.msra.mxu0 0.0
      %1953 = vmatprep.subr.mxu0 0.0
      %1954 = vmatpush1.msra.mxu0 0.0
      %1955 = vmatprep.subr.mxu0 0.0
      %1956 = vmatpush1.msra.mxu0 0.0
      %1957 = vmatprep.subr.mxu0 0.0
      %1958 = vmatpush1.msra.mxu0 0.0
      %1959 = vmatprep.subr.mxu0 0.0
      %1960 = vmatpush1.msra.mxu0 0.0
      %1961 = vmatprep.subr.mxu0 0.0
      %1962 = vmatpush1.msra.mxu0 0.0
      %1963 = vmatprep.subr.mxu0 0.0
      %1964 = vmatpush1.msra.mxu0 0.0
      %1965 = vmatprep.subr.mxu0 0.0
      %1966 = vmatpush1.msra.mxu0 0.0
      %1967 = vmatprep.subr.mxu0 0.0
      %1968 = vmatpush1.msra.mxu0 0.0
      %1969 = vmatprep.subr.mxu0 0.0
      %1970 = vmatpush1.msra.mxu0 0.0
      %1971 = vmatprep.subr.mxu0 0.0
      %1972 = vmatpush1.msra.mxu0 0.0
      %1973 = vmatprep.subr.mxu0 0.0
      %1974 = vmatpush1.msra.mxu0 0.0
      %1975 = vmatprep.subr.mxu0 0.0
      %1976 = vmatpush1.msra.mxu0 0.0
      %1977 = vmatprep.subr.mxu0 0.0
      %1978 = vmatpush1.msra.mxu0 0.0
      %1979 = vmatprep.subr.mxu0 0.0
      %1980 = vmatpush1.msra.mxu0 0.0
      %1981 = vmatprep.subr.mxu0 0.0
      %1982 = vmatpush1.msra.mxu0 0.0
      %1983 = vmatprep.subr.mxu0 0.0
      %1984 = vmatpush1.msra.mxu0 0.0
      %1985 = vmatprep.subr.mxu0 0.0
      %1986 = vmatpush1.msra.mxu0 0.0
      %1987 = vmatprep.subr.mxu0 0.0
      %1988 = vmatpush1.msra.mxu0 0.0
      %1989 = vmatprep.subr.mxu0 0.0
      %1990 = vmatpush1.msra.mxu0 0.0
      %1991 = vmatprep.mubr.f32.mxu0 0.0
      %1992 = vmatmul.mubr.f32.gmra.mrb[0].mxu0 %v1832
      %v1993 = vpop.f32.mrb[0].mxu0
      %v1994 = vadd.f32 %v1673, %v1993
      %v1995 = vpop.f32.mrb[0].mxu0
      %1996 = vmatprep.mubr.f32.mxu0 0.0
      %1997 = vmatmul.mubr.f32.gmra.mrb[0].mxu0 %v1835
      %v1998 = vpop.f32.mrb[0].mxu0
      %v1999 = vadd.f32 %v1678, %v1998
      %v2000 = vpop.f32.mrb[0].mxu0
      %2001 = vmatprep.mubr.f32.mxu0 0.0
      %2002 = vmatmul.mubr.f32.gmra.mrb[0].mxu0 %v1838
      %v2003 = vpop.f32.mrb[0].mxu0
      %v2004 = vadd.f32 %v1683, %v2003
      %v2005 = vpop.f32.mrb[0].mxu0
      %2006 = vmatprep.mubr.f32.mxu0 0.0
      %2007 = vmatmul.mubr.f32.gmra.mrb[0].mxu0 %v1841
      %v2008 = vpop.f32.mrb[0].mxu0
      %v2009 = vadd.f32 %v1688, %v2008
      %v2010 = vpop.f32.mrb[0].mxu0
      %2011 = vmatprep.mubr.f32.mxu0 0.0
      %2012 = vmatmul.mubr.f32.gmra.mrb[0].mxu0 %v1844
      %v2013 = vpop.f32.mrb[0].mxu0
      %v2014 = vadd.f32 %v1693, %v2013
      %v2015 = vpop.f32.mrb[0].mxu0
      %2016 = vmatprep.mubr.f32.mxu0 0.0
      %2017 = vmatmul.mubr.f32.gmra.mrb[0].mxu0 %v1847
      %v2018 = vpop.f32.mrb[0].mxu0
      %v2019 = vadd.f32 %v1698, %v2018
      %v2020 = vpop.f32.mrb[0].mxu0
      %2021 = vmatprep.mubr.f32.mxu0 0.0
      %2022 = vmatmul.mubr.f32.gmra.mrb[0].mxu0 %v1850
      %v2023 = vpop.f32.mrb[0].mxu0
      %v2024 = vadd.f32 %v1703, %v2023
      %v2025 = vpop.f32.mrb[0].mxu0
      %2026 = vmatprep.mubr.f32.mxu0 0.0
      %2027 = vmatmul.mubr.f32.gmra.mrb[0].mxu0 %v1853
      %v2028 = vpop.f32.mrb[0].mxu0
      %v2029 = vadd.f32 %v1708, %v2028
      %v2030 = vpop.f32.mrb[0].mxu0
      %2031 = vmatprep.mubr.f32.mxu0 0.0
      %2032 = vmatmul.mubr.f32.gmra.mrb[0].mxu0 %v1856
      %v2033 = vpop.f32.mrb[0].mxu0
      %v2034 = vadd.f32 %v1713, %v2033
      %v2035 = vpop.f32.mrb[0].mxu0
      %2036 = vmatprep.mubr.f32.mxu0 0.0
      %2037 = vmatmul.mubr.f32.gmra.mrb[0].mxu0 %v1859
      %v2038 = vpop.f32.mrb[0].mxu0
      %v2039 = vadd.f32 %v1718, %v2038
      %v2040 = vpop.f32.mrb[0].mxu0
      %2041 = vmatprep.mubr.f32.mxu0 0.0
      %2042 = vmatmul.mubr.f32.gmra.mrb[0].mxu0 %v1862
      %v2043 = vpop.f32.mrb[0].mxu0
      %v2044 = vadd.f32 %v1723, %v2043
      %v2045 = vpop.f32.mrb[0].mxu0
      %2046 = vmatprep.mubr.f32.mxu0 0.0
      %2047 = vmatmul.mubr.f32.gmra.mrb[0].mxu0 %v1865
      %v2048 = vpop.f32.mrb[0].mxu0
      %v2049 = vadd.f32 %v1728, %v2048
      %v2050 = vpop.f32.mrb[0].mxu0
      %2051 = vmatprep.mubr.f32.mxu0 0.0
      %2052 = vmatmul.mubr.f32.gmra.mrb[0].mxu0 %v1868
      %v2053 = vpop.f32.mrb[0].mxu0
      %v2054 = vadd.f32 %v1733, %v2053
      %v2055 = vpop.f32.mrb[0].mxu0
      %2056 = vmatprep.mubr.f32.mxu0 0.0
      %2057 = vmatmul.mubr.f32.gmra.mrb[0].mxu0 %v1871
      %v2058 = vpop.f32.mrb[0].mxu0
      %v2059 = vadd.f32 %v1738, %v2058
      %v2060 = vpop.f32.mrb[0].mxu0
      %2061 = vmatprep.mubr.f32.mxu0 0.0
      %2062 = vmatmul.mubr.f32.gmra.mrb[0].mxu0 %v1874
      %v2063 = vpop.f32.mrb[0].mxu0
      %v2064 = vadd.f32 %v1743, %v2063
      %v2065 = vpop.f32.mrb[0].mxu0
      %2066 = vmatprep.mubr.f32.mxu0 0.0
      %2067 = vmatmul.mubr.f32.gmra.mrb[0].mxu0 %v1877
      %v2068 = vpop.f32.mrb[0].mxu0
      %v2069 = vadd.f32 %v1748, %v2068
      %v2070 = vpop.f32.mrb[0].mxu0
      %2071 = vmatprep.mubr.f32.mxu0 0.0
      %2072 = vmatmul.mubr.f32.gmra.mrb[0].mxu0 %v1880
      %v2073 = vpop.f32.mrb[0].mxu0
      %v2074 = vadd.f32 %v1753, %v2073
      %v2075 = vpop.f32.mrb[0].mxu0
      %2076 = vmatprep.mubr.f32.mxu0 0.0
      %2077 = vmatmul.mubr.f32.gmra.mrb[0].mxu0 %v1883
      %v2078 = vpop.f32.mrb[0].mxu0
      %v2079 = vadd.f32 %v1758, %v2078
      %v2080 = vpop.f32.mrb[0].mxu0
      %2081 = vmatprep.mubr.f32.mxu0 0.0
      %2082 = vmatmul.mubr.f32.gmra.mrb[0].mxu0 %v1886
      %v2083 = vpop.f32.mrb[0].mxu0
      %v2084 = vadd.f32 %v1763, %v2083
      %v2085 = vpop.f32.mrb[0].mxu0
      %2086 = vmatprep.mubr.f32.mxu0 0.0
      %2087 = vmatmul.mubr.f32.gmra.mrb[0].mxu0 %v1889
      %v2088 = vpop.f32.mrb[0].mxu0
      %v2089 = vadd.f32 %v1768, %v2088
      %v2090 = vpop.f32.mrb[0].mxu0
      %2091 = vmatprep.mubr.f32.mxu0 0.0
      %2092 = vmatmul.mubr.f32.gmra.mrb[0].mxu0 %v1892
      %v2093 = vpop.f32.mrb[0].mxu0
      %v2094 = vadd.f32 %v1773, %v2093
      %v2095 = vpop.f32.mrb[0].mxu0
      %2096 = vmatprep.mubr.f32.mxu0 0.0
      %2097 = vmatmul.mubr.f32.gmra.mrb[0].mxu0 %v1895
      %v2098 = vpop.f32.mrb[0].mxu0
      %v2099 = vadd.f32 %v1778, %v2098
      %v2100 = vpop.f32.mrb[0].mxu0
      %2101 = vmatprep.mubr.f32.mxu0 0.0
      %2102 = vmatmul.mubr.f32.gmra.mrb[0].mxu0 %v1898
      %v2103 = vpop.f32.mrb[0].mxu0
      %v2104 = vadd.f32 %v1783, %v2103
      %v2105 = vpop.f32.mrb[0].mxu0
      %2106 = vmatprep.mubr.f32.mxu0 0.0
      %2107 = vmatmul.mubr.f32.gmra.mrb[0].mxu0 %v1901
      %v2108 = vpop.f32.mrb[0].mxu0
      %v2109 = vadd.f32 %v1788, %v2108
      %v2110 = vpop.f32.mrb[0].mxu0
      %2111 = vmatprep.mubr.f32.mxu0 0.0
      %2112 = vmatmul.mubr.f32.gmra.mrb[0].mxu0 %v1904
      %v2113 = vpop.f32.mrb[0].mxu0
      %v2114 = vadd.f32 %v1793, %v2113
      %v2115 = vpop.f32.mrb[0].mxu0
      %2116 = vmatprep.mubr.f32.mxu0 0.0
      %2117 = vmatmul.mubr.f32.gmra.mrb[0].mxu0 %v1907
      %v2118 = vpop.f32.mrb[0].mxu0
      %v2119 = vadd.f32 %v1798, %v2118
      %v2120 = vpop.f32.mrb[0].mxu0
      %2121 = vmatprep.mubr.f32.mxu0 0.0
      %2122 = vmatmul.mubr.f32.gmra.mrb[0].mxu0 %v1910
      %v2123 = vpop.f32.mrb[0].mxu0
      %v2124 = vadd.f32 %v1803, %v2123
      %v2125 = vpop.f32.mrb[0].mxu0
      %2126 = vmatprep.mubr.f32.mxu0 0.0
      %2127 = vmatmul.mubr.f32.gmra.mrb[0].mxu0 %v1913
      %v2128 = vpop.f32.mrb[0].mxu0
      %v2129 = vadd.f32 %v1808, %v2128
      %v2130 = vpop.f32.mrb[0].mxu0
      %2131 = vmatprep.mubr.f32.mxu0 0.0
      %2132 = vmatmul.mubr.f32.gmra.mrb[0].mxu0 %v1916
      %v2133 = vpop.f32.mrb[0].mxu0
      %v2134 = vadd.f32 %v1813, %v2133
      %v2135 = vpop.f32.mrb[0].mxu0
      %2136 = vmatprep.mubr.f32.mxu0 0.0
      %2137 = vmatmul.mubr.f32.gmra.mrb[0].mxu0 %v1919
      %v2138 = vpop.f32.mrb[0].mxu0
      %v2139 = vadd.f32 %v1818, %v2138
      %v2140 = vpop.f32.mrb[0].mxu0
      %2141 = vmatprep.mubr.f32.mxu0 0.0
      %2142 = vmatmul.mubr.f32.gmra.mrb[0].mxu0 %v1922
      %v2143 = vpop.f32.mrb[0].mxu0
      %v2144 = vadd.f32 %v1823, %v2143
      %v2145 = vpop.f32.mrb[0].mxu0
      %2146 = vmatprep.mubr.f32.mxu0 0.0
      %2147 = vmatmul.mubr.f32.gmra.mrb[0].mxu0 %v1925
      %v2148 = vpop.f32.mrb[0].mxu0
      %v2149 = vadd.f32 %v1828, %v2148
      %v2150 = vpop.f32.mrb[0].mxu0
      %2151 = vdwg.mxu0
      %v2152 = vld [vmem:[#allocation2 + $0x9] sm:$0xff]
      %v2153 = vld [vmem:[#allocation2 + $0x11] sm:$0xff]
      %v2154 = vld [vmem:[#allocation2 + $0x19] sm:$0xff]
      %v2155 = vld [vmem:[#allocation2 + $0x21] sm:$0xff]
      %v2156 = vld [vmem:[#allocation2 + $0x29] sm:$0xff]
      %v2157 = vld [vmem:[#allocation2 + $0x31] sm:$0xff]
      %v2158 = vld [vmem:[#allocation2 + $0x39] sm:$0xff]
      %v2159 = vld [vmem:[#allocation2 + $0x41] sm:$0xff]
      %v2160 = vld [vmem:[#allocation2 + $0x49] sm:$0xff]
      %v2161 = vld [vmem:[#allocation2 + $0x51] sm:$0xff]
      %v2162 = vld [vmem:[#allocation2 + $0x59] sm:$0xff]
      %v2163 = vld [vmem:[#allocation2 + $0x61] sm:$0xff]
      %v2164 = vld [vmem:[#allocation2 + $0x69] sm:$0xff]
      %v2165 = vld [vmem:[#allocation2 + $0x71] sm:$0xff]
      %v2166 = vld [vmem:[#allocation2 + $0x79] sm:$0xff]
      %v2167 = vld [vmem:[#allocation2 + $0x81] sm:$0xff]
      %v2168 = vld [vmem:[#allocation2 + $0x89] sm:$0xff]
      %v2169 = vld [vmem:[#allocation2 + $0x91] sm:$0xff]
      %v2170 = vld [vmem:[#allocation2 + $0x99] sm:$0xff]
      %v2171 = vld [vmem:[#allocation2 + $0xa1] sm:$0xff]
      %v2172 = vld [vmem:[#allocation2 + $0xa9] sm:$0xff]
      %v2173 = vld [vmem:[#allocation2 + $0xb1] sm:$0xff]
      %v2174 = vld [vmem:[#allocation2 + $0xb9] sm:$0xff]
      %v2175 = vld [vmem:[#allocation2 + $0xc1] sm:$0xff]
      %v2176 = vld [vmem:[#allocation2 + $0xc9] sm:$0xff]
      %v2177 = vld [vmem:[#allocation2 + $0xd1] sm:$0xff]
      %v2178 = vld [vmem:[#allocation2 + $0xd9] sm:$0xff]
      %v2179 = vld [vmem:[#allocation2 + $0xe1] sm:$0xff]
      %v2180 = vld [vmem:[#allocation2 + $0xe9] sm:$0xff]
      %v2181 = vld [vmem:[#allocation2 + $0xf1] sm:$0xff]
      %v2182 = vld [vmem:[#allocation2 + $0xf9] sm:$0xff]
      %v2183 = vld [vmem:[#allocation2 + $0x101] sm:$0xff]
      %vm2184 = vcmp.eq.s32.totalorder %v1283, 15
      %vm2185 = vcmp.eq.s32.totalorder %v1284, 15
      %vm2186 = vcmp.eq.s32.totalorder %v1285, 15
      %vm2187 = vcmp.eq.s32.totalorder %v1286, 15
      %vm2188 = vcmp.eq.s32.totalorder %v1287, 15
      %vm2189 = vcmp.eq.s32.totalorder %v1288, 15
      %vm2190 = vcmp.eq.s32.totalorder %v1289, 15
      %vm2191 = vcmp.eq.s32.totalorder %v1290, 15
      %vm2192 = vcmp.eq.s32.totalorder %v1291, 15
      %vm2193 = vcmp.eq.s32.totalorder %v1292, 15
      %vm2194 = vcmp.eq.s32.totalorder %v1293, 15
      %vm2195 = vcmp.eq.s32.totalorder %v1294, 15
      %vm2196 = vcmp.eq.s32.totalorder %v1295, 15
      %vm2197 = vcmp.eq.s32.totalorder %v1296, 15
      %vm2198 = vcmp.eq.s32.totalorder %v1297, 15
      %vm2199 = vcmp.eq.s32.totalorder %v1298, 15
      %vm2200 = vcmp.eq.s32.totalorder %v1299, 15
      %vm2201 = vcmp.eq.s32.totalorder %v1300, 15
      %vm2202 = vcmp.eq.s32.totalorder %v1301, 15
      %vm2203 = vcmp.eq.s32.totalorder %v1302, 15
      %vm2204 = vcmp.eq.s32.totalorder %v1303, 15
      %vm2205 = vcmp.eq.s32.totalorder %v1304, 15
      %vm2206 = vcmp.eq.s32.totalorder %v1305, 15
      %vm2207 = vcmp.eq.s32.totalorder %v1306, 15
      %vm2208 = vcmp.eq.s32.totalorder %v1307, 15
      %vm2209 = vcmp.eq.s32.totalorder %v1308, 15
      %vm2210 = vcmp.eq.s32.totalorder %v1309, 15
      %vm2211 = vcmp.eq.s32.totalorder %v1310, 15
      %vm2212 = vcmp.eq.s32.totalorder %v1311, 15
      %vm2213 = vcmp.eq.s32.totalorder %v1312, 15
      %vm2214 = vcmp.eq.s32.totalorder %v1313, 15
      %vm2215 = vcmp.eq.s32.totalorder %v1314, 15
      %v2216 = vsel %vm2184, 1, 0
      %v2217 = vsel %vm2185, 1, 0
      %v2218 = vsel %vm2186, 1, 0
      %v2219 = vsel %vm2187, 1, 0
      %v2220 = vsel %vm2188, 1, 0
      %v2221 = vsel %vm2189, 1, 0
      %v2222 = vsel %vm2190, 1, 0
      %v2223 = vsel %vm2191, 1, 0
      %v2224 = vsel %vm2192, 1, 0
      %v2225 = vsel %vm2193, 1, 0
      %v2226 = vsel %vm2194, 1, 0
      %v2227 = vsel %vm2195, 1, 0
      %v2228 = vsel %vm2196, 1, 0
      %v2229 = vsel %vm2197, 1, 0
      %v2230 = vsel %vm2198, 1, 0
      %v2231 = vsel %vm2199, 1, 0
      %v2232 = vsel %vm2200, 1, 0
      %v2233 = vsel %vm2201, 1, 0
      %v2234 = vsel %vm2202, 1, 0
      %v2235 = vsel %vm2203, 1, 0
      %v2236 = vsel %vm2204, 1, 0
      %v2237 = vsel %vm2205, 1, 0
      %v2238 = vsel %vm2206, 1, 0
      %v2239 = vsel %vm2207, 1, 0
      %v2240 = vsel %vm2208, 1, 0
      %v2241 = vsel %vm2209, 1, 0
      %v2242 = vsel %vm2210, 1, 0
      %v2243 = vsel %vm2211, 1, 0
      %v2244 = vsel %vm2212, 1, 0
      %v2245 = vsel %vm2213, 1, 0
      %v2246 = vsel %vm2214, 1, 0
      %v2247 = vsel %vm2215, 1, 0
      %vm2248 = vcmp.eq.s32.totalorder %v2216, 1
      %vm2249 = vcmp.eq.s32.totalorder %v2217, 1
      %vm2250 = vcmp.eq.s32.totalorder %v2218, 1
      %vm2251 = vcmp.eq.s32.totalorder %v2219, 1
      %vm2252 = vcmp.eq.s32.totalorder %v2220, 1
      %vm2253 = vcmp.eq.s32.totalorder %v2221, 1
      %vm2254 = vcmp.eq.s32.totalorder %v2222, 1
      %vm2255 = vcmp.eq.s32.totalorder %v2223, 1
      %vm2256 = vcmp.eq.s32.totalorder %v2224, 1
      %vm2257 = vcmp.eq.s32.totalorder %v2225, 1
      %vm2258 = vcmp.eq.s32.totalorder %v2226, 1
      %vm2259 = vcmp.eq.s32.totalorder %v2227, 1
      %vm2260 = vcmp.eq.s32.totalorder %v2228, 1
      %vm2261 = vcmp.eq.s32.totalorder %v2229, 1
      %vm2262 = vcmp.eq.s32.totalorder %v2230, 1
      %vm2263 = vcmp.eq.s32.totalorder %v2231, 1
      %vm2264 = vcmp.eq.s32.totalorder %v2232, 1
      %vm2265 = vcmp.eq.s32.totalorder %v2233, 1
      %vm2266 = vcmp.eq.s32.totalorder %v2234, 1
      %vm2267 = vcmp.eq.s32.totalorder %v2235, 1
      %vm2268 = vcmp.eq.s32.totalorder %v2236, 1
      %vm2269 = vcmp.eq.s32.totalorder %v2237, 1
      %vm2270 = vcmp.eq.s32.totalorder %v2238, 1
      %vm2271 = vcmp.eq.s32.totalorder %v2239, 1
      %vm2272 = vcmp.eq.s32.totalorder %v2240, 1
      %vm2273 = vcmp.eq.s32.totalorder %v2241, 1
      %vm2274 = vcmp.eq.s32.totalorder %v2242, 1
      %vm2275 = vcmp.eq.s32.totalorder %v2243, 1
      %vm2276 = vcmp.eq.s32.totalorder %v2244, 1
      %vm2277 = vcmp.eq.s32.totalorder %v2245, 1
      %vm2278 = vcmp.eq.s32.totalorder %v2246, 1
      %vm2279 = vcmp.eq.s32.totalorder %v2247, 1
      %v2280 = vsel %vm2248, 0.0, %v2152
      %v2281 = vsel %vm2249, 0.0, %v2153
      %v2282 = vsel %vm2250, 0.0, %v2154
      %v2283 = vsel %vm2251, 0.0, %v2155
      %v2284 = vsel %vm2252, 0.0, %v2156
      %v2285 = vsel %vm2253, 0.0, %v2157
      %v2286 = vsel %vm2254, 0.0, %v2158
      %v2287 = vsel %vm2255, 0.0, %v2159
      %v2288 = vsel %vm2256, 0.0, %v2160
      %v2289 = vsel %vm2257, 0.0, %v2161
      %v2290 = vsel %vm2258, 0.0, %v2162
      %v2291 = vsel %vm2259, 0.0, %v2163
      %v2292 = vsel %vm2260, 0.0, %v2164
      %v2293 = vsel %vm2261, 0.0, %v2165
      %v2294 = vsel %vm2262, 0.0, %v2166
      %v2295 = vsel %vm2263, 0.0, %v2167
      %v2296 = vsel %vm2264, 0.0, %v2168
      %v2297 = vsel %vm2265, 0.0, %v2169
      %v2298 = vsel %vm2266, 0.0, %v2170
      %v2299 = vsel %vm2267, 0.0, %v2171
      %v2300 = vsel %vm2268, 0.0, %v2172
      %v2301 = vsel %vm2269, 0.0, %v2173
      %v2302 = vsel %vm2270, 0.0, %v2174
      %v2303 = vsel %vm2271, 0.0, %v2175
      %v2304 = vsel %vm2272, 0.0, %v2176
      %v2305 = vsel %vm2273, 0.0, %v2177
      %v2306 = vsel %vm2274, 0.0, %v2178
      %v2307 = vsel %vm2275, 0.0, %v2179
      %v2308 = vsel %vm2276, 0.0, %v2180
      %v2309 = vsel %vm2277, 0.0, %v2181
      %v2310 = vsel %vm2278, 0.0, %v2182
      %v2311 = vsel %vm2279, 0.0, %v2183
      %s2312 = scalar_lea.vmem %s2, 16
      %v2313 = vld [vmem:[%s2312] sm:$0xff]
      %v2315 = vsel %vm826, %v2280, 0
      %v2318 = vsel %vm826, %v2281, 0
      %v2321 = vsel %vm826, %v2282, 0
      %v2324 = vsel %vm826, %v2283, 0
      %v2327 = vsel %vm826, %v2284, 0
      %v2330 = vsel %vm826, %v2285, 0
      %v2333 = vsel %vm826, %v2286, 0
      %v2336 = vsel %vm826, %v2287, 0
      %v2339 = vsel %vm826, %v2288, 0
      %v2342 = vsel %vm826, %v2289, 0
      %v2345 = vsel %vm826, %v2290, 0
      %v2348 = vsel %vm826, %v2291, 0
      %v2351 = vsel %vm826, %v2292, 0
      %v2354 = vsel %vm826, %v2293, 0
      %v2357 = vsel %vm826, %v2294, 0
      %v2360 = vsel %vm826, %v2295, 0
      %v2363 = vsel %vm826, %v2296, 0
      %v2366 = vsel %vm826, %v2297, 0
      %v2369 = vsel %vm826, %v2298, 0
      %v2372 = vsel %vm826, %v2299, 0
      %v2375 = vsel %vm826, %v2300, 0
      %v2378 = vsel %vm826, %v2301, 0
      %v2381 = vsel %vm826, %v2302, 0
      %v2384 = vsel %vm826, %v2303, 0
      %v2387 = vsel %vm826, %v2304, 0
      %v2390 = vsel %vm826, %v2305, 0
      %v2393 = vsel %vm826, %v2306, 0
      %v2396 = vsel %vm826, %v2307, 0
      %v2399 = vsel %vm826, %v2308, 0
      %v2402 = vsel %vm826, %v2309, 0
      %v2405 = vsel %vm826, %v2310, 0
      %v2408 = vsel %vm826, %v2311, 0
      %2410 = vmatprep.subr.mxu0 0.0
      %2411 = vmatpush1.msra.mxu0 %v2313
      %2412 = vmatprep.subr.mxu0 0.0
      %2413 = vmatpush1.msra.mxu0 0.0
      %2414 = vmatprep.subr.mxu0 0.0
      %2415 = vmatpush1.msra.mxu0 0.0
      %2416 = vmatprep.subr.mxu0 0.0
      %2417 = vmatpush1.msra.mxu0 0.0
      %2418 = vmatprep.subr.mxu0 0.0
      %2419 = vmatpush1.msra.mxu0 0.0
      %2420 = vmatprep.subr.mxu0 0.0
      %2421 = vmatpush1.msra.mxu0 0.0
      %2422 = vmatprep.subr.mxu0 0.0
      %2423 = vmatpush1.msra.mxu0 0.0
      %2424 = vmatprep.subr.mxu0 0.0
      %2425 = vmatpush1.msra.mxu0 0.0
      %2426 = vmatprep.subr.mxu0 0.0
      %2427 = vmatpush1.msra.mxu0 0.0
      %2428 = vmatprep.subr.mxu0 0.0
      %2429 = vmatpush1.msra.mxu0 0.0
      %2430 = vmatprep.subr.mxu0 0.0
      %2431 = vmatpush1.msra.mxu0 0.0
      %2432 = vmatprep.subr.mxu0 0.0
      %2433 = vmatpush1.msra.mxu0 0.0
      %2434 = vmatprep.subr.mxu0 0.0
      %2435 = vmatpush1.msra.mxu0 0.0
      %2436 = vmatprep.subr.mxu0 0.0
      %2437 = vmatpush1.msra.mxu0 0.0
      %2438 = vmatprep.subr.mxu0 0.0
      %2439 = vmatpush1.msra.mxu0 0.0
      %2440 = vmatprep.subr.mxu0 0.0
      %2441 = vmatpush1.msra.mxu0 0.0
      %2442 = vmatprep.subr.mxu0 0.0
      %2443 = vmatpush1.msra.mxu0 0.0
      %2444 = vmatprep.subr.mxu0 0.0
      %2445 = vmatpush1.msra.mxu0 0.0
      %2446 = vmatprep.subr.mxu0 0.0
      %2447 = vmatpush1.msra.mxu0 0.0
      %2448 = vmatprep.subr.mxu0 0.0
      %2449 = vmatpush1.msra.mxu0 0.0
      %2450 = vmatprep.subr.mxu0 0.0
      %2451 = vmatpush1.msra.mxu0 0.0
      %2452 = vmatprep.subr.mxu0 0.0
      %2453 = vmatpush1.msra.mxu0 0.0
      %2454 = vmatprep.subr.mxu0 0.0
      %2455 = vmatpush1.msra.mxu0 0.0
      %2456 = vmatprep.subr.mxu0 0.0
      %2457 = vmatpush1.msra.mxu0 0.0
      %2458 = vmatprep.subr.mxu0 0.0
      %2459 = vmatpush1.msra.mxu0 0.0
      %2460 = vmatprep.subr.mxu0 0.0
      %2461 = vmatpush1.msra.mxu0 0.0
      %2462 = vmatprep.subr.mxu0 0.0
      %2463 = vmatpush1.msra.mxu0 0.0
      %2464 = vmatprep.subr.mxu0 0.0
      %2465 = vmatpush1.msra.mxu0 0.0
      %2466 = vmatprep.subr.mxu0 0.0
      %2467 = vmatpush1.msra.mxu0 0.0
      %2468 = vmatprep.subr.mxu0 0.0
      %2469 = vmatpush1.msra.mxu0 0.0
      %2470 = vmatprep.subr.mxu0 0.0
      %2471 = vmatpush1.msra.mxu0 0.0
      %2472 = vmatprep.subr.mxu0 0.0
      %2473 = vmatpush1.msra.mxu0 0.0
      %2474 = vmatprep.mubr.f32.mxu0 0.0
      %2475 = vmatmul.mubr.f32.gmra.mrb[0].mxu0 %v2315
      %v2476 = vpop.f32.mrb[0].mxu0
      %v2477 = vadd.f32 0.0, %v2476
      %v2478 = vpop.f32.mrb[0].mxu0
      %2479 = vmatprep.mubr.f32.mxu0 0.0
      %2480 = vmatmul.mubr.f32.gmra.mrb[0].mxu0 %v2318
      %v2481 = vpop.f32.mrb[0].mxu0
      %v2482 = vadd.f32 0.0, %v2481
      %v2483 = vpop.f32.mrb[0].mxu0
      %2484 = vmatprep.mubr.f32.mxu0 0.0
      %2485 = vmatmul.mubr.f32.gmra.mrb[0].mxu0 %v2321
      %v2486 = vpop.f32.mrb[0].mxu0
      %v2487 = vadd.f32 0.0, %v2486
      %v2488 = vpop.f32.mrb[0].mxu0
      %2489 = vmatprep.mubr.f32.mxu0 0.0
      %2490 = vmatmul.mubr.f32.gmra.mrb[0].mxu0 %v2324
      %v2491 = vpop.f32.mrb[0].mxu0
      %v2492 = vadd.f32 0.0, %v2491
      %v2493 = vpop.f32.mrb[0].mxu0
      %2494 = vmatprep.mubr.f32.mxu0 0.0
      %2495 = vmatmul.mubr.f32.gmra.mrb[0].mxu0 %v2327
      %v2496 = vpop.f32.mrb[0].mxu0
      %v2497 = vadd.f32 0.0, %v2496
      %v2498 = vpop.f32.mrb[0].mxu0
      %2499 = vmatprep.mubr.f32.mxu0 0.0
      %2500 = vmatmul.mubr.f32.gmra.mrb[0].mxu0 %v2330
      %v2501 = vpop.f32.mrb[0].mxu0
      %v2502 = vadd.f32 0.0, %v2501
      %v2503 = vpop.f32.mrb[0].mxu0
      %2504 = vmatprep.mubr.f32.mxu0 0.0
      %2505 = vmatmul.mubr.f32.gmra.mrb[0].mxu0 %v2333
      %v2506 = vpop.f32.mrb[0].mxu0
      %v2507 = vadd.f32 0.0, %v2506
      %v2508 = vpop.f32.mrb[0].mxu0
      %2509 = vmatprep.mubr.f32.mxu0 0.0
      %2510 = vmatmul.mubr.f32.gmra.mrb[0].mxu0 %v2336
      %v2511 = vpop.f32.mrb[0].mxu0
      %v2512 = vadd.f32 0.0, %v2511
      %v2513 = vpop.f32.mrb[0].mxu0
      %2514 = vmatprep.mubr.f32.mxu0 0.0
      %2515 = vmatmul.mubr.f32.gmra.mrb[0].mxu0 %v2339
      %v2516 = vpop.f32.mrb[0].mxu0
      %v2517 = vadd.f32 0.0, %v2516
      %v2518 = vpop.f32.mrb[0].mxu0
      %2519 = vmatprep.mubr.f32.mxu0 0.0
      %2520 = vmatmul.mubr.f32.gmra.mrb[0].mxu0 %v2342
      %v2521 = vpop.f32.mrb[0].mxu0
      %v2522 = vadd.f32 0.0, %v2521
      %v2523 = vpop.f32.mrb[0].mxu0
      %2524 = vmatprep.mubr.f32.mxu0 0.0
      %2525 = vmatmul.mubr.f32.gmra.mrb[0].mxu0 %v2345
      %v2526 = vpop.f32.mrb[0].mxu0
      %v2527 = vadd.f32 0.0, %v2526
      %v2528 = vpop.f32.mrb[0].mxu0
      %2529 = vmatprep.mubr.f32.mxu0 0.0
      %2530 = vmatmul.mubr.f32.gmra.mrb[0].mxu0 %v2348
      %v2531 = vpop.f32.mrb[0].mxu0
      %v2532 = vadd.f32 0.0, %v2531
      %v2533 = vpop.f32.mrb[0].mxu0
      %2534 = vmatprep.mubr.f32.mxu0 0.0
      %2535 = vmatmul.mubr.f32.gmra.mrb[0].mxu0 %v2351
      %v2536 = vpop.f32.mrb[0].mxu0
      %v2537 = vadd.f32 0.0, %v2536
      %v2538 = vpop.f32.mrb[0].mxu0
      %2539 = vmatprep.mubr.f32.mxu0 0.0
      %2540 = vmatmul.mubr.f32.gmra.mrb[0].mxu0 %v2354
      %v2541 = vpop.f32.mrb[0].mxu0
      %v2542 = vadd.f32 0.0, %v2541
      %v2543 = vpop.f32.mrb[0].mxu0
      %2544 = vmatprep.mubr.f32.mxu0 0.0
      %2545 = vmatmul.mubr.f32.gmra.mrb[0].mxu0 %v2357
      %v2546 = vpop.f32.mrb[0].mxu0
      %v2547 = vadd.f32 0.0, %v2546
      %v2548 = vpop.f32.mrb[0].mxu0
      %2549 = vmatprep.mubr.f32.mxu0 0.0
      %2550 = vmatmul.mubr.f32.gmra.mrb[0].mxu0 %v2360
      %v2551 = vpop.f32.mrb[0].mxu0
      %v2552 = vadd.f32 0.0, %v2551
      %v2553 = vpop.f32.mrb[0].mxu0
      %2554 = vmatprep.mubr.f32.mxu0 0.0
      %2555 = vmatmul.mubr.f32.gmra.mrb[0].mxu0 %v2363
      %v2556 = vpop.f32.mrb[0].mxu0
      %v2557 = vadd.f32 0.0, %v2556
      %v2558 = vpop.f32.mrb[0].mxu0
      %2559 = vmatprep.mubr.f32.mxu0 0.0
      %2560 = vmatmul.mubr.f32.gmra.mrb[0].mxu0 %v2366
      %v2561 = vpop.f32.mrb[0].mxu0
      %v2562 = vadd.f32 0.0, %v2561
      %v2563 = vpop.f32.mrb[0].mxu0
      %2564 = vmatprep.mubr.f32.mxu0 0.0
      %2565 = vmatmul.mubr.f32.gmra.mrb[0].mxu0 %v2369
      %v2566 = vpop.f32.mrb[0].mxu0
      %v2567 = vadd.f32 0.0, %v2566
      %v2568 = vpop.f32.mrb[0].mxu0
      %2569 = vmatprep.mubr.f32.mxu0 0.0
      %2570 = vmatmul.mubr.f32.gmra.mrb[0].mxu0 %v2372
      %v2571 = vpop.f32.mrb[0].mxu0
      %v2572 = vadd.f32 0.0, %v2571
      %v2573 = vpop.f32.mrb[0].mxu0
      %2574 = vmatprep.mubr.f32.mxu0 0.0
      %2575 = vmatmul.mubr.f32.gmra.mrb[0].mxu0 %v2375
      %v2576 = vpop.f32.mrb[0].mxu0
      %v2577 = vadd.f32 0.0, %v2576
      %v2578 = vpop.f32.mrb[0].mxu0
      %2579 = vmatprep.mubr.f32.mxu0 0.0
      %2580 = vmatmul.mubr.f32.gmra.mrb[0].mxu0 %v2378
      %v2581 = vpop.f32.mrb[0].mxu0
      %v2582 = vadd.f32 0.0, %v2581
      %v2583 = vpop.f32.mrb[0].mxu0
      %2584 = vmatprep.mubr.f32.mxu0 0.0
      %2585 = vmatmul.mubr.f32.gmra.mrb[0].mxu0 %v2381
      %v2586 = vpop.f32.mrb[0].mxu0
      %v2587 = vadd.f32 0.0, %v2586
      %v2588 = vpop.f32.mrb[0].mxu0
      %2589 = vmatprep.mubr.f32.mxu0 0.0
      %2590 = vmatmul.mubr.f32.gmra.mrb[0].mxu0 %v2384
      %v2591 = vpop.f32.mrb[0].mxu0
      %v2592 = vadd.f32 0.0, %v2591
      %v2593 = vpop.f32.mrb[0].mxu0
      %2594 = vmatprep.mubr.f32.mxu0 0.0
      %2595 = vmatmul.mubr.f32.gmra.mrb[0].mxu0 %v2387
      %v2596 = vpop.f32.mrb[0].mxu0
      %v2597 = vadd.f32 0.0, %v2596
      %v2598 = vpop.f32.mrb[0].mxu0
      %2599 = vmatprep.mubr.f32.mxu0 0.0
      %2600 = vmatmul.mubr.f32.gmra.mrb[0].mxu0 %v2390
      %v2601 = vpop.f32.mrb[0].mxu0
      %v2602 = vadd.f32 0.0, %v2601
      %v2603 = vpop.f32.mrb[0].mxu0
      %2604 = vmatprep.mubr.f32.mxu0 0.0
      %2605 = vmatmul.mubr.f32.gmra.mrb[0].mxu0 %v2393
      %v2606 = vpop.f32.mrb[0].mxu0
      %v2607 = vadd.f32 0.0, %v2606
      %v2608 = vpop.f32.mrb[0].mxu0
      %2609 = vmatprep.mubr.f32.mxu0 0.0
      %2610 = vmatmul.mubr.f32.gmra.mrb[0].mxu0 %v2396
      %v2611 = vpop.f32.mrb[0].mxu0
      %v2612 = vadd.f32 0.0, %v2611
      %v2613 = vpop.f32.mrb[0].mxu0
      %2614 = vmatprep.mubr.f32.mxu0 0.0
      %2615 = vmatmul.mubr.f32.gmra.mrb[0].mxu0 %v2399
      %v2616 = vpop.f32.mrb[0].mxu0
      %v2617 = vadd.f32 0.0, %v2616
      %v2618 = vpop.f32.mrb[0].mxu0
      %2619 = vmatprep.mubr.f32.mxu0 0.0
      %2620 = vmatmul.mubr.f32.gmra.mrb[0].mxu0 %v2402
      %v2621 = vpop.f32.mrb[0].mxu0
      %v2622 = vadd.f32 0.0, %v2621
      %v2623 = vpop.f32.mrb[0].mxu0
      %2624 = vmatprep.mubr.f32.mxu0 0.0
      %2625 = vmatmul.mubr.f32.gmra.mrb[0].mxu0 %v2405
      %v2626 = vpop.f32.mrb[0].mxu0
      %v2627 = vadd.f32 0.0, %v2626
      %v2628 = vpop.f32.mrb[0].mxu0
      %2629 = vmatprep.mubr.f32.mxu0 0.0
      %2630 = vmatmul.mubr.f32.gmra.mrb[0].mxu0 %v2408
      %v2631 = vpop.f32.mrb[0].mxu0
      %v2632 = vadd.f32 0.0, %v2631
      %v2633 = vpop.f32.mrb[0].mxu0
      %2634 = vdwg.mxu0
      %v2635 = vadd.f32 %v1994, %v2477
      %v2636 = vadd.f32 %v1999, %v2482
      %v2637 = vadd.f32 %v2004, %v2487
      %v2638 = vadd.f32 %v2009, %v2492
      %v2639 = vadd.f32 %v2014, %v2497
      %v2640 = vadd.f32 %v2019, %v2502
      %v2641 = vadd.f32 %v2024, %v2507
      %v2642 = vadd.f32 %v2029, %v2512
      %v2643 = vadd.f32 %v2034, %v2517
      %v2644 = vadd.f32 %v2039, %v2522
      %v2645 = vadd.f32 %v2044, %v2527
      %v2646 = vadd.f32 %v2049, %v2532
      %v2647 = vadd.f32 %v2054, %v2537
      %v2648 = vadd.f32 %v2059, %v2542
      %v2649 = vadd.f32 %v2064, %v2547
      %v2650 = vadd.f32 %v2069, %v2552
      %v2651 = vadd.f32 %v2074, %v2557
      %v2652 = vadd.f32 %v2079, %v2562
      %v2653 = vadd.f32 %v2084, %v2567
      %v2654 = vadd.f32 %v2089, %v2572
      %v2655 = vadd.f32 %v2094, %v2577
      %v2656 = vadd.f32 %v2099, %v2582
      %v2657 = vadd.f32 %v2104, %v2587
      %v2658 = vadd.f32 %v2109, %v2592
      %v2659 = vadd.f32 %v2114, %v2597
      %v2660 = vadd.f32 %v2119, %v2602
      %v2661 = vadd.f32 %v2124, %v2607
      %v2662 = vadd.f32 %v2129, %v2612
      %v2663 = vadd.f32 %v2134, %v2617
      %v2664 = vadd.f32 %v2139, %v2622
      %v2665 = vadd.f32 %v2144, %v2627
      %v2666 = vadd.f32 %v2149, %v2632
      %v2667 = vld [vmem:[#allocation2 + $0x17] sm:$0xff]
      %v2668 = vld [vmem:[#allocation2 + $0x1f] sm:$0xff]
      %v2669 = vld [vmem:[#allocation2 + $0x27] sm:$0xff]
      %v2670 = vld [vmem:[#allocation2 + $0x2f] sm:$0xff]
      %v2671 = vld [vmem:[#allocation2 + $0x37] sm:$0xff]
      %v2672 = vld [vmem:[#allocation2 + $0x3f] sm:$0xff]
      %v2673 = vld [vmem:[#allocation2 + $0x47] sm:$0xff]
      %v2674 = vld [vmem:[#allocation2 + $0x4f] sm:$0xff]
      %v2675 = vld [vmem:[#allocation2 + $0x57] sm:$0xff]
      %v2676 = vld [vmem:[#allocation2 + $0x5f] sm:$0xff]
      %v2677 = vld [vmem:[#allocation2 + $0x67] sm:$0xff]
      %v2678 = vld [vmem:[#allocation2 + $0x6f] sm:$0xff]
      %v2679 = vld [vmem:[#allocation2 + $0x77] sm:$0xff]
      %v2680 = vld [vmem:[#allocation2 + $0x7f] sm:$0xff]
      %v2681 = vld [vmem:[#allocation2 + $0x87] sm:$0xff]
      %v2682 = vld [vmem:[#allocation2 + $0x8f] sm:$0xff]
      %v2683 = vld [vmem:[#allocation2 + $0x97] sm:$0xff]
      %v2684 = vld [vmem:[#allocation2 + $0x9f] sm:$0xff]
      %v2685 = vld [vmem:[#allocation2 + $0xa7] sm:$0xff]
      %v2686 = vld [vmem:[#allocation2 + $0xaf] sm:$0xff]
      %v2687 = vld [vmem:[#allocation2 + $0xb7] sm:$0xff]
      %v2688 = vld [vmem:[#allocation2 + $0xbf] sm:$0xff]
      %v2689 = vld [vmem:[#allocation2 + $0xc7] sm:$0xff]
      %v2690 = vld [vmem:[#allocation2 + $0xcf] sm:$0xff]
      %v2691 = vld [vmem:[#allocation2 + $0xd7] sm:$0xff]
      %v2692 = vld [vmem:[#allocation2 + $0xdf] sm:$0xff]
      %v2693 = vld [vmem:[#allocation2 + $0xe7] sm:$0xff]
      %v2694 = vld [vmem:[#allocation2 + $0xef] sm:$0xff]
      %v2695 = vld [vmem:[#allocation2 + $0xf7] sm:$0xff]
      %v2696 = vld [vmem:[#allocation2 + $0xff] sm:$0xff]
      %v2697 = vld [vmem:[#allocation2 + $0x107] sm:$0xff]
      %v2698 = vld [vmem:[#allocation2 + $0x10f] sm:$0xff]
      %v2699 = vsel %vm1411, 0.0, %v2667
      %v2700 = vsel %vm1412, 0.0, %v2668
      %v2701 = vsel %vm1413, 0.0, %v2669
      %v2702 = vsel %vm1414, 0.0, %v2670
      %v2703 = vsel %vm1415, 0.0, %v2671
      %v2704 = vsel %vm1416, 0.0, %v2672
      %v2705 = vsel %vm1417, 0.0, %v2673
      %v2706 = vsel %vm1418, 0.0, %v2674
      %v2707 = vsel %vm1419, 0.0, %v2675
      %v2708 = vsel %vm1420, 0.0, %v2676
      %v2709 = vsel %vm1421, 0.0, %v2677
      %v2710 = vsel %vm1422, 0.0, %v2678
      %v2711 = vsel %vm1423, 0.0, %v2679
      %v2712 = vsel %vm1424, 0.0, %v2680
      %v2713 = vsel %vm1425, 0.0, %v2681
      %v2714 = vsel %vm1426, 0.0, %v2682
      %v2715 = vsel %vm1427, 0.0, %v2683
      %v2716 = vsel %vm1428, 0.0, %v2684
      %v2717 = vsel %vm1429, 0.0, %v2685
      %v2718 = vsel %vm1430, 0.0, %v2686
      %v2719 = vsel %vm1431, 0.0, %v2687
      %v2720 = vsel %vm1432, 0.0, %v2688
      %v2721 = vsel %vm1433, 0.0, %v2689
      %v2722 = vsel %vm1434, 0.0, %v2690
      %v2723 = vsel %vm1435, 0.0, %v2691
      %v2724 = vsel %vm1436, 0.0, %v2692
      %v2725 = vsel %vm1437, 0.0, %v2693
      %v2726 = vsel %vm1438, 0.0, %v2694
      %v2727 = vsel %vm1439, 0.0, %v2695
      %v2728 = vsel %vm1440, 0.0, %v2696
      %v2729 = vsel %vm1441, 0.0, %v2697
      %v2730 = vsel %vm1442, 0.0, %v2698
      %s2731 = scalar_lea.vmem %s2, 24
      %v2732 = vld [vmem:[%s2731] sm:$0xff]
      %v2734 = vsel %vm826, %v2699, 0
      %v2737 = vsel %vm826, %v2700, 0
      %v2740 = vsel %vm826, %v2701, 0
      %v2743 = vsel %vm826, %v2702, 0
      %v2746 = vsel %vm826, %v2703, 0
      %v2749 = vsel %vm826, %v2704, 0
      %v2752 = vsel %vm826, %v2705, 0
      %v2755 = vsel %vm826, %v2706, 0
      %v2758 = vsel %vm826, %v2707, 0
      %v2761 = vsel %vm826, %v2708, 0
      %v2764 = vsel %vm826, %v2709, 0
      %v2767 = vsel %vm826, %v2710, 0
      %v2770 = vsel %vm826, %v2711, 0
      %v2773 = vsel %vm826, %v2712, 0
      %v2776 = vsel %vm826, %v2713, 0
      %v2779 = vsel %vm826, %v2714, 0
      %v2782 = vsel %vm826, %v2715, 0
      %v2785 = vsel %vm826, %v2716, 0
      %v2788 = vsel %vm826, %v2717, 0
      %v2791 = vsel %vm826, %v2718, 0
      %v2794 = vsel %vm826, %v2719, 0
      %v2797 = vsel %vm826, %v2720, 0
      %v2800 = vsel %vm826, %v2721, 0
      %v2803 = vsel %vm826, %v2722, 0
      %v2806 = vsel %vm826, %v2723, 0
      %v2809 = vsel %vm826, %v2724, 0
      %v2812 = vsel %vm826, %v2725, 0
      %v2815 = vsel %vm826, %v2726, 0
      %v2818 = vsel %vm826, %v2727, 0
      %v2821 = vsel %vm826, %v2728, 0
      %v2824 = vsel %vm826, %v2729, 0
      %v2827 = vsel %vm826, %v2730, 0
      %2829 = vmatprep.subr.mxu0 0.0
      %2830 = vmatpush1.msra.mxu0 %v2732
      %2831 = vmatprep.subr.mxu0 0.0
      %2832 = vmatpush1.msra.mxu0 0.0
      %2833 = vmatprep.subr.mxu0 0.0
      %2834 = vmatpush1.msra.mxu0 0.0
      %2835 = vmatprep.subr.mxu0 0.0
      %2836 = vmatpush1.msra.mxu0 0.0
      %2837 = vmatprep.subr.mxu0 0.0
      %2838 = vmatpush1.msra.mxu0 0.0
      %2839 = vmatprep.subr.mxu0 0.0
      %2840 = vmatpush1.msra.mxu0 0.0
      %2841 = vmatprep.subr.mxu0 0.0
      %2842 = vmatpush1.msra.mxu0 0.0
      %2843 = vmatprep.subr.mxu0 0.0
      %2844 = vmatpush1.msra.mxu0 0.0
      %2845 = vmatprep.subr.mxu0 0.0
      %2846 = vmatpush1.msra.mxu0 0.0
      %2847 = vmatprep.subr.mxu0 0.0
      %2848 = vmatpush1.msra.mxu0 0.0
      %2849 = vmatprep.subr.mxu0 0.0
      %2850 = vmatpush1.msra.mxu0 0.0
      %2851 = vmatprep.subr.mxu0 0.0
      %2852 = vmatpush1.msra.mxu0 0.0
      %2853 = vmatprep.subr.mxu0 0.0
      %2854 = vmatpush1.msra.mxu0 0.0
      %2855 = vmatprep.subr.mxu0 0.0
      %2856 = vmatpush1.msra.mxu0 0.0
      %2857 = vmatprep.subr.mxu0 0.0
      %2858 = vmatpush1.msra.mxu0 0.0
      %2859 = vmatprep.subr.mxu0 0.0
      %2860 = vmatpush1.msra.mxu0 0.0
      %2861 = vmatprep.subr.mxu0 0.0
      %2862 = vmatpush1.msra.mxu0 0.0
      %2863 = vmatprep.subr.mxu0 0.0
      %2864 = vmatpush1.msra.mxu0 0.0
      %2865 = vmatprep.subr.mxu0 0.0
      %2866 = vmatpush1.msra.mxu0 0.0
      %2867 = vmatprep.subr.mxu0 0.0
      %2868 = vmatpush1.msra.mxu0 0.0
      %2869 = vmatprep.subr.mxu0 0.0
      %2870 = vmatpush1.msra.mxu0 0.0
      %2871 = vmatprep.subr.mxu0 0.0
      %2872 = vmatpush1.msra.mxu0 0.0
      %2873 = vmatprep.subr.mxu0 0.0
      %2874 = vmatpush1.msra.mxu0 0.0
      %2875 = vmatprep.subr.mxu0 0.0
      %2876 = vmatpush1.msra.mxu0 0.0
      %2877 = vmatprep.subr.mxu0 0.0
      %2878 = vmatpush1.msra.mxu0 0.0
      %2879 = vmatprep.subr.mxu0 0.0
      %2880 = vmatpush1.msra.mxu0 0.0
      %2881 = vmatprep.subr.mxu0 0.0
      %2882 = vmatpush1.msra.mxu0 0.0
      %2883 = vmatprep.subr.mxu0 0.0
      %2884 = vmatpush1.msra.mxu0 0.0
      %2885 = vmatprep.subr.mxu0 0.0
      %2886 = vmatpush1.msra.mxu0 0.0
      %2887 = vmatprep.subr.mxu0 0.0
      %2888 = vmatpush1.msra.mxu0 0.0
      %2889 = vmatprep.subr.mxu0 0.0
      %2890 = vmatpush1.msra.mxu0 0.0
      %2891 = vmatprep.subr.mxu0 0.0
      %2892 = vmatpush1.msra.mxu0 0.0
      %2893 = vmatprep.mubr.f32.mxu0 0.0
      %2894 = vmatmul.mubr.f32.gmra.mrb[0].mxu0 %v2734
      %v2895 = vpop.f32.mrb[0].mxu0
      %v2896 = vadd.f32 0.0, %v2895
      %v2897 = vpop.f32.mrb[0].mxu0
      %2898 = vmatprep.mubr.f32.mxu0 0.0
      %2899 = vmatmul.mubr.f32.gmra.mrb[0].mxu0 %v2737
      %v2900 = vpop.f32.mrb[0].mxu0
      %v2901 = vadd.f32 0.0, %v2900
      %v2902 = vpop.f32.mrb[0].mxu0
      %2903 = vmatprep.mubr.f32.mxu0 0.0
      %2904 = vmatmul.mubr.f32.gmra.mrb[0].mxu0 %v2740
      %v2905 = vpop.f32.mrb[0].mxu0
      %v2906 = vadd.f32 0.0, %v2905
      %v2907 = vpop.f32.mrb[0].mxu0
      %2908 = vmatprep.mubr.f32.mxu0 0.0
      %2909 = vmatmul.mubr.f32.gmra.mrb[0].mxu0 %v2743
      %v2910 = vpop.f32.mrb[0].mxu0
      %v2911 = vadd.f32 0.0, %v2910
      %v2912 = vpop.f32.mrb[0].mxu0
      %2913 = vmatprep.mubr.f32.mxu0 0.0
      %2914 = vmatmul.mubr.f32.gmra.mrb[0].mxu0 %v2746
      %v2915 = vpop.f32.mrb[0].mxu0
      %v2916 = vadd.f32 0.0, %v2915
      %v2917 = vpop.f32.mrb[0].mxu0
      %2918 = vmatprep.mubr.f32.mxu0 0.0
      %2919 = vmatmul.mubr.f32.gmra.mrb[0].mxu0 %v2749
      %v2920 = vpop.f32.mrb[0].mxu0
      %v2921 = vadd.f32 0.0, %v2920
      %v2922 = vpop.f32.mrb[0].mxu0
      %2923 = vmatprep.mubr.f32.mxu0 0.0
      %2924 = vmatmul.mubr.f32.gmra.mrb[0].mxu0 %v2752
      %v2925 = vpop.f32.mrb[0].mxu0
      %v2926 = vadd.f32 0.0, %v2925
      %v2927 = vpop.f32.mrb[0].mxu0
      %2928 = vmatprep.mubr.f32.mxu0 0.0
      %2929 = vmatmul.mubr.f32.gmra.mrb[0].mxu0 %v2755
      %v2930 = vpop.f32.mrb[0].mxu0
      %v2931 = vadd.f32 0.0, %v2930
      %v2932 = vpop.f32.mrb[0].mxu0
      %2933 = vmatprep.mubr.f32.mxu0 0.0
      %2934 = vmatmul.mubr.f32.gmra.mrb[0].mxu0 %v2758
      %v2935 = vpop.f32.mrb[0].mxu0
      %v2936 = vadd.f32 0.0, %v2935
      %v2937 = vpop.f32.mrb[0].mxu0
      %2938 = vmatprep.mubr.f32.mxu0 0.0
      %2939 = vmatmul.mubr.f32.gmra.mrb[0].mxu0 %v2761
      %v2940 = vpop.f32.mrb[0].mxu0
      %v2941 = vadd.f32 0.0, %v2940
      %v2942 = vpop.f32.mrb[0].mxu0
      %2943 = vmatprep.mubr.f32.mxu0 0.0
      %2944 = vmatmul.mubr.f32.gmra.mrb[0].mxu0 %v2764
      %v2945 = vpop.f32.mrb[0].mxu0
      %v2946 = vadd.f32 0.0, %v2945
      %v2947 = vpop.f32.mrb[0].mxu0
      %2948 = vmatprep.mubr.f32.mxu0 0.0
      %2949 = vmatmul.mubr.f32.gmra.mrb[0].mxu0 %v2767
      %v2950 = vpop.f32.mrb[0].mxu0
      %v2951 = vadd.f32 0.0, %v2950
      %v2952 = vpop.f32.mrb[0].mxu0
      %2953 = vmatprep.mubr.f32.mxu0 0.0
      %2954 = vmatmul.mubr.f32.gmra.mrb[0].mxu0 %v2770
      %v2955 = vpop.f32.mrb[0].mxu0
      %v2956 = vadd.f32 0.0, %v2955
      %v2957 = vpop.f32.mrb[0].mxu0
      %2958 = vmatprep.mubr.f32.mxu0 0.0
      %2959 = vmatmul.mubr.f32.gmra.mrb[0].mxu0 %v2773
      %v2960 = vpop.f32.mrb[0].mxu0
      %v2961 = vadd.f32 0.0, %v2960
      %v2962 = vpop.f32.mrb[0].mxu0
      %2963 = vmatprep.mubr.f32.mxu0 0.0
      %2964 = vmatmul.mubr.f32.gmra.mrb[0].mxu0 %v2776
      %v2965 = vpop.f32.mrb[0].mxu0
      %v2966 = vadd.f32 0.0, %v2965
      %v2967 = vpop.f32.mrb[0].mxu0
      %2968 = vmatprep.mubr.f32.mxu0 0.0
      %2969 = vmatmul.mubr.f32.gmra.mrb[0].mxu0 %v2779
      %v2970 = vpop.f32.mrb[0].mxu0
      %v2971 = vadd.f32 0.0, %v2970
      %v2972 = vpop.f32.mrb[0].mxu0
      %2973 = vmatprep.mubr.f32.mxu0 0.0
      %2974 = vmatmul.mubr.f32.gmra.mrb[0].mxu0 %v2782
      %v2975 = vpop.f32.mrb[0].mxu0
      %v2976 = vadd.f32 0.0, %v2975
      %v2977 = vpop.f32.mrb[0].mxu0
      %2978 = vmatprep.mubr.f32.mxu0 0.0
      %2979 = vmatmul.mubr.f32.gmra.mrb[0].mxu0 %v2785
      %v2980 = vpop.f32.mrb[0].mxu0
      %v2981 = vadd.f32 0.0, %v2980
      %v2982 = vpop.f32.mrb[0].mxu0
      %2983 = vmatprep.mubr.f32.mxu0 0.0
      %2984 = vmatmul.mubr.f32.gmra.mrb[0].mxu0 %v2788
      %v2985 = vpop.f32.mrb[0].mxu0
      %v2986 = vadd.f32 0.0, %v2985
      %v2987 = vpop.f32.mrb[0].mxu0
      %2988 = vmatprep.mubr.f32.mxu0 0.0
      %2989 = vmatmul.mubr.f32.gmra.mrb[0].mxu0 %v2791
      %v2990 = vpop.f32.mrb[0].mxu0
      %v2991 = vadd.f32 0.0, %v2990
      %v2992 = vpop.f32.mrb[0].mxu0
      %2993 = vmatprep.mubr.f32.mxu0 0.0
      %2994 = vmatmul.mubr.f32.gmra.mrb[0].mxu0 %v2794
      %v2995 = vpop.f32.mrb[0].mxu0
      %v2996 = vadd.f32 0.0, %v2995
      %v2997 = vpop.f32.mrb[0].mxu0
      %2998 = vmatprep.mubr.f32.mxu0 0.0
      %2999 = vmatmul.mubr.f32.gmra.mrb[0].mxu0 %v2797
      %v3000 = vpop.f32.mrb[0].mxu0
      %v3001 = vadd.f32 0.0, %v3000
      %v3002 = vpop.f32.mrb[0].mxu0
      %3003 = vmatprep.mubr.f32.mxu0 0.0
      %3004 = vmatmul.mubr.f32.gmra.mrb[0].mxu0 %v2800
      %v3005 = vpop.f32.mrb[0].mxu0
      %v3006 = vadd.f32 0.0, %v3005
      %v3007 = vpop.f32.mrb[0].mxu0
      %3008 = vmatprep.mubr.f32.mxu0 0.0
      %3009 = vmatmul.mubr.f32.gmra.mrb[0].mxu0 %v2803
      %v3010 = vpop.f32.mrb[0].mxu0
      %v3011 = vadd.f32 0.0, %v3010
      %v3012 = vpop.f32.mrb[0].mxu0
      %3013 = vmatprep.mubr.f32.mxu0 0.0
      %3014 = vmatmul.mubr.f32.gmra.mrb[0].mxu0 %v2806
      %v3015 = vpop.f32.mrb[0].mxu0
      %v3016 = vadd.f32 0.0, %v3015
      %v3017 = vpop.f32.mrb[0].mxu0
      %3018 = vmatprep.mubr.f32.mxu0 0.0
      %3019 = vmatmul.mubr.f32.gmra.mrb[0].mxu0 %v2809
      %v3020 = vpop.f32.mrb[0].mxu0
      %v3021 = vadd.f32 0.0, %v3020
      %v3022 = vpop.f32.mrb[0].mxu0
      %3023 = vmatprep.mubr.f32.mxu0 0.0
      %3024 = vmatmul.mubr.f32.gmra.mrb[0].mxu0 %v2812
      %v3025 = vpop.f32.mrb[0].mxu0
      %v3026 = vadd.f32 0.0, %v3025
      %v3027 = vpop.f32.mrb[0].mxu0
      %3028 = vmatprep.mubr.f32.mxu0 0.0
      %3029 = vmatmul.mubr.f32.gmra.mrb[0].mxu0 %v2815
      %v3030 = vpop.f32.mrb[0].mxu0
      %v3031 = vadd.f32 0.0, %v3030
      %v3032 = vpop.f32.mrb[0].mxu0
      %3033 = vmatprep.mubr.f32.mxu0 0.0
      %3034 = vmatmul.mubr.f32.gmra.mrb[0].mxu0 %v2818
      %v3035 = vpop.f32.mrb[0].mxu0
      %v3036 = vadd.f32 0.0, %v3035
      %v3037 = vpop.f32.mrb[0].mxu0
      %3038 = vmatprep.mubr.f32.mxu0 0.0
      %3039 = vmatmul.mubr.f32.gmra.mrb[0].mxu0 %v2821
      %v3040 = vpop.f32.mrb[0].mxu0
      %v3041 = vadd.f32 0.0, %v3040
      %v3042 = vpop.f32.mrb[0].mxu0
      %3043 = vmatprep.mubr.f32.mxu0 0.0
      %3044 = vmatmul.mubr.f32.gmra.mrb[0].mxu0 %v2824
      %v3045 = vpop.f32.mrb[0].mxu0
      %v3046 = vadd.f32 0.0, %v3045
      %v3047 = vpop.f32.mrb[0].mxu0
      %3048 = vmatprep.mubr.f32.mxu0 0.0
      %3049 = vmatmul.mubr.f32.gmra.mrb[0].mxu0 %v2827
      %v3050 = vpop.f32.mrb[0].mxu0
      %v3051 = vadd.f32 0.0, %v3050
      %v3052 = vpop.f32.mrb[0].mxu0
      %3053 = vdwg.mxu0
      %v3054 = vadd.f32 %v2635, %v2896
      %v3055 = vadd.f32 %v2636, %v2901
      %v3056 = vadd.f32 %v2637, %v2906
      %v3057 = vadd.f32 %v2638, %v2911
      %v3058 = vadd.f32 %v2639, %v2916
      %v3059 = vadd.f32 %v2640, %v2921
      %v3060 = vadd.f32 %v2641, %v2926
      %v3061 = vadd.f32 %v2642, %v2931
      %v3062 = vadd.f32 %v2643, %v2936
      %v3063 = vadd.f32 %v2644, %v2941
      %v3064 = vadd.f32 %v2645, %v2946
      %v3065 = vadd.f32 %v2646, %v2951
      %v3066 = vadd.f32 %v2647, %v2956
      %v3067 = vadd.f32 %v2648, %v2961
      %v3068 = vadd.f32 %v2649, %v2966
      %v3069 = vadd.f32 %v2650, %v2971
      %v3070 = vadd.f32 %v2651, %v2976
      %v3071 = vadd.f32 %v2652, %v2981
      %v3072 = vadd.f32 %v2653, %v2986
      %v3073 = vadd.f32 %v2654, %v2991
      %v3074 = vadd.f32 %v2655, %v2996
      %v3075 = vadd.f32 %v2656, %v3001
      %v3076 = vadd.f32 %v2657, %v3006
      %v3077 = vadd.f32 %v2658, %v3011
      %v3078 = vadd.f32 %v2659, %v3016
      %v3079 = vadd.f32 %v2660, %v3021
      %v3080 = vadd.f32 %v2661, %v3026
      %v3081 = vadd.f32 %v2662, %v3031
      %v3082 = vadd.f32 %v2663, %v3036
      %v3083 = vadd.f32 %v2664, %v3041
      %v3084 = vadd.f32 %v2665, %v3046
      %v3085 = vadd.f32 %v2666, %v3051
      %v3086 = vld [vmem:[#allocation2 + $0x18] sm:$0xff]
      %v3087 = vld [vmem:[#allocation2 + $0x20] sm:$0xff]
      %v3088 = vld [vmem:[#allocation2 + $0x28] sm:$0xff]
      %v3089 = vld [vmem:[#allocation2 + $0x30] sm:$0xff]
      %v3090 = vld [vmem:[#allocation2 + $0x38] sm:$0xff]
      %v3091 = vld [vmem:[#allocation2 + $0x40] sm:$0xff]
      %v3092 = vld [vmem:[#allocation2 + $0x48] sm:$0xff]
      %v3093 = vld [vmem:[#allocation2 + $0x50] sm:$0xff]
      %v3094 = vld [vmem:[#allocation2 + $0x58] sm:$0xff]
      %v3095 = vld [vmem:[#allocation2 + $0x60] sm:$0xff]
      %v3096 = vld [vmem:[#allocation2 + $0x68] sm:$0xff]
      %v3097 = vld [vmem:[#allocation2 + $0x70] sm:$0xff]
      %v3098 = vld [vmem:[#allocation2 + $0x78] sm:$0xff]
      %v3099 = vld [vmem:[#allocation2 + $0x80] sm:$0xff]
      %v3100 = vld [vmem:[#allocation2 + $0x88] sm:$0xff]
      %v3101 = vld [vmem:[#allocation2 + $0x90] sm:$0xff]
      %v3102 = vld [vmem:[#allocation2 + $0x98] sm:$0xff]
      %v3103 = vld [vmem:[#allocation2 + $0xa0] sm:$0xff]
      %v3104 = vld [vmem:[#allocation2 + $0xa8] sm:$0xff]
      %v3105 = vld [vmem:[#allocation2 + $0xb0] sm:$0xff]
      %v3106 = vld [vmem:[#allocation2 + $0xb8] sm:$0xff]
      %v3107 = vld [vmem:[#allocation2 + $0xc0] sm:$0xff]
      %v3108 = vld [vmem:[#allocation2 + $0xc8] sm:$0xff]
      %v3109 = vld [vmem:[#allocation2 + $0xd0] sm:$0xff]
      %v3110 = vld [vmem:[#allocation2 + $0xd8] sm:$0xff]
      %v3111 = vld [vmem:[#allocation2 + $0xe0] sm:$0xff]
      %v3112 = vld [vmem:[#allocation2 + $0xe8] sm:$0xff]
      %v3113 = vld [vmem:[#allocation2 + $0xf0] sm:$0xff]
      %v3114 = vld [vmem:[#allocation2 + $0xf8] sm:$0xff]
      %v3115 = vld [vmem:[#allocation2 + $0x100] sm:$0xff]
      %v3116 = vld [vmem:[#allocation2 + $0x108] sm:$0xff]
      %v3117 = vld [vmem:[#allocation2 + $0x110] sm:$0xff]
      %s3118 = scalar_lea.vmem %s2, 32
      %v3119 = vld [vmem:[%s3118] sm:$0xff]
      %v3121 = vsel %vm826, %v3086, 0
      %v3124 = vsel %vm826, %v3087, 0
      %v3127 = vsel %vm826, %v3088, 0
      %v3130 = vsel %vm826, %v3089, 0
      %v3133 = vsel %vm826, %v3090, 0
      %v3136 = vsel %vm826, %v3091, 0
      %v3139 = vsel %vm826, %v3092, 0
      %v3142 = vsel %vm826, %v3093, 0
      %v3145 = vsel %vm826, %v3094, 0
      %v3148 = vsel %vm826, %v3095, 0
      %v3151 = vsel %vm826, %v3096, 0
      %v3154 = vsel %vm826, %v3097, 0
      %v3157 = vsel %vm826, %v3098, 0
      %v3160 = vsel %vm826, %v3099, 0
      %v3163 = vsel %vm826, %v3100, 0
      %v3166 = vsel %vm826, %v3101, 0
      %v3169 = vsel %vm826, %v3102, 0
      %v3172 = vsel %vm826, %v3103, 0
      %v3175 = vsel %vm826, %v3104, 0
      %v3178 = vsel %vm826, %v3105, 0
      %v3181 = vsel %vm826, %v3106, 0
      %v3184 = vsel %vm826, %v3107, 0
      %v3187 = vsel %vm826, %v3108, 0
      %v3190 = vsel %vm826, %v3109, 0
      %v3193 = vsel %vm826, %v3110, 0
      %v3196 = vsel %vm826, %v3111, 0
      %v3199 = vsel %vm826, %v3112, 0
      %v3202 = vsel %vm826, %v3113, 0
      %v3205 = vsel %vm826, %v3114, 0
      %v3208 = vsel %vm826, %v3115, 0
      %v3211 = vsel %vm826, %v3116, 0
      %v3214 = vsel %vm826, %v3117, 0
      %3216 = vmatprep.subr.mxu0 0.0
      %3217 = vmatpush1.msra.mxu0 %v3119
      %3218 = vmatprep.subr.mxu0 0.0
      %3219 = vmatpush1.msra.mxu0 0.0
      %3220 = vmatprep.subr.mxu0 0.0
      %3221 = vmatpush1.msra.mxu0 0.0
      %3222 = vmatprep.subr.mxu0 0.0
      %3223 = vmatpush1.msra.mxu0 0.0
      %3224 = vmatprep.subr.mxu0 0.0
      %3225 = vmatpush1.msra.mxu0 0.0
      %3226 = vmatprep.subr.mxu0 0.0
      %3227 = vmatpush1.msra.mxu0 0.0
      %3228 = vmatprep.subr.mxu0 0.0
      %3229 = vmatpush1.msra.mxu0 0.0
      %3230 = vmatprep.subr.mxu0 0.0
      %3231 = vmatpush1.msra.mxu0 0.0
      %3232 = vmatprep.subr.mxu0 0.0
      %3233 = vmatpush1.msra.mxu0 0.0
      %3234 = vmatprep.subr.mxu0 0.0
      %3235 = vmatpush1.msra.mxu0 0.0
      %3236 = vmatprep.subr.mxu0 0.0
      %3237 = vmatpush1.msra.mxu0 0.0
      %3238 = vmatprep.subr.mxu0 0.0
      %3239 = vmatpush1.msra.mxu0 0.0
      %3240 = vmatprep.subr.mxu0 0.0
      %3241 = vmatpush1.msra.mxu0 0.0
      %3242 = vmatprep.subr.mxu0 0.0
      %3243 = vmatpush1.msra.mxu0 0.0
      %3244 = vmatprep.subr.mxu0 0.0
      %3245 = vmatpush1.msra.mxu0 0.0
      %3246 = vmatprep.subr.mxu0 0.0
      %3247 = vmatpush1.msra.mxu0 0.0
      %3248 = vmatprep.subr.mxu0 0.0
      %3249 = vmatpush1.msra.mxu0 0.0
      %3250 = vmatprep.subr.mxu0 0.0
      %3251 = vmatpush1.msra.mxu0 0.0
      %3252 = vmatprep.subr.mxu0 0.0
      %3253 = vmatpush1.msra.mxu0 0.0
      %3254 = vmatprep.subr.mxu0 0.0
      %3255 = vmatpush1.msra.mxu0 0.0
      %3256 = vmatprep.subr.mxu0 0.0
      %3257 = vmatpush1.msra.mxu0 0.0
      %3258 = vmatprep.subr.mxu0 0.0
      %3259 = vmatpush1.msra.mxu0 0.0
      %3260 = vmatprep.subr.mxu0 0.0
      %3261 = vmatpush1.msra.mxu0 0.0
      %3262 = vmatprep.subr.mxu0 0.0
      %3263 = vmatpush1.msra.mxu0 0.0
      %3264 = vmatprep.subr.mxu0 0.0
      %3265 = vmatpush1.msra.mxu0 0.0
      %3266 = vmatprep.subr.mxu0 0.0
      %3267 = vmatpush1.msra.mxu0 0.0
      %3268 = vmatprep.subr.mxu0 0.0
      %3269 = vmatpush1.msra.mxu0 0.0
      %3270 = vmatprep.subr.mxu0 0.0
      %3271 = vmatpush1.msra.mxu0 0.0
      %3272 = vmatprep.subr.mxu0 0.0
      %3273 = vmatpush1.msra.mxu0 0.0
      %3274 = vmatprep.subr.mxu0 0.0
      %3275 = vmatpush1.msra.mxu0 0.0
      %3276 = vmatprep.subr.mxu0 0.0
      %3277 = vmatpush1.msra.mxu0 0.0
      %3278 = vmatprep.subr.mxu0 0.0
      %3279 = vmatpush1.msra.mxu0 0.0
      %3280 = vmatprep.mubr.f32.mxu0 0.0
      %3281 = vmatmul.mubr.f32.gmra.mrb[0].mxu0 %v3121
      %v3282 = vpop.f32.mrb[0].mxu0
      %v3283 = vadd.f32 0.0, %v3282
      %v3284 = vpop.f32.mrb[0].mxu0
      %3285 = vmatprep.mubr.f32.mxu0 0.0
      %3286 = vmatmul.mubr.f32.gmra.mrb[0].mxu0 %v3124
      %v3287 = vpop.f32.mrb[0].mxu0
      %v3288 = vadd.f32 0.0, %v3287
      %v3289 = vpop.f32.mrb[0].mxu0
      %3290 = vmatprep.mubr.f32.mxu0 0.0
      %3291 = vmatmul.mubr.f32.gmra.mrb[0].mxu0 %v3127
      %v3292 = vpop.f32.mrb[0].mxu0
      %v3293 = vadd.f32 0.0, %v3292
      %v3294 = vpop.f32.mrb[0].mxu0
      %3295 = vmatprep.mubr.f32.mxu0 0.0
      %3296 = vmatmul.mubr.f32.gmra.mrb[0].mxu0 %v3130
      %v3297 = vpop.f32.mrb[0].mxu0
      %v3298 = vadd.f32 0.0, %v3297
      %v3299 = vpop.f32.mrb[0].mxu0
      %3300 = vmatprep.mubr.f32.mxu0 0.0
      %3301 = vmatmul.mubr.f32.gmra.mrb[0].mxu0 %v3133
      %v3302 = vpop.f32.mrb[0].mxu0
      %v3303 = vadd.f32 0.0, %v3302
      %v3304 = vpop.f32.mrb[0].mxu0
      %3305 = vmatprep.mubr.f32.mxu0 0.0
      %3306 = vmatmul.mubr.f32.gmra.mrb[0].mxu0 %v3136
      %v3307 = vpop.f32.mrb[0].mxu0
      %v3308 = vadd.f32 0.0, %v3307
      %v3309 = vpop.f32.mrb[0].mxu0
      %3310 = vmatprep.mubr.f32.mxu0 0.0
      %3311 = vmatmul.mubr.f32.gmra.mrb[0].mxu0 %v3139
      %v3312 = vpop.f32.mrb[0].mxu0
      %v3313 = vadd.f32 0.0, %v3312
      %v3314 = vpop.f32.mrb[0].mxu0
      %3315 = vmatprep.mubr.f32.mxu0 0.0
      %3316 = vmatmul.mubr.f32.gmra.mrb[0].mxu0 %v3142
      %v3317 = vpop.f32.mrb[0].mxu0
      %v3318 = vadd.f32 0.0, %v3317
      %v3319 = vpop.f32.mrb[0].mxu0
      %3320 = vmatprep.mubr.f32.mxu0 0.0
      %3321 = vmatmul.mubr.f32.gmra.mrb[0].mxu0 %v3145
      %v3322 = vpop.f32.mrb[0].mxu0
      %v3323 = vadd.f32 0.0, %v3322
      %v3324 = vpop.f32.mrb[0].mxu0
      %3325 = vmatprep.mubr.f32.mxu0 0.0
      %3326 = vmatmul.mubr.f32.gmra.mrb[0].mxu0 %v3148
      %v3327 = vpop.f32.mrb[0].mxu0
      %v3328 = vadd.f32 0.0, %v3327
      %v3329 = vpop.f32.mrb[0].mxu0
      %3330 = vmatprep.mubr.f32.mxu0 0.0
      %3331 = vmatmul.mubr.f32.gmra.mrb[0].mxu0 %v3151
      %v3332 = vpop.f32.mrb[0].mxu0
      %v3333 = vadd.f32 0.0, %v3332
      %v3334 = vpop.f32.mrb[0].mxu0
      %3335 = vmatprep.mubr.f32.mxu0 0.0
      %3336 = vmatmul.mubr.f32.gmra.mrb[0].mxu0 %v3154
      %v3337 = vpop.f32.mrb[0].mxu0
      %v3338 = vadd.f32 0.0, %v3337
      %v3339 = vpop.f32.mrb[0].mxu0
      %3340 = vmatprep.mubr.f32.mxu0 0.0
      %3341 = vmatmul.mubr.f32.gmra.mrb[0].mxu0 %v3157
      %v3342 = vpop.f32.mrb[0].mxu0
      %v3343 = vadd.f32 0.0, %v3342
      %v3344 = vpop.f32.mrb[0].mxu0
      %3345 = vmatprep.mubr.f32.mxu0 0.0
      %3346 = vmatmul.mubr.f32.gmra.mrb[0].mxu0 %v3160
      %v3347 = vpop.f32.mrb[0].mxu0
      %v3348 = vadd.f32 0.0, %v3347
      %v3349 = vpop.f32.mrb[0].mxu0
      %3350 = vmatprep.mubr.f32.mxu0 0.0
      %3351 = vmatmul.mubr.f32.gmra.mrb[0].mxu0 %v3163
      %v3352 = vpop.f32.mrb[0].mxu0
      %v3353 = vadd.f32 0.0, %v3352
      %v3354 = vpop.f32.mrb[0].mxu0
      %3355 = vmatprep.mubr.f32.mxu0 0.0
      %3356 = vmatmul.mubr.f32.gmra.mrb[0].mxu0 %v3166
      %v3357 = vpop.f32.mrb[0].mxu0
      %v3358 = vadd.f32 0.0, %v3357
      %v3359 = vpop.f32.mrb[0].mxu0
      %3360 = vmatprep.mubr.f32.mxu0 0.0
      %3361 = vmatmul.mubr.f32.gmra.mrb[0].mxu0 %v3169
      %v3362 = vpop.f32.mrb[0].mxu0
      %v3363 = vadd.f32 0.0, %v3362
      %v3364 = vpop.f32.mrb[0].mxu0
      %3365 = vmatprep.mubr.f32.mxu0 0.0
      %3366 = vmatmul.mubr.f32.gmra.mrb[0].mxu0 %v3172
      %v3367 = vpop.f32.mrb[0].mxu0
      %v3368 = vadd.f32 0.0, %v3367
      %v3369 = vpop.f32.mrb[0].mxu0
      %3370 = vmatprep.mubr.f32.mxu0 0.0
      %3371 = vmatmul.mubr.f32.gmra.mrb[0].mxu0 %v3175
      %v3372 = vpop.f32.mrb[0].mxu0
      %v3373 = vadd.f32 0.0, %v3372
      %v3374 = vpop.f32.mrb[0].mxu0
      %3375 = vmatprep.mubr.f32.mxu0 0.0
      %3376 = vmatmul.mubr.f32.gmra.mrb[0].mxu0 %v3178
      %v3377 = vpop.f32.mrb[0].mxu0
      %v3378 = vadd.f32 0.0, %v3377
      %v3379 = vpop.f32.mrb[0].mxu0
      %3380 = vmatprep.mubr.f32.mxu0 0.0
      %3381 = vmatmul.mubr.f32.gmra.mrb[0].mxu0 %v3181
      %v3382 = vpop.f32.mrb[0].mxu0
      %v3383 = vadd.f32 0.0, %v3382
      %v3384 = vpop.f32.mrb[0].mxu0
      %3385 = vmatprep.mubr.f32.mxu0 0.0
      %3386 = vmatmul.mubr.f32.gmra.mrb[0].mxu0 %v3184
      %v3387 = vpop.f32.mrb[0].mxu0
      %v3388 = vadd.f32 0.0, %v3387
      %v3389 = vpop.f32.mrb[0].mxu0
      %3390 = vmatprep.mubr.f32.mxu0 0.0
      %3391 = vmatmul.mubr.f32.gmra.mrb[0].mxu0 %v3187
      %v3392 = vpop.f32.mrb[0].mxu0
      %v3393 = vadd.f32 0.0, %v3392
      %v3394 = vpop.f32.mrb[0].mxu0
      %3395 = vmatprep.mubr.f32.mxu0 0.0
      %3396 = vmatmul.mubr.f32.gmra.mrb[0].mxu0 %v3190
      %v3397 = vpop.f32.mrb[0].mxu0
      %v3398 = vadd.f32 0.0, %v3397
      %v3399 = vpop.f32.mrb[0].mxu0
      %3400 = vmatprep.mubr.f32.mxu0 0.0
      %3401 = vmatmul.mubr.f32.gmra.mrb[0].mxu0 %v3193
      %v3402 = vpop.f32.mrb[0].mxu0
      %v3403 = vadd.f32 0.0, %v3402
      %v3404 = vpop.f32.mrb[0].mxu0
      %3405 = vmatprep.mubr.f32.mxu0 0.0
      %3406 = vmatmul.mubr.f32.gmra.mrb[0].mxu0 %v3196
      %v3407 = vpop.f32.mrb[0].mxu0
      %v3408 = vadd.f32 0.0, %v3407
      %v3409 = vpop.f32.mrb[0].mxu0
      %3410 = vmatprep.mubr.f32.mxu0 0.0
      %3411 = vmatmul.mubr.f32.gmra.mrb[0].mxu0 %v3199
      %v3412 = vpop.f32.mrb[0].mxu0
      %v3413 = vadd.f32 0.0, %v3412
      %v3414 = vpop.f32.mrb[0].mxu0
      %3415 = vmatprep.mubr.f32.mxu0 0.0
      %3416 = vmatmul.mubr.f32.gmra.mrb[0].mxu0 %v3202
      %v3417 = vpop.f32.mrb[0].mxu0
      %v3418 = vadd.f32 0.0, %v3417
      %v3419 = vpop.f32.mrb[0].mxu0
      %3420 = vmatprep.mubr.f32.mxu0 0.0
      %3421 = vmatmul.mubr.f32.gmra.mrb[0].mxu0 %v3205
      %v3422 = vpop.f32.mrb[0].mxu0
      %v3423 = vadd.f32 0.0, %v3422
      %v3424 = vpop.f32.mrb[0].mxu0
      %3425 = vmatprep.mubr.f32.mxu0 0.0
      %3426 = vmatmul.mubr.f32.gmra.mrb[0].mxu0 %v3208
      %v3427 = vpop.f32.mrb[0].mxu0
      %v3428 = vadd.f32 0.0, %v3427
      %v3429 = vpop.f32.mrb[0].mxu0
      %3430 = vmatprep.mubr.f32.mxu0 0.0
      %3431 = vmatmul.mubr.f32.gmra.mrb[0].mxu0 %v3211
      %v3432 = vpop.f32.mrb[0].mxu0
      %v3433 = vadd.f32 0.0, %v3432
      %v3434 = vpop.f32.mrb[0].mxu0
      %3435 = vmatprep.mubr.f32.mxu0 0.0
      %3436 = vmatmul.mubr.f32.gmra.mrb[0].mxu0 %v3214
      %v3437 = vpop.f32.mrb[0].mxu0
      %v3438 = vadd.f32 0.0, %v3437
      %v3439 = vpop.f32.mrb[0].mxu0
      %3440 = vdwg.mxu0
      %v3441 = vadd.f32 %v3054, %v3283
      %v3442 = vadd.f32 %v3055, %v3288
      %v3443 = vadd.f32 %v3056, %v3293
      %v3444 = vadd.f32 %v3057, %v3298
      %v3445 = vadd.f32 %v3058, %v3303
      %v3446 = vadd.f32 %v3059, %v3308
      %v3447 = vadd.f32 %v3060, %v3313
      %v3448 = vadd.f32 %v3061, %v3318
      %v3449 = vadd.f32 %v3062, %v3323
      %v3450 = vadd.f32 %v3063, %v3328
      %v3451 = vadd.f32 %v3064, %v3333
      %v3452 = vadd.f32 %v3065, %v3338
      %v3453 = vadd.f32 %v3066, %v3343
      %v3454 = vadd.f32 %v3067, %v3348
      %v3455 = vadd.f32 %v3068, %v3353
      %v3456 = vadd.f32 %v3069, %v3358
      %v3457 = vadd.f32 %v3070, %v3363
      %v3458 = vadd.f32 %v3071, %v3368
      %v3459 = vadd.f32 %v3072, %v3373
      %v3460 = vadd.f32 %v3073, %v3378
      %v3461 = vadd.f32 %v3074, %v3383
      %v3462 = vadd.f32 %v3075, %v3388
      %v3463 = vadd.f32 %v3076, %v3393
      %v3464 = vadd.f32 %v3077, %v3398
      %v3465 = vadd.f32 %v3078, %v3403
      %v3466 = vadd.f32 %v3079, %v3408
      %v3467 = vadd.f32 %v3080, %v3413
      %v3468 = vadd.f32 %v3081, %v3418
      %v3469 = vadd.f32 %v3082, %v3423
      %v3470 = vadd.f32 %v3083, %v3428
      %v3471 = vadd.f32 %v3084, %v3433
      %v3472 = vadd.f32 %v3085, %v3438
      %v3473 = vld [vmem:[#allocation2 + $0x19] sm:$0xff]
      %v3474 = vld [vmem:[#allocation2 + $0x21] sm:$0xff]
      %v3475 = vld [vmem:[#allocation2 + $0x29] sm:$0xff]
      %v3476 = vld [vmem:[#allocation2 + $0x31] sm:$0xff]
      %v3477 = vld [vmem:[#allocation2 + $0x39] sm:$0xff]
      %v3478 = vld [vmem:[#allocation2 + $0x41] sm:$0xff]
      %v3479 = vld [vmem:[#allocation2 + $0x49] sm:$0xff]
      %v3480 = vld [vmem:[#allocation2 + $0x51] sm:$0xff]
      %v3481 = vld [vmem:[#allocation2 + $0x59] sm:$0xff]
      %v3482 = vld [vmem:[#allocation2 + $0x61] sm:$0xff]
      %v3483 = vld [vmem:[#allocation2 + $0x69] sm:$0xff]
      %v3484 = vld [vmem:[#allocation2 + $0x71] sm:$0xff]
      %v3485 = vld [vmem:[#allocation2 + $0x79] sm:$0xff]
      %v3486 = vld [vmem:[#allocation2 + $0x81] sm:$0xff]
      %v3487 = vld [vmem:[#allocation2 + $0x89] sm:$0xff]
      %v3488 = vld [vmem:[#allocation2 + $0x91] sm:$0xff]
      %v3489 = vld [vmem:[#allocation2 + $0x99] sm:$0xff]
      %v3490 = vld [vmem:[#allocation2 + $0xa1] sm:$0xff]
      %v3491 = vld [vmem:[#allocation2 + $0xa9] sm:$0xff]
      %v3492 = vld [vmem:[#allocation2 + $0xb1] sm:$0xff]
      %v3493 = vld [vmem:[#allocation2 + $0xb9] sm:$0xff]
      %v3494 = vld [vmem:[#allocation2 + $0xc1] sm:$0xff]
      %v3495 = vld [vmem:[#allocation2 + $0xc9] sm:$0xff]
      %v3496 = vld [vmem:[#allocation2 + $0xd1] sm:$0xff]
      %v3497 = vld [vmem:[#allocation2 + $0xd9] sm:$0xff]
      %v3498 = vld [vmem:[#allocation2 + $0xe1] sm:$0xff]
      %v3499 = vld [vmem:[#allocation2 + $0xe9] sm:$0xff]
      %v3500 = vld [vmem:[#allocation2 + $0xf1] sm:$0xff]
      %v3501 = vld [vmem:[#allocation2 + $0xf9] sm:$0xff]
      %v3502 = vld [vmem:[#allocation2 + $0x101] sm:$0xff]
      %v3503 = vld [vmem:[#allocation2 + $0x109] sm:$0xff]
      %v3504 = vld [vmem:[#allocation2 + $0x111] sm:$0xff]
      %v3505 = vsel %vm2248, 0.0, %v3473
      %v3506 = vsel %vm2249, 0.0, %v3474
      %v3507 = vsel %vm2250, 0.0, %v3475
      %v3508 = vsel %vm2251, 0.0, %v3476
      %v3509 = vsel %vm2252, 0.0, %v3477
      %v3510 = vsel %vm2253, 0.0, %v3478
      %v3511 = vsel %vm2254, 0.0, %v3479
      %v3512 = vsel %vm2255, 0.0, %v3480
      %v3513 = vsel %vm2256, 0.0, %v3481
      %v3514 = vsel %vm2257, 0.0, %v3482
      %v3515 = vsel %vm2258, 0.0, %v3483
      %v3516 = vsel %vm2259, 0.0, %v3484
      %v3517 = vsel %vm2260, 0.0, %v3485
      %v3518 = vsel %vm2261, 0.0, %v3486
      %v3519 = vsel %vm2262, 0.0, %v3487
      %v3520 = vsel %vm2263, 0.0, %v3488
      %v3521 = vsel %vm2264, 0.0, %v3489
      %v3522 = vsel %vm2265, 0.0, %v3490
      %v3523 = vsel %vm2266, 0.0, %v3491
      %v3524 = vsel %vm2267, 0.0, %v3492
      %v3525 = vsel %vm2268, 0.0, %v3493
      %v3526 = vsel %vm2269, 0.0, %v3494
      %v3527 = vsel %vm2270, 0.0, %v3495
      %v3528 = vsel %vm2271, 0.0, %v3496
      %v3529 = vsel %vm2272, 0.0, %v3497
      %v3530 = vsel %vm2273, 0.0, %v3498
      %v3531 = vsel %vm2274, 0.0, %v3499
      %v3532 = vsel %vm2275, 0.0, %v3500
      %v3533 = vsel %vm2276, 0.0, %v3501
      %v3534 = vsel %vm2277, 0.0, %v3502
      %v3535 = vsel %vm2278, 0.0, %v3503
      %v3536 = vsel %vm2279, 0.0, %v3504
      %s3537 = scalar_lea.vmem %s2, 40
      %v3538 = vld [vmem:[%s3537] sm:$0xff]
      %v3540 = vsel %vm826, %v3505, 0
      %v3543 = vsel %vm826, %v3506, 0
      %v3546 = vsel %vm826, %v3507, 0
      %v3549 = vsel %vm826, %v3508, 0
      %v3552 = vsel %vm826, %v3509, 0
      %v3555 = vsel %vm826, %v3510, 0
      %v3558 = vsel %vm826, %v3511, 0
      %v3561 = vsel %vm826, %v3512, 0
      %v3564 = vsel %vm826, %v3513, 0
      %v3567 = vsel %vm826, %v3514, 0
      %v3570 = vsel %vm826, %v3515, 0
      %v3573 = vsel %vm826, %v3516, 0
      %v3576 = vsel %vm826, %v3517, 0
      %v3579 = vsel %vm826, %v3518, 0
      %v3582 = vsel %vm826, %v3519, 0
      %v3585 = vsel %vm826, %v3520, 0
      %v3588 = vsel %vm826, %v3521, 0
      %v3591 = vsel %vm826, %v3522, 0
      %v3594 = vsel %vm826, %v3523, 0
      %v3597 = vsel %vm826, %v3524, 0
      %v3600 = vsel %vm826, %v3525, 0
      %v3603 = vsel %vm826, %v3526, 0
      %v3606 = vsel %vm826, %v3527, 0
      %v3609 = vsel %vm826, %v3528, 0
      %v3612 = vsel %vm826, %v3529, 0
      %v3615 = vsel %vm826, %v3530, 0
      %v3618 = vsel %vm826, %v3531, 0
      %v3621 = vsel %vm826, %v3532, 0
      %v3624 = vsel %vm826, %v3533, 0
      %v3627 = vsel %vm826, %v3534, 0
      %v3630 = vsel %vm826, %v3535, 0
      %v3633 = vsel %vm826, %v3536, 0
      %3635 = vmatprep.subr.mxu0 0.0
      %3636 = vmatpush1.msra.mxu0 %v3538
      %3637 = vmatprep.subr.mxu0 0.0
      %3638 = vmatpush1.msra.mxu0 0.0
      %3639 = vmatprep.subr.mxu0 0.0
      %3640 = vmatpush1.msra.mxu0 0.0
      %3641 = vmatprep.subr.mxu0 0.0
      %3642 = vmatpush1.msra.mxu0 0.0
      %3643 = vmatprep.subr.mxu0 0.0
      %3644 = vmatpush1.msra.mxu0 0.0
      %3645 = vmatprep.subr.mxu0 0.0
      %3646 = vmatpush1.msra.mxu0 0.0
      %3647 = vmatprep.subr.mxu0 0.0
      %3648 = vmatpush1.msra.mxu0 0.0
      %3649 = vmatprep.subr.mxu0 0.0
      %3650 = vmatpush1.msra.mxu0 0.0
      %3651 = vmatprep.subr.mxu0 0.0
      %3652 = vmatpush1.msra.mxu0 0.0
      %3653 = vmatprep.subr.mxu0 0.0
      %3654 = vmatpush1.msra.mxu0 0.0
      %3655 = vmatprep.subr.mxu0 0.0
      %3656 = vmatpush1.msra.mxu0 0.0
      %3657 = vmatprep.subr.mxu0 0.0
      %3658 = vmatpush1.msra.mxu0 0.0
      %3659 = vmatprep.subr.mxu0 0.0
      %3660 = vmatpush1.msra.mxu0 0.0
      %3661 = vmatprep.subr.mxu0 0.0
      %3662 = vmatpush1.msra.mxu0 0.0
      %3663 = vmatprep.subr.mxu0 0.0
      %3664 = vmatpush1.msra.mxu0 0.0
      %3665 = vmatprep.subr.mxu0 0.0
      %3666 = vmatpush1.msra.mxu0 0.0
      %3667 = vmatprep.subr.mxu0 0.0
      %3668 = vmatpush1.msra.mxu0 0.0
      %3669 = vmatprep.subr.mxu0 0.0
      %3670 = vmatpush1.msra.mxu0 0.0
      %3671 = vmatprep.subr.mxu0 0.0
      %3672 = vmatpush1.msra.mxu0 0.0
      %3673 = vmatprep.subr.mxu0 0.0
      %3674 = vmatpush1.msra.mxu0 0.0
      %3675 = vmatprep.subr.mxu0 0.0
      %3676 = vmatpush1.msra.mxu0 0.0
      %3677 = vmatprep.subr.mxu0 0.0
      %3678 = vmatpush1.msra.mxu0 0.0
      %3679 = vmatprep.subr.mxu0 0.0
      %3680 = vmatpush1.msra.mxu0 0.0
      %3681 = vmatprep.subr.mxu0 0.0
      %3682 = vmatpush1.msra.mxu0 0.0
      %3683 = vmatprep.subr.mxu0 0.0
      %3684 = vmatpush1.msra.mxu0 0.0
      %3685 = vmatprep.subr.mxu0 0.0
      %3686 = vmatpush1.msra.mxu0 0.0
      %3687 = vmatprep.subr.mxu0 0.0
      %3688 = vmatpush1.msra.mxu0 0.0
      %3689 = vmatprep.subr.mxu0 0.0
      %3690 = vmatpush1.msra.mxu0 0.0
      %3691 = vmatprep.subr.mxu0 0.0
      %3692 = vmatpush1.msra.mxu0 0.0
      %3693 = vmatprep.subr.mxu0 0.0
      %3694 = vmatpush1.msra.mxu0 0.0
      %3695 = vmatprep.subr.mxu0 0.0
      %3696 = vmatpush1.msra.mxu0 0.0
      %3697 = vmatprep.subr.mxu0 0.0
      %3698 = vmatpush1.msra.mxu0 0.0
      %3699 = vmatprep.mubr.f32.mxu0 0.0
      %3700 = vmatmul.mubr.f32.gmra.mrb[0].mxu0 %v3540
      %v3701 = vpop.f32.mrb[0].mxu0
      %v3702 = vadd.f32 0.0, %v3701
      %v3703 = vpop.f32.mrb[0].mxu0
      %3704 = vmatprep.mubr.f32.mxu0 0.0
      %3705 = vmatmul.mubr.f32.gmra.mrb[0].mxu0 %v3543
      %v3706 = vpop.f32.mrb[0].mxu0
      %v3707 = vadd.f32 0.0, %v3706
      %v3708 = vpop.f32.mrb[0].mxu0
      %3709 = vmatprep.mubr.f32.mxu0 0.0
      %3710 = vmatmul.mubr.f32.gmra.mrb[0].mxu0 %v3546
      %v3711 = vpop.f32.mrb[0].mxu0
      %v3712 = vadd.f32 0.0, %v3711
      %v3713 = vpop.f32.mrb[0].mxu0
      %3714 = vmatprep.mubr.f32.mxu0 0.0
      %3715 = vmatmul.mubr.f32.gmra.mrb[0].mxu0 %v3549
      %v3716 = vpop.f32.mrb[0].mxu0
      %v3717 = vadd.f32 0.0, %v3716
      %v3718 = vpop.f32.mrb[0].mxu0
      %3719 = vmatprep.mubr.f32.mxu0 0.0
      %3720 = vmatmul.mubr.f32.gmra.mrb[0].mxu0 %v3552
      %v3721 = vpop.f32.mrb[0].mxu0
      %v3722 = vadd.f32 0.0, %v3721
      %v3723 = vpop.f32.mrb[0].mxu0
      %3724 = vmatprep.mubr.f32.mxu0 0.0
      %3725 = vmatmul.mubr.f32.gmra.mrb[0].mxu0 %v3555
      %v3726 = vpop.f32.mrb[0].mxu0
      %v3727 = vadd.f32 0.0, %v3726
      %v3728 = vpop.f32.mrb[0].mxu0
      %3729 = vmatprep.mubr.f32.mxu0 0.0
      %3730 = vmatmul.mubr.f32.gmra.mrb[0].mxu0 %v3558
      %v3731 = vpop.f32.mrb[0].mxu0
      %v3732 = vadd.f32 0.0, %v3731
      %v3733 = vpop.f32.mrb[0].mxu0
      %3734 = vmatprep.mubr.f32.mxu0 0.0
      %3735 = vmatmul.mubr.f32.gmra.mrb[0].mxu0 %v3561
      %v3736 = vpop.f32.mrb[0].mxu0
      %v3737 = vadd.f32 0.0, %v3736
      %v3738 = vpop.f32.mrb[0].mxu0
      %3739 = vmatprep.mubr.f32.mxu0 0.0
      %3740 = vmatmul.mubr.f32.gmra.mrb[0].mxu0 %v3564
      %v3741 = vpop.f32.mrb[0].mxu0
      %v3742 = vadd.f32 0.0, %v3741
      %v3743 = vpop.f32.mrb[0].mxu0
      %3744 = vmatprep.mubr.f32.mxu0 0.0
      %3745 = vmatmul.mubr.f32.gmra.mrb[0].mxu0 %v3567
      %v3746 = vpop.f32.mrb[0].mxu0
      %v3747 = vadd.f32 0.0, %v3746
      %v3748 = vpop.f32.mrb[0].mxu0
      %3749 = vmatprep.mubr.f32.mxu0 0.0
      %3750 = vmatmul.mubr.f32.gmra.mrb[0].mxu0 %v3570
      %v3751 = vpop.f32.mrb[0].mxu0
      %v3752 = vadd.f32 0.0, %v3751
      %v3753 = vpop.f32.mrb[0].mxu0
      %3754 = vmatprep.mubr.f32.mxu0 0.0
      %3755 = vmatmul.mubr.f32.gmra.mrb[0].mxu0 %v3573
      %v3756 = vpop.f32.mrb[0].mxu0
      %v3757 = vadd.f32 0.0, %v3756
      %v3758 = vpop.f32.mrb[0].mxu0
      %3759 = vmatprep.mubr.f32.mxu0 0.0
      %3760 = vmatmul.mubr.f32.gmra.mrb[0].mxu0 %v3576
      %v3761 = vpop.f32.mrb[0].mxu0
      %v3762 = vadd.f32 0.0, %v3761
      %v3763 = vpop.f32.mrb[0].mxu0
      %3764 = vmatprep.mubr.f32.mxu0 0.0
      %3765 = vmatmul.mubr.f32.gmra.mrb[0].mxu0 %v3579
      %v3766 = vpop.f32.mrb[0].mxu0
      %v3767 = vadd.f32 0.0, %v3766
      %v3768 = vpop.f32.mrb[0].mxu0
      %3769 = vmatprep.mubr.f32.mxu0 0.0
      %3770 = vmatmul.mubr.f32.gmra.mrb[0].mxu0 %v3582
      %v3771 = vpop.f32.mrb[0].mxu0
      %v3772 = vadd.f32 0.0, %v3771
      %v3773 = vpop.f32.mrb[0].mxu0
      %3774 = vmatprep.mubr.f32.mxu0 0.0
      %3775 = vmatmul.mubr.f32.gmra.mrb[0].mxu0 %v3585
      %v3776 = vpop.f32.mrb[0].mxu0
      %v3777 = vadd.f32 0.0, %v3776
      %v3778 = vpop.f32.mrb[0].mxu0
      %3779 = vmatprep.mubr.f32.mxu0 0.0
      %3780 = vmatmul.mubr.f32.gmra.mrb[0].mxu0 %v3588
      %v3781 = vpop.f32.mrb[0].mxu0
      %v3782 = vadd.f32 0.0, %v3781
      %v3783 = vpop.f32.mrb[0].mxu0
      %3784 = vmatprep.mubr.f32.mxu0 0.0
      %3785 = vmatmul.mubr.f32.gmra.mrb[0].mxu0 %v3591
      %v3786 = vpop.f32.mrb[0].mxu0
      %v3787 = vadd.f32 0.0, %v3786
      %v3788 = vpop.f32.mrb[0].mxu0
      %3789 = vmatprep.mubr.f32.mxu0 0.0
      %3790 = vmatmul.mubr.f32.gmra.mrb[0].mxu0 %v3594
      %v3791 = vpop.f32.mrb[0].mxu0
      %v3792 = vadd.f32 0.0, %v3791
      %v3793 = vpop.f32.mrb[0].mxu0
      %3794 = vmatprep.mubr.f32.mxu0 0.0
      %3795 = vmatmul.mubr.f32.gmra.mrb[0].mxu0 %v3597
      %v3796 = vpop.f32.mrb[0].mxu0
      %v3797 = vadd.f32 0.0, %v3796
      %v3798 = vpop.f32.mrb[0].mxu0
      %3799 = vmatprep.mubr.f32.mxu0 0.0
      %3800 = vmatmul.mubr.f32.gmra.mrb[0].mxu0 %v3600
      %v3801 = vpop.f32.mrb[0].mxu0
      %v3802 = vadd.f32 0.0, %v3801
      %v3803 = vpop.f32.mrb[0].mxu0
      %3804 = vmatprep.mubr.f32.mxu0 0.0
      %3805 = vmatmul.mubr.f32.gmra.mrb[0].mxu0 %v3603
      %v3806 = vpop.f32.mrb[0].mxu0
      %v3807 = vadd.f32 0.0, %v3806
      %v3808 = vpop.f32.mrb[0].mxu0
      %3809 = vmatprep.mubr.f32.mxu0 0.0
      %3810 = vmatmul.mubr.f32.gmra.mrb[0].mxu0 %v3606
      %v3811 = vpop.f32.mrb[0].mxu0
      %v3812 = vadd.f32 0.0, %v3811
      %v3813 = vpop.f32.mrb[0].mxu0
      %3814 = vmatprep.mubr.f32.mxu0 0.0
      %3815 = vmatmul.mubr.f32.gmra.mrb[0].mxu0 %v3609
      %v3816 = vpop.f32.mrb[0].mxu0
      %v3817 = vadd.f32 0.0, %v3816
      %v3818 = vpop.f32.mrb[0].mxu0
      %3819 = vmatprep.mubr.f32.mxu0 0.0
      %3820 = vmatmul.mubr.f32.gmra.mrb[0].mxu0 %v3612
      %v3821 = vpop.f32.mrb[0].mxu0
      %v3822 = vadd.f32 0.0, %v3821
      %v3823 = vpop.f32.mrb[0].mxu0
      %3824 = vmatprep.mubr.f32.mxu0 0.0
      %3825 = vmatmul.mubr.f32.gmra.mrb[0].mxu0 %v3615
      %v3826 = vpop.f32.mrb[0].mxu0
      %v3827 = vadd.f32 0.0, %v3826
      %v3828 = vpop.f32.mrb[0].mxu0
      %3829 = vmatprep.mubr.f32.mxu0 0.0
      %3830 = vmatmul.mubr.f32.gmra.mrb[0].mxu0 %v3618
      %v3831 = vpop.f32.mrb[0].mxu0
      %v3832 = vadd.f32 0.0, %v3831
      %v3833 = vpop.f32.mrb[0].mxu0
      %3834 = vmatprep.mubr.f32.mxu0 0.0
      %3835 = vmatmul.mubr.f32.gmra.mrb[0].mxu0 %v3621
      %v3836 = vpop.f32.mrb[0].mxu0
      %v3837 = vadd.f32 0.0, %v3836
      %v3838 = vpop.f32.mrb[0].mxu0
      %3839 = vmatprep.mubr.f32.mxu0 0.0
      %3840 = vmatmul.mubr.f32.gmra.mrb[0].mxu0 %v3624
      %v3841 = vpop.f32.mrb[0].mxu0
      %v3842 = vadd.f32 0.0, %v3841
      %v3843 = vpop.f32.mrb[0].mxu0
      %3844 = vmatprep.mubr.f32.mxu0 0.0
      %3845 = vmatmul.mubr.f32.gmra.mrb[0].mxu0 %v3627
      %v3846 = vpop.f32.mrb[0].mxu0
      %v3847 = vadd.f32 0.0, %v3846
      %v3848 = vpop.f32.mrb[0].mxu0
      %3849 = vmatprep.mubr.f32.mxu0 0.0
      %3850 = vmatmul.mubr.f32.gmra.mrb[0].mxu0 %v3630
      %v3851 = vpop.f32.mrb[0].mxu0
      %v3852 = vadd.f32 0.0, %v3851
      %v3853 = vpop.f32.mrb[0].mxu0
      %3854 = vmatprep.mubr.f32.mxu0 0.0
      %3855 = vmatmul.mubr.f32.gmra.mrb[0].mxu0 %v3633
      %v3856 = vpop.f32.mrb[0].mxu0
      %v3857 = vadd.f32 0.0, %v3856
      %v3858 = vpop.f32.mrb[0].mxu0
      %3859 = vdwg.mxu0
      %v3860 = vadd.f32 %v3441, %v3702
      %v3861 = vadd.f32 %v3442, %v3707
      %v3862 = vadd.f32 %v3443, %v3712
      %v3863 = vadd.f32 %v3444, %v3717
      %v3864 = vadd.f32 %v3445, %v3722
      %v3865 = vadd.f32 %v3446, %v3727
      %v3866 = vadd.f32 %v3447, %v3732
      %v3867 = vadd.f32 %v3448, %v3737
      %v3868 = vadd.f32 %v3449, %v3742
      %v3869 = vadd.f32 %v3450, %v3747
      %v3870 = vadd.f32 %v3451, %v3752
      %v3871 = vadd.f32 %v3452, %v3757
      %v3872 = vadd.f32 %v3453, %v3762
      %v3873 = vadd.f32 %v3454, %v3767
      %v3874 = vadd.f32 %v3455, %v3772
      %v3875 = vadd.f32 %v3456, %v3777
      %v3876 = vadd.f32 %v3457, %v3782
      %v3877 = vadd.f32 %v3458, %v3787
      %v3878 = vadd.f32 %v3459, %v3792
      %v3879 = vadd.f32 %v3460, %v3797
      %v3880 = vadd.f32 %v3461, %v3802
      %v3881 = vadd.f32 %v3462, %v3807
      %v3882 = vadd.f32 %v3463, %v3812
      %v3883 = vadd.f32 %v3464, %v3817
      %v3884 = vadd.f32 %v3465, %v3822
      %v3885 = vadd.f32 %v3466, %v3827
      %v3886 = vadd.f32 %v3467, %v3832
      %v3887 = vadd.f32 %v3468, %v3837
      %v3888 = vadd.f32 %v3469, %v3842
      %v3889 = vadd.f32 %v3470, %v3847
      %v3890 = vadd.f32 %v3471, %v3852
      %v3891 = vadd.f32 %v3472, %v3857
      %v3892 = vld [vmem:[#allocation2 + $0x27] sm:$0xff]
      %v3893 = vld [vmem:[#allocation2 + $0x2f] sm:$0xff]
      %v3894 = vld [vmem:[#allocation2 + $0x37] sm:$0xff]
      %v3895 = vld [vmem:[#allocation2 + $0x3f] sm:$0xff]
      %v3896 = vld [vmem:[#allocation2 + $0x47] sm:$0xff]
      %v3897 = vld [vmem:[#allocation2 + $0x4f] sm:$0xff]
      %v3898 = vld [vmem:[#allocation2 + $0x57] sm:$0xff]
      %v3899 = vld [vmem:[#allocation2 + $0x5f] sm:$0xff]
      %v3900 = vld [vmem:[#allocation2 + $0x67] sm:$0xff]
      %v3901 = vld [vmem:[#allocation2 + $0x6f] sm:$0xff]
      %v3902 = vld [vmem:[#allocation2 + $0x77] sm:$0xff]
      %v3903 = vld [vmem:[#allocation2 + $0x7f] sm:$0xff]
      %v3904 = vld [vmem:[#allocation2 + $0x87] sm:$0xff]
      %v3905 = vld [vmem:[#allocation2 + $0x8f] sm:$0xff]
      %v3906 = vld [vmem:[#allocation2 + $0x97] sm:$0xff]
      %v3907 = vld [vmem:[#allocation2 + $0x9f] sm:$0xff]
      %v3908 = vld [vmem:[#allocation2 + $0xa7] sm:$0xff]
      %v3909 = vld [vmem:[#allocation2 + $0xaf] sm:$0xff]
      %v3910 = vld [vmem:[#allocation2 + $0xb7] sm:$0xff]
      %v3911 = vld [vmem:[#allocation2 + $0xbf] sm:$0xff]
      %v3912 = vld [vmem:[#allocation2 + $0xc7] sm:$0xff]
      %v3913 = vld [vmem:[#allocation2 + $0xcf] sm:$0xff]
      %v3914 = vld [vmem:[#allocation2 + $0xd7] sm:$0xff]
      %v3915 = vld [vmem:[#allocation2 + $0xdf] sm:$0xff]
      %v3916 = vld [vmem:[#allocation2 + $0xe7] sm:$0xff]
      %v3917 = vld [vmem:[#allocation2 + $0xef] sm:$0xff]
      %v3918 = vld [vmem:[#allocation2 + $0xf7] sm:$0xff]
      %v3919 = vld [vmem:[#allocation2 + $0xff] sm:$0xff]
      %v3920 = vld [vmem:[#allocation2 + $0x107] sm:$0xff]
      %v3921 = vld [vmem:[#allocation2 + $0x10f] sm:$0xff]
      %v3922 = vld [vmem:[#allocation2 + $0x117] sm:$0xff]
      %v3923 = vld [vmem:[#allocation2 + $0x11f] sm:$0xff]
      %v3924 = vsel %vm1411, 0.0, %v3892
      %v3925 = vsel %vm1412, 0.0, %v3893
      %v3926 = vsel %vm1413, 0.0, %v3894
      %v3927 = vsel %vm1414, 0.0, %v3895
      %v3928 = vsel %vm1415, 0.0, %v3896
      %v3929 = vsel %vm1416, 0.0, %v3897
      %v3930 = vsel %vm1417, 0.0, %v3898
      %v3931 = vsel %vm1418, 0.0, %v3899
      %v3932 = vsel %vm1419, 0.0, %v3900
      %v3933 = vsel %vm1420, 0.0, %v3901
      %v3934 = vsel %vm1421, 0.0, %v3902
      %v3935 = vsel %vm1422, 0.0, %v3903
      %v3936 = vsel %vm1423, 0.0, %v3904
      %v3937 = vsel %vm1424, 0.0, %v3905
      %v3938 = vsel %vm1425, 0.0, %v3906
      %v3939 = vsel %vm1426, 0.0, %v3907
      %v3940 = vsel %vm1427, 0.0, %v3908
      %v3941 = vsel %vm1428, 0.0, %v3909
      %v3942 = vsel %vm1429, 0.0, %v3910
      %v3943 = vsel %vm1430, 0.0, %v3911
      %v3944 = vsel %vm1431, 0.0, %v3912
      %v3945 = vsel %vm1432, 0.0, %v3913
      %v3946 = vsel %vm1433, 0.0, %v3914
      %v3947 = vsel %vm1434, 0.0, %v3915
      %v3948 = vsel %vm1435, 0.0, %v3916
      %v3949 = vsel %vm1436, 0.0, %v3917
      %v3950 = vsel %vm1437, 0.0, %v3918
      %v3951 = vsel %vm1438, 0.0, %v3919
      %v3952 = vsel %vm1439, 0.0, %v3920
      %v3953 = vsel %vm1440, 0.0, %v3921
      %v3954 = vsel %vm1441, 0.0, %v3922
      %v3955 = vsel %vm1442, 0.0, %v3923
      %s3956 = scalar_lea.vmem %s2, 48
      %v3957 = vld [vmem:[%s3956] sm:$0xff]
      %v3959 = vsel %vm826, %v3924, 0
      %v3962 = vsel %vm826, %v3925, 0
      %v3965 = vsel %vm826, %v3926, 0
      %v3968 = vsel %vm826, %v3927, 0
      %v3971 = vsel %vm826, %v3928, 0
      %v3974 = vsel %vm826, %v3929, 0
      %v3977 = vsel %vm826, %v3930, 0
      %v3980 = vsel %vm826, %v3931, 0
      %v3983 = vsel %vm826, %v3932, 0
      %v3986 = vsel %vm826, %v3933, 0
      %v3989 = vsel %vm826, %v3934, 0
      %v3992 = vsel %vm826, %v3935, 0
      %v3995 = vsel %vm826, %v3936, 0
      %v3998 = vsel %vm826, %v3937, 0
      %v4001 = vsel %vm826, %v3938, 0
      %v4004 = vsel %vm826, %v3939, 0
      %v4007 = vsel %vm826, %v3940, 0
      %v4010 = vsel %vm826, %v3941, 0
      %v4013 = vsel %vm826, %v3942, 0
      %v4016 = vsel %vm826, %v3943, 0
      %v4019 = vsel %vm826, %v3944, 0
      %v4022 = vsel %vm826, %v3945, 0
      %v4025 = vsel %vm826, %v3946, 0
      %v4028 = vsel %vm826, %v3947, 0
      %v4031 = vsel %vm826, %v3948, 0
      %v4034 = vsel %vm826, %v3949, 0
      %v4037 = vsel %vm826, %v3950, 0
      %v4040 = vsel %vm826, %v3951, 0
      %v4043 = vsel %vm826, %v3952, 0
      %v4046 = vsel %vm826, %v3953, 0
      %v4049 = vsel %vm826, %v3954, 0
      %v4052 = vsel %vm826, %v3955, 0
      %4054 = vmatprep.subr.mxu0 0.0
      %4055 = vmatpush1.msra.mxu0 %v3957
      %4056 = vmatprep.subr.mxu0 0.0
      %4057 = vmatpush1.msra.mxu0 0.0
      %4058 = vmatprep.subr.mxu0 0.0
      %4059 = vmatpush1.msra.mxu0 0.0
      %4060 = vmatprep.subr.mxu0 0.0
      %4061 = vmatpush1.msra.mxu0 0.0
      %4062 = vmatprep.subr.mxu0 0.0
      %4063 = vmatpush1.msra.mxu0 0.0
      %4064 = vmatprep.subr.mxu0 0.0
      %4065 = vmatpush1.msra.mxu0 0.0
      %4066 = vmatprep.subr.mxu0 0.0
      %4067 = vmatpush1.msra.mxu0 0.0
      %4068 = vmatprep.subr.mxu0 0.0
      %4069 = vmatpush1.msra.mxu0 0.0
      %4070 = vmatprep.subr.mxu0 0.0
      %4071 = vmatpush1.msra.mxu0 0.0
      %4072 = vmatprep.subr.mxu0 0.0
      %4073 = vmatpush1.msra.mxu0 0.0
      %4074 = vmatprep.subr.mxu0 0.0
      %4075 = vmatpush1.msra.mxu0 0.0
      %4076 = vmatprep.subr.mxu0 0.0
      %4077 = vmatpush1.msra.mxu0 0.0
      %4078 = vmatprep.subr.mxu0 0.0
      %4079 = vmatpush1.msra.mxu0 0.0
      %4080 = vmatprep.subr.mxu0 0.0
      %4081 = vmatpush1.msra.mxu0 0.0
      %4082 = vmatprep.subr.mxu0 0.0
      %4083 = vmatpush1.msra.mxu0 0.0
      %4084 = vmatprep.subr.mxu0 0.0
      %4085 = vmatpush1.msra.mxu0 0.0
      %4086 = vmatprep.subr.mxu0 0.0
      %4087 = vmatpush1.msra.mxu0 0.0
      %4088 = vmatprep.subr.mxu0 0.0
      %4089 = vmatpush1.msra.mxu0 0.0
      %4090 = vmatprep.subr.mxu0 0.0
      %4091 = vmatpush1.msra.mxu0 0.0
      %4092 = vmatprep.subr.mxu0 0.0
      %4093 = vmatpush1.msra.mxu0 0.0
      %4094 = vmatprep.subr.mxu0 0.0
      %4095 = vmatpush1.msra.mxu0 0.0
      %4096 = vmatprep.subr.mxu0 0.0
      %4097 = vmatpush1.msra.mxu0 0.0
      %4098 = vmatprep.subr.mxu0 0.0
      %4099 = vmatpush1.msra.mxu0 0.0
      %4100 = vmatprep.subr.mxu0 0.0
      %4101 = vmatpush1.msra.mxu0 0.0
      %4102 = vmatprep.subr.mxu0 0.0
      %4103 = vmatpush1.msra.mxu0 0.0
      %4104 = vmatprep.subr.mxu0 0.0
      %4105 = vmatpush1.msra.mxu0 0.0
      %4106 = vmatprep.subr.mxu0 0.0
      %4107 = vmatpush1.msra.mxu0 0.0
      %4108 = vmatprep.subr.mxu0 0.0
      %4109 = vmatpush1.msra.mxu0 0.0
      %4110 = vmatprep.subr.mxu0 0.0
      %4111 = vmatpush1.msra.mxu0 0.0
      %4112 = vmatprep.subr.mxu0 0.0
      %4113 = vmatpush1.msra.mxu0 0.0
      %4114 = vmatprep.subr.mxu0 0.0
      %4115 = vmatpush1.msra.mxu0 0.0
      %4116 = vmatprep.subr.mxu0 0.0
      %4117 = vmatpush1.msra.mxu0 0.0
      %4118 = vmatprep.mubr.f32.mxu0 0.0
      %4119 = vmatmul.mubr.f32.gmra.mrb[0].mxu0 %v3959
      %v4120 = vpop.f32.mrb[0].mxu0
      %v4121 = vadd.f32 0.0, %v4120
      %v4122 = vpop.f32.mrb[0].mxu0
      %4123 = vmatprep.mubr.f32.mxu0 0.0
      %4124 = vmatmul.mubr.f32.gmra.mrb[0].mxu0 %v3962
      %v4125 = vpop.f32.mrb[0].mxu0
      %v4126 = vadd.f32 0.0, %v4125
      %v4127 = vpop.f32.mrb[0].mxu0
      %4128 = vmatprep.mubr.f32.mxu0 0.0
      %4129 = vmatmul.mubr.f32.gmra.mrb[0].mxu0 %v3965
      %v4130 = vpop.f32.mrb[0].mxu0
      %v4131 = vadd.f32 0.0, %v4130
      %v4132 = vpop.f32.mrb[0].mxu0
      %4133 = vmatprep.mubr.f32.mxu0 0.0
      %4134 = vmatmul.mubr.f32.gmra.mrb[0].mxu0 %v3968
      %v4135 = vpop.f32.mrb[0].mxu0
      %v4136 = vadd.f32 0.0, %v4135
      %v4137 = vpop.f32.mrb[0].mxu0
      %4138 = vmatprep.mubr.f32.mxu0 0.0
      %4139 = vmatmul.mubr.f32.gmra.mrb[0].mxu0 %v3971
      %v4140 = vpop.f32.mrb[0].mxu0
      %v4141 = vadd.f32 0.0, %v4140
      %v4142 = vpop.f32.mrb[0].mxu0
      %4143 = vmatprep.mubr.f32.mxu0 0.0
      %4144 = vmatmul.mubr.f32.gmra.mrb[0].mxu0 %v3974
      %v4145 = vpop.f32.mrb[0].mxu0
      %v4146 = vadd.f32 0.0, %v4145
      %v4147 = vpop.f32.mrb[0].mxu0
      %4148 = vmatprep.mubr.f32.mxu0 0.0
      %4149 = vmatmul.mubr.f32.gmra.mrb[0].mxu0 %v3977
      %v4150 = vpop.f32.mrb[0].mxu0
      %v4151 = vadd.f32 0.0, %v4150
      %v4152 = vpop.f32.mrb[0].mxu0
      %4153 = vmatprep.mubr.f32.mxu0 0.0
      %4154 = vmatmul.mubr.f32.gmra.mrb[0].mxu0 %v3980
      %v4155 = vpop.f32.mrb[0].mxu0
      %v4156 = vadd.f32 0.0, %v4155
      %v4157 = vpop.f32.mrb[0].mxu0
      %4158 = vmatprep.mubr.f32.mxu0 0.0
      %4159 = vmatmul.mubr.f32.gmra.mrb[0].mxu0 %v3983
      %v4160 = vpop.f32.mrb[0].mxu0
      %v4161 = vadd.f32 0.0, %v4160
      %v4162 = vpop.f32.mrb[0].mxu0
      %4163 = vmatprep.mubr.f32.mxu0 0.0
      %4164 = vmatmul.mubr.f32.gmra.mrb[0].mxu0 %v3986
      %v4165 = vpop.f32.mrb[0].mxu0
      %v4166 = vadd.f32 0.0, %v4165
      %v4167 = vpop.f32.mrb[0].mxu0
      %4168 = vmatprep.mubr.f32.mxu0 0.0
      %4169 = vmatmul.mubr.f32.gmra.mrb[0].mxu0 %v3989
      %v4170 = vpop.f32.mrb[0].mxu0
      %v4171 = vadd.f32 0.0, %v4170
      %v4172 = vpop.f32.mrb[0].mxu0
      %4173 = vmatprep.mubr.f32.mxu0 0.0
      %4174 = vmatmul.mubr.f32.gmra.mrb[0].mxu0 %v3992
      %v4175 = vpop.f32.mrb[0].mxu0
      %v4176 = vadd.f32 0.0, %v4175
      %v4177 = vpop.f32.mrb[0].mxu0
      %4178 = vmatprep.mubr.f32.mxu0 0.0
      %4179 = vmatmul.mubr.f32.gmra.mrb[0].mxu0 %v3995
      %v4180 = vpop.f32.mrb[0].mxu0
      %v4181 = vadd.f32 0.0, %v4180
      %v4182 = vpop.f32.mrb[0].mxu0
      %4183 = vmatprep.mubr.f32.mxu0 0.0
      %4184 = vmatmul.mubr.f32.gmra.mrb[0].mxu0 %v3998
      %v4185 = vpop.f32.mrb[0].mxu0
      %v4186 = vadd.f32 0.0, %v4185
      %v4187 = vpop.f32.mrb[0].mxu0
      %4188 = vmatprep.mubr.f32.mxu0 0.0
      %4189 = vmatmul.mubr.f32.gmra.mrb[0].mxu0 %v4001
      %v4190 = vpop.f32.mrb[0].mxu0
      %v4191 = vadd.f32 0.0, %v4190
      %v4192 = vpop.f32.mrb[0].mxu0
      %4193 = vmatprep.mubr.f32.mxu0 0.0
      %4194 = vmatmul.mubr.f32.gmra.mrb[0].mxu0 %v4004
      %v4195 = vpop.f32.mrb[0].mxu0
      %v4196 = vadd.f32 0.0, %v4195
      %v4197 = vpop.f32.mrb[0].mxu0
      %4198 = vmatprep.mubr.f32.mxu0 0.0
      %4199 = vmatmul.mubr.f32.gmra.mrb[0].mxu0 %v4007
      %v4200 = vpop.f32.mrb[0].mxu0
      %v4201 = vadd.f32 0.0, %v4200
      %v4202 = vpop.f32.mrb[0].mxu0
      %4203 = vmatprep.mubr.f32.mxu0 0.0
      %4204 = vmatmul.mubr.f32.gmra.mrb[0].mxu0 %v4010
      %v4205 = vpop.f32.mrb[0].mxu0
      %v4206 = vadd.f32 0.0, %v4205
      %v4207 = vpop.f32.mrb[0].mxu0
      %4208 = vmatprep.mubr.f32.mxu0 0.0
      %4209 = vmatmul.mubr.f32.gmra.mrb[0].mxu0 %v4013
      %v4210 = vpop.f32.mrb[0].mxu0
      %v4211 = vadd.f32 0.0, %v4210
      %v4212 = vpop.f32.mrb[0].mxu0
      %4213 = vmatprep.mubr.f32.mxu0 0.0
      %4214 = vmatmul.mubr.f32.gmra.mrb[0].mxu0 %v4016
      %v4215 = vpop.f32.mrb[0].mxu0
      %v4216 = vadd.f32 0.0, %v4215
      %v4217 = vpop.f32.mrb[0].mxu0
      %4218 = vmatprep.mubr.f32.mxu0 0.0
      %4219 = vmatmul.mubr.f32.gmra.mrb[0].mxu0 %v4019
      %v4220 = vpop.f32.mrb[0].mxu0
      %v4221 = vadd.f32 0.0, %v4220
      %v4222 = vpop.f32.mrb[0].mxu0
      %4223 = vmatprep.mubr.f32.mxu0 0.0
      %4224 = vmatmul.mubr.f32.gmra.mrb[0].mxu0 %v4022
      %v4225 = vpop.f32.mrb[0].mxu0
      %v4226 = vadd.f32 0.0, %v4225
      %v4227 = vpop.f32.mrb[0].mxu0
      %4228 = vmatprep.mubr.f32.mxu0 0.0
      %4229 = vmatmul.mubr.f32.gmra.mrb[0].mxu0 %v4025
      %v4230 = vpop.f32.mrb[0].mxu0
      %v4231 = vadd.f32 0.0, %v4230
      %v4232 = vpop.f32.mrb[0].mxu0
      %4233 = vmatprep.mubr.f32.mxu0 0.0
      %4234 = vmatmul.mubr.f32.gmra.mrb[0].mxu0 %v4028
      %v4235 = vpop.f32.mrb[0].mxu0
      %v4236 = vadd.f32 0.0, %v4235
      %v4237 = vpop.f32.mrb[0].mxu0
      %4238 = vmatprep.mubr.f32.mxu0 0.0
      %4239 = vmatmul.mubr.f32.gmra.mrb[0].mxu0 %v4031
      %v4240 = vpop.f32.mrb[0].mxu0
      %v4241 = vadd.f32 0.0, %v4240
      %v4242 = vpop.f32.mrb[0].mxu0
      %4243 = vmatprep.mubr.f32.mxu0 0.0
      %4244 = vmatmul.mubr.f32.gmra.mrb[0].mxu0 %v4034
      %v4245 = vpop.f32.mrb[0].mxu0
      %v4246 = vadd.f32 0.0, %v4245
      %v4247 = vpop.f32.mrb[0].mxu0
      %4248 = vmatprep.mubr.f32.mxu0 0.0
      %4249 = vmatmul.mubr.f32.gmra.mrb[0].mxu0 %v4037
      %v4250 = vpop.f32.mrb[0].mxu0
      %v4251 = vadd.f32 0.0, %v4250
      %v4252 = vpop.f32.mrb[0].mxu0
      %4253 = vmatprep.mubr.f32.mxu0 0.0
      %4254 = vmatmul.mubr.f32.gmra.mrb[0].mxu0 %v4040
      %v4255 = vpop.f32.mrb[0].mxu0
      %v4256 = vadd.f32 0.0, %v4255
      %v4257 = vpop.f32.mrb[0].mxu0
      %4258 = vmatprep.mubr.f32.mxu0 0.0
      %4259 = vmatmul.mubr.f32.gmra.mrb[0].mxu0 %v4043
      %v4260 = vpop.f32.mrb[0].mxu0
      %v4261 = vadd.f32 0.0, %v4260
      %v4262 = vpop.f32.mrb[0].mxu0
      %4263 = vmatprep.mubr.f32.mxu0 0.0
      %4264 = vmatmul.mubr.f32.gmra.mrb[0].mxu0 %v4046
      %v4265 = vpop.f32.mrb[0].mxu0
      %v4266 = vadd.f32 0.0, %v4265
      %v4267 = vpop.f32.mrb[0].mxu0
      %4268 = vmatprep.mubr.f32.mxu0 0.0
      %4269 = vmatmul.mubr.f32.gmra.mrb[0].mxu0 %v4049
      %v4270 = vpop.f32.mrb[0].mxu0
      %v4271 = vadd.f32 0.0, %v4270
      %v4272 = vpop.f32.mrb[0].mxu0
      %4273 = vmatprep.mubr.f32.mxu0 0.0
      %4274 = vmatmul.mubr.f32.gmra.mrb[0].mxu0 %v4052
      %v4275 = vpop.f32.mrb[0].mxu0
      %v4276 = vadd.f32 0.0, %v4275
      %v4277 = vpop.f32.mrb[0].mxu0
      %4278 = vdwg.mxu0
      %v4279 = vadd.f32 %v3860, %v4121
      %v4280 = vadd.f32 %v3861, %v4126
      %v4281 = vadd.f32 %v3862, %v4131
      %v4282 = vadd.f32 %v3863, %v4136
      %v4283 = vadd.f32 %v3864, %v4141
      %v4284 = vadd.f32 %v3865, %v4146
      %v4285 = vadd.f32 %v3866, %v4151
      %v4286 = vadd.f32 %v3867, %v4156
      %v4287 = vadd.f32 %v3868, %v4161
      %v4288 = vadd.f32 %v3869, %v4166
      %v4289 = vadd.f32 %v3870, %v4171
      %v4290 = vadd.f32 %v3871, %v4176
      %v4291 = vadd.f32 %v3872, %v4181
      %v4292 = vadd.f32 %v3873, %v4186
      %v4293 = vadd.f32 %v3874, %v4191
      %v4294 = vadd.f32 %v3875, %v4196
      %v4295 = vadd.f32 %v3876, %v4201
      %v4296 = vadd.f32 %v3877, %v4206
      %v4297 = vadd.f32 %v3878, %v4211
      %v4298 = vadd.f32 %v3879, %v4216
      %v4299 = vadd.f32 %v3880, %v4221
      %v4300 = vadd.f32 %v3881, %v4226
      %v4301 = vadd.f32 %v3882, %v4231
      %v4302 = vadd.f32 %v3883, %v4236
      %v4303 = vadd.f32 %v3884, %v4241
      %v4304 = vadd.f32 %v3885, %v4246
      %v4305 = vadd.f32 %v3886, %v4251
      %v4306 = vadd.f32 %v3887, %v4256
      %v4307 = vadd.f32 %v3888, %v4261
      %v4308 = vadd.f32 %v3889, %v4266
      %v4309 = vadd.f32 %v3890, %v4271
      %v4310 = vadd.f32 %v3891, %v4276
      %v4311 = vld [vmem:[#allocation2 + $0x28] sm:$0xff]
      %v4312 = vld [vmem:[#allocation2 + $0x30] sm:$0xff]
      %v4313 = vld [vmem:[#allocation2 + $0x38] sm:$0xff]
      %v4314 = vld [vmem:[#allocation2 + $0x40] sm:$0xff]
      %v4315 = vld [vmem:[#allocation2 + $0x48] sm:$0xff]
      %v4316 = vld [vmem:[#allocation2 + $0x50] sm:$0xff]
      %v4317 = vld [vmem:[#allocation2 + $0x58] sm:$0xff]
      %v4318 = vld [vmem:[#allocation2 + $0x60] sm:$0xff]
      %v4319 = vld [vmem:[#allocation2 + $0x68] sm:$0xff]
      %v4320 = vld [vmem:[#allocation2 + $0x70] sm:$0xff]
      %v4321 = vld [vmem:[#allocation2 + $0x78] sm:$0xff]
      %v4322 = vld [vmem:[#allocation2 + $0x80] sm:$0xff]
      %v4323 = vld [vmem:[#allocation2 + $0x88] sm:$0xff]
      %v4324 = vld [vmem:[#allocation2 + $0x90] sm:$0xff]
      %v4325 = vld [vmem:[#allocation2 + $0x98] sm:$0xff]
      %v4326 = vld [vmem:[#allocation2 + $0xa0] sm:$0xff]
      %v4327 = vld [vmem:[#allocation2 + $0xa8] sm:$0xff]
      %v4328 = vld [vmem:[#allocation2 + $0xb0] sm:$0xff]
      %v4329 = vld [vmem:[#allocation2 + $0xb8] sm:$0xff]
      %v4330 = vld [vmem:[#allocation2 + $0xc0] sm:$0xff]
      %v4331 = vld [vmem:[#allocation2 + $0xc8] sm:$0xff]
      %v4332 = vld [vmem:[#allocation2 + $0xd0] sm:$0xff]
      %v4333 = vld [vmem:[#allocation2 + $0xd8] sm:$0xff]
      %v4334 = vld [vmem:[#allocation2 + $0xe0] sm:$0xff]
      %v4335 = vld [vmem:[#allocation2 + $0xe8] sm:$0xff]
      %v4336 = vld [vmem:[#allocation2 + $0xf0] sm:$0xff]
      %v4337 = vld [vmem:[#allocation2 + $0xf8] sm:$0xff]
      %v4338 = vld [vmem:[#allocation2 + $0x100] sm:$0xff]
      %v4339 = vld [vmem:[#allocation2 + $0x108] sm:$0xff]
      %v4340 = vld [vmem:[#allocation2 + $0x110] sm:$0xff]
      %v4341 = vld [vmem:[#allocation2 + $0x118] sm:$0xff]
      %v4342 = vld [vmem:[#allocation2 + $0x120] sm:$0xff]
      %s4343 = scalar_lea.vmem %s2, 56
      %v4344 = vld [vmem:[%s4343] sm:$0xff]
      %v4346 = vsel %vm826, %v4311, 0
      %v4349 = vsel %vm826, %v4312, 0
      %v4352 = vsel %vm826, %v4313, 0
      %v4355 = vsel %vm826, %v4314, 0
      %v4358 = vsel %vm826, %v4315, 0
      %v4361 = vsel %vm826, %v4316, 0
      %v4364 = vsel %vm826, %v4317, 0
      %v4367 = vsel %vm826, %v4318, 0
      %v4370 = vsel %vm826, %v4319, 0
      %v4373 = vsel %vm826, %v4320, 0
      %v4376 = vsel %vm826, %v4321, 0
      %v4379 = vsel %vm826, %v4322, 0
      %v4382 = vsel %vm826, %v4323, 0
      %v4385 = vsel %vm826, %v4324, 0
      %v4388 = vsel %vm826, %v4325, 0
      %v4391 = vsel %vm826, %v4326, 0
      %v4394 = vsel %vm826, %v4327, 0
      %v4397 = vsel %vm826, %v4328, 0
      %v4400 = vsel %vm826, %v4329, 0
      %v4403 = vsel %vm826, %v4330, 0
      %v4406 = vsel %vm826, %v4331, 0
      %v4409 = vsel %vm826, %v4332, 0
      %v4412 = vsel %vm826, %v4333, 0
      %v4415 = vsel %vm826, %v4334, 0
      %v4418 = vsel %vm826, %v4335, 0
      %v4421 = vsel %vm826, %v4336, 0
      %v4424 = vsel %vm826, %v4337, 0
      %v4427 = vsel %vm826, %v4338, 0
      %v4430 = vsel %vm826, %v4339, 0
      %v4433 = vsel %vm826, %v4340, 0
      %v4436 = vsel %vm826, %v4341, 0
      %v4439 = vsel %vm826, %v4342, 0
      %4441 = vmatprep.subr.mxu0 0.0
      %4442 = vmatpush1.msra.mxu0 %v4344
      %4443 = vmatprep.subr.mxu0 0.0
      %4444 = vmatpush1.msra.mxu0 0.0
      %4445 = vmatprep.subr.mxu0 0.0
      %4446 = vmatpush1.msra.mxu0 0.0
      %4447 = vmatprep.subr.mxu0 0.0
      %4448 = vmatpush1.msra.mxu0 0.0
      %4449 = vmatprep.subr.mxu0 0.0
      %4450 = vmatpush1.msra.mxu0 0.0
      %4451 = vmatprep.subr.mxu0 0.0
      %4452 = vmatpush1.msra.mxu0 0.0
      %4453 = vmatprep.subr.mxu0 0.0
      %4454 = vmatpush1.msra.mxu0 0.0
      %4455 = vmatprep.subr.mxu0 0.0
      %4456 = vmatpush1.msra.mxu0 0.0
      %4457 = vmatprep.subr.mxu0 0.0
      %4458 = vmatpush1.msra.mxu0 0.0
      %4459 = vmatprep.subr.mxu0 0.0
      %4460 = vmatpush1.msra.mxu0 0.0
      %4461 = vmatprep.subr.mxu0 0.0
      %4462 = vmatpush1.msra.mxu0 0.0
      %4463 = vmatprep.subr.mxu0 0.0
      %4464 = vmatpush1.msra.mxu0 0.0
      %4465 = vmatprep.subr.mxu0 0.0
      %4466 = vmatpush1.msra.mxu0 0.0
      %4467 = vmatprep.subr.mxu0 0.0
      %4468 = vmatpush1.msra.mxu0 0.0
      %4469 = vmatprep.subr.mxu0 0.0
      %4470 = vmatpush1.msra.mxu0 0.0
      %4471 = vmatprep.subr.mxu0 0.0
      %4472 = vmatpush1.msra.mxu0 0.0
      %4473 = vmatprep.subr.mxu0 0.0
      %4474 = vmatpush1.msra.mxu0 0.0
      %4475 = vmatprep.subr.mxu0 0.0
      %4476 = vmatpush1.msra.mxu0 0.0
      %4477 = vmatprep.subr.mxu0 0.0
      %4478 = vmatpush1.msra.mxu0 0.0
      %4479 = vmatprep.subr.mxu0 0.0
      %4480 = vmatpush1.msra.mxu0 0.0
      %4481 = vmatprep.subr.mxu0 0.0
      %4482 = vmatpush1.msra.mxu0 0.0
      %4483 = vmatprep.subr.mxu0 0.0
      %4484 = vmatpush1.msra.mxu0 0.0
      %4485 = vmatprep.subr.mxu0 0.0
      %4486 = vmatpush1.msra.mxu0 0.0
      %4487 = vmatprep.subr.mxu0 0.0
      %4488 = vmatpush1.msra.mxu0 0.0
      %4489 = vmatprep.subr.mxu0 0.0
      %4490 = vmatpush1.msra.mxu0 0.0
      %4491 = vmatprep.subr.mxu0 0.0
      %4492 = vmatpush1.msra.mxu0 0.0
      %4493 = vmatprep.subr.mxu0 0.0
      %4494 = vmatpush1.msra.mxu0 0.0
      %4495 = vmatprep.subr.mxu0 0.0
      %4496 = vmatpush1.msra.mxu0 0.0
      %4497 = vmatprep.subr.mxu0 0.0
      %4498 = vmatpush1.msra.mxu0 0.0
      %4499 = vmatprep.subr.mxu0 0.0
      %4500 = vmatpush1.msra.mxu0 0.0
      %4501 = vmatprep.subr.mxu0 0.0
      %4502 = vmatpush1.msra.mxu0 0.0
      %4503 = vmatprep.subr.mxu0 0.0
      %4504 = vmatpush1.msra.mxu0 0.0
      %4505 = vmatprep.mubr.f32.mxu0 0.0
      %4506 = vmatmul.mubr.f32.gmra.mrb[0].mxu0 %v4346
      %v4507 = vpop.f32.mrb[0].mxu0
      %v4508 = vadd.f32 0.0, %v4507
      %v4509 = vpop.f32.mrb[0].mxu0
      %4510 = vmatprep.mubr.f32.mxu0 0.0
      %4511 = vmatmul.mubr.f32.gmra.mrb[0].mxu0 %v4349
      %v4512 = vpop.f32.mrb[0].mxu0
      %v4513 = vadd.f32 0.0, %v4512
      %v4514 = vpop.f32.mrb[0].mxu0
      %4515 = vmatprep.mubr.f32.mxu0 0.0
      %4516 = vmatmul.mubr.f32.gmra.mrb[0].mxu0 %v4352
      %v4517 = vpop.f32.mrb[0].mxu0
      %v4518 = vadd.f32 0.0, %v4517
      %v4519 = vpop.f32.mrb[0].mxu0
      %4520 = vmatprep.mubr.f32.mxu0 0.0
      %4521 = vmatmul.mubr.f32.gmra.mrb[0].mxu0 %v4355
      %v4522 = vpop.f32.mrb[0].mxu0
      %v4523 = vadd.f32 0.0, %v4522
      %v4524 = vpop.f32.mrb[0].mxu0
      %4525 = vmatprep.mubr.f32.mxu0 0.0
      %4526 = vmatmul.mubr.f32.gmra.mrb[0].mxu0 %v4358
      %v4527 = vpop.f32.mrb[0].mxu0
      %v4528 = vadd.f32 0.0, %v4527
      %v4529 = vpop.f32.mrb[0].mxu0
      %4530 = vmatprep.mubr.f32.mxu0 0.0
      %4531 = vmatmul.mubr.f32.gmra.mrb[0].mxu0 %v4361
      %v4532 = vpop.f32.mrb[0].mxu0
      %v4533 = vadd.f32 0.0, %v4532
      %v4534 = vpop.f32.mrb[0].mxu0
      %4535 = vmatprep.mubr.f32.mxu0 0.0
      %4536 = vmatmul.mubr.f32.gmra.mrb[0].mxu0 %v4364
      %v4537 = vpop.f32.mrb[0].mxu0
      %v4538 = vadd.f32 0.0, %v4537
      %v4539 = vpop.f32.mrb[0].mxu0
      %4540 = vmatprep.mubr.f32.mxu0 0.0
      %4541 = vmatmul.mubr.f32.gmra.mrb[0].mxu0 %v4367
      %v4542 = vpop.f32.mrb[0].mxu0
      %v4543 = vadd.f32 0.0, %v4542
      %v4544 = vpop.f32.mrb[0].mxu0
      %4545 = vmatprep.mubr.f32.mxu0 0.0
      %4546 = vmatmul.mubr.f32.gmra.mrb[0].mxu0 %v4370
      %v4547 = vpop.f32.mrb[0].mxu0
      %v4548 = vadd.f32 0.0, %v4547
      %v4549 = vpop.f32.mrb[0].mxu0
      %4550 = vmatprep.mubr.f32.mxu0 0.0
      %4551 = vmatmul.mubr.f32.gmra.mrb[0].mxu0 %v4373
      %v4552 = vpop.f32.mrb[0].mxu0
      %v4553 = vadd.f32 0.0, %v4552
      %v4554 = vpop.f32.mrb[0].mxu0
      %4555 = vmatprep.mubr.f32.mxu0 0.0
      %4556 = vmatmul.mubr.f32.gmra.mrb[0].mxu0 %v4376
      %v4557 = vpop.f32.mrb[0].mxu0
      %v4558 = vadd.f32 0.0, %v4557
      %v4559 = vpop.f32.mrb[0].mxu0
      %4560 = vmatprep.mubr.f32.mxu0 0.0
      %4561 = vmatmul.mubr.f32.gmra.mrb[0].mxu0 %v4379
      %v4562 = vpop.f32.mrb[0].mxu0
      %v4563 = vadd.f32 0.0, %v4562
      %v4564 = vpop.f32.mrb[0].mxu0
      %4565 = vmatprep.mubr.f32.mxu0 0.0
      %4566 = vmatmul.mubr.f32.gmra.mrb[0].mxu0 %v4382
      %v4567 = vpop.f32.mrb[0].mxu0
      %v4568 = vadd.f32 0.0, %v4567
      %v4569 = vpop.f32.mrb[0].mxu0
      %4570 = vmatprep.mubr.f32.mxu0 0.0
      %4571 = vmatmul.mubr.f32.gmra.mrb[0].mxu0 %v4385
      %v4572 = vpop.f32.mrb[0].mxu0
      %v4573 = vadd.f32 0.0, %v4572
      %v4574 = vpop.f32.mrb[0].mxu0
      %4575 = vmatprep.mubr.f32.mxu0 0.0
      %4576 = vmatmul.mubr.f32.gmra.mrb[0].mxu0 %v4388
      %v4577 = vpop.f32.mrb[0].mxu0
      %v4578 = vadd.f32 0.0, %v4577
      %v4579 = vpop.f32.mrb[0].mxu0
      %4580 = vmatprep.mubr.f32.mxu0 0.0
      %4581 = vmatmul.mubr.f32.gmra.mrb[0].mxu0 %v4391
      %v4582 = vpop.f32.mrb[0].mxu0
      %v4583 = vadd.f32 0.0, %v4582
      %v4584 = vpop.f32.mrb[0].mxu0
      %4585 = vmatprep.mubr.f32.mxu0 0.0
      %4586 = vmatmul.mubr.f32.gmra.mrb[0].mxu0 %v4394
      %v4587 = vpop.f32.mrb[0].mxu0
      %v4588 = vadd.f32 0.0, %v4587
      %v4589 = vpop.f32.mrb[0].mxu0
      %4590 = vmatprep.mubr.f32.mxu0 0.0
      %4591 = vmatmul.mubr.f32.gmra.mrb[0].mxu0 %v4397
      %v4592 = vpop.f32.mrb[0].mxu0
      %v4593 = vadd.f32 0.0, %v4592
      %v4594 = vpop.f32.mrb[0].mxu0
      %4595 = vmatprep.mubr.f32.mxu0 0.0
      %4596 = vmatmul.mubr.f32.gmra.mrb[0].mxu0 %v4400
      %v4597 = vpop.f32.mrb[0].mxu0
      %v4598 = vadd.f32 0.0, %v4597
      %v4599 = vpop.f32.mrb[0].mxu0
      %4600 = vmatprep.mubr.f32.mxu0 0.0
      %4601 = vmatmul.mubr.f32.gmra.mrb[0].mxu0 %v4403
      %v4602 = vpop.f32.mrb[0].mxu0
      %v4603 = vadd.f32 0.0, %v4602
      %v4604 = vpop.f32.mrb[0].mxu0
      %4605 = vmatprep.mubr.f32.mxu0 0.0
      %4606 = vmatmul.mubr.f32.gmra.mrb[0].mxu0 %v4406
      %v4607 = vpop.f32.mrb[0].mxu0
      %v4608 = vadd.f32 0.0, %v4607
      %v4609 = vpop.f32.mrb[0].mxu0
      %4610 = vmatprep.mubr.f32.mxu0 0.0
      %4611 = vmatmul.mubr.f32.gmra.mrb[0].mxu0 %v4409
      %v4612 = vpop.f32.mrb[0].mxu0
      %v4613 = vadd.f32 0.0, %v4612
      %v4614 = vpop.f32.mrb[0].mxu0
      %4615 = vmatprep.mubr.f32.mxu0 0.0
      %4616 = vmatmul.mubr.f32.gmra.mrb[0].mxu0 %v4412
      %v4617 = vpop.f32.mrb[0].mxu0
      %v4618 = vadd.f32 0.0, %v4617
      %v4619 = vpop.f32.mrb[0].mxu0
      %4620 = vmatprep.mubr.f32.mxu0 0.0
      %4621 = vmatmul.mubr.f32.gmra.mrb[0].mxu0 %v4415
      %v4622 = vpop.f32.mrb[0].mxu0
      %v4623 = vadd.f32 0.0, %v4622
      %v4624 = vpop.f32.mrb[0].mxu0
      %4625 = vmatprep.mubr.f32.mxu0 0.0
      %4626 = vmatmul.mubr.f32.gmra.mrb[0].mxu0 %v4418
      %v4627 = vpop.f32.mrb[0].mxu0
      %v4628 = vadd.f32 0.0, %v4627
      %v4629 = vpop.f32.mrb[0].mxu0
      %4630 = vmatprep.mubr.f32.mxu0 0.0
      %4631 = vmatmul.mubr.f32.gmra.mrb[0].mxu0 %v4421
      %v4632 = vpop.f32.mrb[0].mxu0
      %v4633 = vadd.f32 0.0, %v4632
      %v4634 = vpop.f32.mrb[0].mxu0
      %4635 = vmatprep.mubr.f32.mxu0 0.0
      %4636 = vmatmul.mubr.f32.gmra.mrb[0].mxu0 %v4424
      %v4637 = vpop.f32.mrb[0].mxu0
      %v4638 = vadd.f32 0.0, %v4637
      %v4639 = vpop.f32.mrb[0].mxu0
      %4640 = vmatprep.mubr.f32.mxu0 0.0
      %4641 = vmatmul.mubr.f32.gmra.mrb[0].mxu0 %v4427
      %v4642 = vpop.f32.mrb[0].mxu0
      %v4643 = vadd.f32 0.0, %v4642
      %v4644 = vpop.f32.mrb[0].mxu0
      %4645 = vmatprep.mubr.f32.mxu0 0.0
      %4646 = vmatmul.mubr.f32.gmra.mrb[0].mxu0 %v4430
      %v4647 = vpop.f32.mrb[0].mxu0
      %v4648 = vadd.f32 0.0, %v4647
      %v4649 = vpop.f32.mrb[0].mxu0
      %4650 = vmatprep.mubr.f32.mxu0 0.0
      %4651 = vmatmul.mubr.f32.gmra.mrb[0].mxu0 %v4433
      %v4652 = vpop.f32.mrb[0].mxu0
      %v4653 = vadd.f32 0.0, %v4652
      %v4654 = vpop.f32.mrb[0].mxu0
      %4655 = vmatprep.mubr.f32.mxu0 0.0
      %4656 = vmatmul.mubr.f32.gmra.mrb[0].mxu0 %v4436
      %v4657 = vpop.f32.mrb[0].mxu0
      %v4658 = vadd.f32 0.0, %v4657
      %v4659 = vpop.f32.mrb[0].mxu0
      %4660 = vmatprep.mubr.f32.mxu0 0.0
      %4661 = vmatmul.mubr.f32.gmra.mrb[0].mxu0 %v4439
      %v4662 = vpop.f32.mrb[0].mxu0
      %v4663 = vadd.f32 0.0, %v4662
      %v4664 = vpop.f32.mrb[0].mxu0
      %4665 = vdwg.mxu0
      %v4666 = vadd.f32 %v4279, %v4508
      %v4667 = vadd.f32 %v4280, %v4513
      %v4668 = vadd.f32 %v4281, %v4518
      %v4669 = vadd.f32 %v4282, %v4523
      %v4670 = vadd.f32 %v4283, %v4528
      %v4671 = vadd.f32 %v4284, %v4533
      %v4672 = vadd.f32 %v4285, %v4538
      %v4673 = vadd.f32 %v4286, %v4543
      %v4674 = vadd.f32 %v4287, %v4548
      %v4675 = vadd.f32 %v4288, %v4553
      %v4676 = vadd.f32 %v4289, %v4558
      %v4677 = vadd.f32 %v4290, %v4563
      %v4678 = vadd.f32 %v4291, %v4568
      %v4679 = vadd.f32 %v4292, %v4573
      %v4680 = vadd.f32 %v4293, %v4578
      %v4681 = vadd.f32 %v4294, %v4583
      %v4682 = vadd.f32 %v4295, %v4588
      %v4683 = vadd.f32 %v4296, %v4593
      %v4684 = vadd.f32 %v4297, %v4598
      %v4685 = vadd.f32 %v4298, %v4603
      %v4686 = vadd.f32 %v4299, %v4608
      %v4687 = vadd.f32 %v4300, %v4613
      %v4688 = vadd.f32 %v4301, %v4618
      %v4689 = vadd.f32 %v4302, %v4623
      %v4690 = vadd.f32 %v4303, %v4628
      %v4691 = vadd.f32 %v4304, %v4633
      %v4692 = vadd.f32 %v4305, %v4638
      %v4693 = vadd.f32 %v4306, %v4643
      %v4694 = vadd.f32 %v4307, %v4648
      %v4695 = vadd.f32 %v4308, %v4653
      %v4696 = vadd.f32 %v4309, %v4658
      %v4697 = vadd.f32 %v4310, %v4663
      %v4698 = vld [vmem:[#allocation2 + $0x29] sm:$0xff]
      %v4699 = vld [vmem:[#allocation2 + $0x31] sm:$0xff]
      %v4700 = vld [vmem:[#allocation2 + $0x39] sm:$0xff]
      %v4701 = vld [vmem:[#allocation2 + $0x41] sm:$0xff]
      %v4702 = vld [vmem:[#allocation2 + $0x49] sm:$0xff]
      %v4703 = vld [vmem:[#allocation2 + $0x51] sm:$0xff]
      %v4704 = vld [vmem:[#allocation2 + $0x59] sm:$0xff]
      %v4705 = vld [vmem:[#allocation2 + $0x61] sm:$0xff]
      %v4706 = vld [vmem:[#allocation2 + $0x69] sm:$0xff]
      %v4707 = vld [vmem:[#allocation2 + $0x71] sm:$0xff]
      %v4708 = vld [vmem:[#allocation2 + $0x79] sm:$0xff]
      %v4709 = vld [vmem:[#allocation2 + $0x81] sm:$0xff]
      %v4710 = vld [vmem:[#allocation2 + $0x89] sm:$0xff]
      %v4711 = vld [vmem:[#allocation2 + $0x91] sm:$0xff]
      %v4712 = vld [vmem:[#allocation2 + $0x99] sm:$0xff]
      %v4713 = vld [vmem:[#allocation2 + $0xa1] sm:$0xff]
      %v4714 = vld [vmem:[#allocation2 + $0xa9] sm:$0xff]
      %v4715 = vld [vmem:[#allocation2 + $0xb1] sm:$0xff]
      %v4716 = vld [vmem:[#allocation2 + $0xb9] sm:$0xff]
      %v4717 = vld [vmem:[#allocation2 + $0xc1] sm:$0xff]
      %v4718 = vld [vmem:[#allocation2 + $0xc9] sm:$0xff]
      %v4719 = vld [vmem:[#allocation2 + $0xd1] sm:$0xff]
      %v4720 = vld [vmem:[#allocation2 + $0xd9] sm:$0xff]
      %v4721 = vld [vmem:[#allocation2 + $0xe1] sm:$0xff]
      %v4722 = vld [vmem:[#allocation2 + $0xe9] sm:$0xff]
      %v4723 = vld [vmem:[#allocation2 + $0xf1] sm:$0xff]
      %v4724 = vld [vmem:[#allocation2 + $0xf9] sm:$0xff]
      %v4725 = vld [vmem:[#allocation2 + $0x101] sm:$0xff]
      %v4726 = vld [vmem:[#allocation2 + $0x109] sm:$0xff]
      %v4727 = vld [vmem:[#allocation2 + $0x111] sm:$0xff]
      %v4728 = vld [vmem:[#allocation2 + $0x119] sm:$0xff]
      %v4729 = vld [vmem:[#allocation2 + $0x121] sm:$0xff]
      %v4730 = vsel %vm2248, 0.0, %v4698
      %v4731 = vsel %vm2249, 0.0, %v4699
      %v4732 = vsel %vm2250, 0.0, %v4700
      %v4733 = vsel %vm2251, 0.0, %v4701
      %v4734 = vsel %vm2252, 0.0, %v4702
      %v4735 = vsel %vm2253, 0.0, %v4703
      %v4736 = vsel %vm2254, 0.0, %v4704
      %v4737 = vsel %vm2255, 0.0, %v4705
      %v4738 = vsel %vm2256, 0.0, %v4706
      %v4739 = vsel %vm2257, 0.0, %v4707
      %v4740 = vsel %vm2258, 0.0, %v4708
      %v4741 = vsel %vm2259, 0.0, %v4709
      %v4742 = vsel %vm2260, 0.0, %v4710
      %v4743 = vsel %vm2261, 0.0, %v4711
      %v4744 = vsel %vm2262, 0.0, %v4712
      %v4745 = vsel %vm2263, 0.0, %v4713
      %v4746 = vsel %vm2264, 0.0, %v4714
      %v4747 = vsel %vm2265, 0.0, %v4715
      %v4748 = vsel %vm2266, 0.0, %v4716
      %v4749 = vsel %vm2267, 0.0, %v4717
      %v4750 = vsel %vm2268, 0.0, %v4718
      %v4751 = vsel %vm2269, 0.0, %v4719
      %v4752 = vsel %vm2270, 0.0, %v4720
      %v4753 = vsel %vm2271, 0.0, %v4721
      %v4754 = vsel %vm2272, 0.0, %v4722
      %v4755 = vsel %vm2273, 0.0, %v4723
      %v4756 = vsel %vm2274, 0.0, %v4724
      %v4757 = vsel %vm2275, 0.0, %v4725
      %v4758 = vsel %vm2276, 0.0, %v4726
      %v4759 = vsel %vm2277, 0.0, %v4727
      %v4760 = vsel %vm2278, 0.0, %v4728
      %v4761 = vsel %vm2279, 0.0, %v4729
      %s4762 = scalar_lea.vmem %s2, 64
      %v4763 = vld [vmem:[%s4762] sm:$0xff]
      %v4765 = vsel %vm826, %v4730, 0
      %v4768 = vsel %vm826, %v4731, 0
      %v4771 = vsel %vm826, %v4732, 0
      %v4774 = vsel %vm826, %v4733, 0
      %v4777 = vsel %vm826, %v4734, 0
      %v4780 = vsel %vm826, %v4735, 0
      %v4783 = vsel %vm826, %v4736, 0
      %v4786 = vsel %vm826, %v4737, 0
      %v4789 = vsel %vm826, %v4738, 0
      %v4792 = vsel %vm826, %v4739, 0
      %v4795 = vsel %vm826, %v4740, 0
      %v4798 = vsel %vm826, %v4741, 0
      %v4801 = vsel %vm826, %v4742, 0
      %v4804 = vsel %vm826, %v4743, 0
      %v4807 = vsel %vm826, %v4744, 0
      %v4810 = vsel %vm826, %v4745, 0
      %v4813 = vsel %vm826, %v4746, 0
      %v4816 = vsel %vm826, %v4747, 0
      %v4819 = vsel %vm826, %v4748, 0
      %v4822 = vsel %vm826, %v4749, 0
      %v4825 = vsel %vm826, %v4750, 0
      %v4828 = vsel %vm826, %v4751, 0
      %v4831 = vsel %vm826, %v4752, 0
      %v4834 = vsel %vm826, %v4753, 0
      %v4837 = vsel %vm826, %v4754, 0
      %v4840 = vsel %vm826, %v4755, 0
      %v4843 = vsel %vm826, %v4756, 0
      %v4846 = vsel %vm826, %v4757, 0
      %v4849 = vsel %vm826, %v4758, 0
      %v4852 = vsel %vm826, %v4759, 0
      %v4855 = vsel %vm826, %v4760, 0
      %v4858 = vsel %vm826, %v4761, 0
      %4860 = vmatprep.subr.mxu0 0.0
      %4861 = vmatpush1.msra.mxu0 %v4763
      %4862 = vmatprep.subr.mxu0 0.0
      %4863 = vmatpush1.msra.mxu0 0.0
      %4864 = vmatprep.subr.mxu0 0.0
      %4865 = vmatpush1.msra.mxu0 0.0
      %4866 = vmatprep.subr.mxu0 0.0
      %4867 = vmatpush1.msra.mxu0 0.0
      %4868 = vmatprep.subr.mxu0 0.0
      %4869 = vmatpush1.msra.mxu0 0.0
      %4870 = vmatprep.subr.mxu0 0.0
      %4871 = vmatpush1.msra.mxu0 0.0
      %4872 = vmatprep.subr.mxu0 0.0
      %4873 = vmatpush1.msra.mxu0 0.0
      %4874 = vmatprep.subr.mxu0 0.0
      %4875 = vmatpush1.msra.mxu0 0.0
      %4876 = vmatprep.subr.mxu0 0.0
      %4877 = vmatpush1.msra.mxu0 0.0
      %4878 = vmatprep.subr.mxu0 0.0
      %4879 = vmatpush1.msra.mxu0 0.0
      %4880 = vmatprep.subr.mxu0 0.0
      %4881 = vmatpush1.msra.mxu0 0.0
      %4882 = vmatprep.subr.mxu0 0.0
      %4883 = vmatpush1.msra.mxu0 0.0
      %4884 = vmatprep.subr.mxu0 0.0
      %4885 = vmatpush1.msra.mxu0 0.0
      %4886 = vmatprep.subr.mxu0 0.0
      %4887 = vmatpush1.msra.mxu0 0.0
      %4888 = vmatprep.subr.mxu0 0.0
      %4889 = vmatpush1.msra.mxu0 0.0
      %4890 = vmatprep.subr.mxu0 0.0
      %4891 = vmatpush1.msra.mxu0 0.0
      %4892 = vmatprep.subr.mxu0 0.0
      %4893 = vmatpush1.msra.mxu0 0.0
      %4894 = vmatprep.subr.mxu0 0.0
      %4895 = vmatpush1.msra.mxu0 0.0
      %4896 = vmatprep.subr.mxu0 0.0
      %4897 = vmatpush1.msra.mxu0 0.0
      %4898 = vmatprep.subr.mxu0 0.0
      %4899 = vmatpush1.msra.mxu0 0.0
      %4900 = vmatprep.subr.mxu0 0.0
      %4901 = vmatpush1.msra.mxu0 0.0
      %4902 = vmatprep.subr.mxu0 0.0
      %4903 = vmatpush1.msra.mxu0 0.0
      %4904 = vmatprep.subr.mxu0 0.0
      %4905 = vmatpush1.msra.mxu0 0.0
      %4906 = vmatprep.subr.mxu0 0.0
      %4907 = vmatpush1.msra.mxu0 0.0
      %4908 = vmatprep.subr.mxu0 0.0
      %4909 = vmatpush1.msra.mxu0 0.0
      %4910 = vmatprep.subr.mxu0 0.0
      %4911 = vmatpush1.msra.mxu0 0.0
      %4912 = vmatprep.subr.mxu0 0.0
      %4913 = vmatpush1.msra.mxu0 0.0
      %4914 = vmatprep.subr.mxu0 0.0
      %4915 = vmatpush1.msra.mxu0 0.0
      %4916 = vmatprep.subr.mxu0 0.0
      %4917 = vmatpush1.msra.mxu0 0.0
      %4918 = vmatprep.subr.mxu0 0.0
      %4919 = vmatpush1.msra.mxu0 0.0
      %4920 = vmatprep.subr.mxu0 0.0
      %4921 = vmatpush1.msra.mxu0 0.0
      %4922 = vmatprep.subr.mxu0 0.0
      %4923 = vmatpush1.msra.mxu0 0.0
      %4924 = vmatprep.mubr.f32.mxu0 0.0
      %4925 = vmatmul.mubr.f32.gmra.mrb[0].mxu0 %v4765
      %v4926 = vpop.f32.mrb[0].mxu0
      %v4927 = vadd.f32 0.0, %v4926
      %v4928 = vpop.f32.mrb[0].mxu0
      %4929 = vmatprep.mubr.f32.mxu0 0.0
      %4930 = vmatmul.mubr.f32.gmra.mrb[0].mxu0 %v4768
      %v4931 = vpop.f32.mrb[0].mxu0
      %v4932 = vadd.f32 0.0, %v4931
      %v4933 = vpop.f32.mrb[0].mxu0
      %4934 = vmatprep.mubr.f32.mxu0 0.0
      %4935 = vmatmul.mubr.f32.gmra.mrb[0].mxu0 %v4771
      %v4936 = vpop.f32.mrb[0].mxu0
      %v4937 = vadd.f32 0.0, %v4936
      %v4938 = vpop.f32.mrb[0].mxu0
      %4939 = vmatprep.mubr.f32.mxu0 0.0
      %4940 = vmatmul.mubr.f32.gmra.mrb[0].mxu0 %v4774
      %v4941 = vpop.f32.mrb[0].mxu0
      %v4942 = vadd.f32 0.0, %v4941
      %v4943 = vpop.f32.mrb[0].mxu0
      %4944 = vmatprep.mubr.f32.mxu0 0.0
      %4945 = vmatmul.mubr.f32.gmra.mrb[0].mxu0 %v4777
      %v4946 = vpop.f32.mrb[0].mxu0
      %v4947 = vadd.f32 0.0, %v4946
      %v4948 = vpop.f32.mrb[0].mxu0
      %4949 = vmatprep.mubr.f32.mxu0 0.0
      %4950 = vmatmul.mubr.f32.gmra.mrb[0].mxu0 %v4780
      %v4951 = vpop.f32.mrb[0].mxu0
      %v4952 = vadd.f32 0.0, %v4951
      %v4953 = vpop.f32.mrb[0].mxu0
      %4954 = vmatprep.mubr.f32.mxu0 0.0
      %4955 = vmatmul.mubr.f32.gmra.mrb[0].mxu0 %v4783
      %v4956 = vpop.f32.mrb[0].mxu0
      %v4957 = vadd.f32 0.0, %v4956
      %v4958 = vpop.f32.mrb[0].mxu0
      %4959 = vmatprep.mubr.f32.mxu0 0.0
      %4960 = vmatmul.mubr.f32.gmra.mrb[0].mxu0 %v4786
      %v4961 = vpop.f32.mrb[0].mxu0
      %v4962 = vadd.f32 0.0, %v4961
      %v4963 = vpop.f32.mrb[0].mxu0
      %4964 = vmatprep.mubr.f32.mxu0 0.0
      %4965 = vmatmul.mubr.f32.gmra.mrb[0].mxu0 %v4789
      %v4966 = vpop.f32.mrb[0].mxu0
      %v4967 = vadd.f32 0.0, %v4966
      %v4968 = vpop.f32.mrb[0].mxu0
      %4969 = vmatprep.mubr.f32.mxu0 0.0
      %4970 = vmatmul.mubr.f32.gmra.mrb[0].mxu0 %v4792
      %v4971 = vpop.f32.mrb[0].mxu0
      %v4972 = vadd.f32 0.0, %v4971
      %v4973 = vpop.f32.mrb[0].mxu0
      %4974 = vmatprep.mubr.f32.mxu0 0.0
      %4975 = vmatmul.mubr.f32.gmra.mrb[0].mxu0 %v4795
      %v4976 = vpop.f32.mrb[0].mxu0
      %v4977 = vadd.f32 0.0, %v4976
      %v4978 = vpop.f32.mrb[0].mxu0
      %4979 = vmatprep.mubr.f32.mxu0 0.0
      %4980 = vmatmul.mubr.f32.gmra.mrb[0].mxu0 %v4798
      %v4981 = vpop.f32.mrb[0].mxu0
      %v4982 = vadd.f32 0.0, %v4981
      %v4983 = vpop.f32.mrb[0].mxu0
      %4984 = vmatprep.mubr.f32.mxu0 0.0
      %4985 = vmatmul.mubr.f32.gmra.mrb[0].mxu0 %v4801
      %v4986 = vpop.f32.mrb[0].mxu0
      %v4987 = vadd.f32 0.0, %v4986
      %v4988 = vpop.f32.mrb[0].mxu0
      %4989 = vmatprep.mubr.f32.mxu0 0.0
      %4990 = vmatmul.mubr.f32.gmra.mrb[0].mxu0 %v4804
      %v4991 = vpop.f32.mrb[0].mxu0
      %v4992 = vadd.f32 0.0, %v4991
      %v4993 = vpop.f32.mrb[0].mxu0
      %4994 = vmatprep.mubr.f32.mxu0 0.0
      %4995 = vmatmul.mubr.f32.gmra.mrb[0].mxu0 %v4807
      %v4996 = vpop.f32.mrb[0].mxu0
      %v4997 = vadd.f32 0.0, %v4996
      %v4998 = vpop.f32.mrb[0].mxu0
      %4999 = vmatprep.mubr.f32.mxu0 0.0
      %5000 = vmatmul.mubr.f32.gmra.mrb[0].mxu0 %v4810
      %v5001 = vpop.f32.mrb[0].mxu0
      %v5002 = vadd.f32 0.0, %v5001
      %v5003 = vpop.f32.mrb[0].mxu0
      %5004 = vmatprep.mubr.f32.mxu0 0.0
      %5005 = vmatmul.mubr.f32.gmra.mrb[0].mxu0 %v4813
      %v5006 = vpop.f32.mrb[0].mxu0
      %v5007 = vadd.f32 0.0, %v5006
      %v5008 = vpop.f32.mrb[0].mxu0
      %5009 = vmatprep.mubr.f32.mxu0 0.0
      %5010 = vmatmul.mubr.f32.gmra.mrb[0].mxu0 %v4816
      %v5011 = vpop.f32.mrb[0].mxu0
      %v5012 = vadd.f32 0.0, %v5011
      %v5013 = vpop.f32.mrb[0].mxu0
      %5014 = vmatprep.mubr.f32.mxu0 0.0
      %5015 = vmatmul.mubr.f32.gmra.mrb[0].mxu0 %v4819
      %v5016 = vpop.f32.mrb[0].mxu0
      %v5017 = vadd.f32 0.0, %v5016
      %v5018 = vpop.f32.mrb[0].mxu0
      %5019 = vmatprep.mubr.f32.mxu0 0.0
      %5020 = vmatmul.mubr.f32.gmra.mrb[0].mxu0 %v4822
      %v5021 = vpop.f32.mrb[0].mxu0
      %v5022 = vadd.f32 0.0, %v5021
      %v5023 = vpop.f32.mrb[0].mxu0
      %5024 = vmatprep.mubr.f32.mxu0 0.0
      %5025 = vmatmul.mubr.f32.gmra.mrb[0].mxu0 %v4825
      %v5026 = vpop.f32.mrb[0].mxu0
      %v5027 = vadd.f32 0.0, %v5026
      %v5028 = vpop.f32.mrb[0].mxu0
      %5029 = vmatprep.mubr.f32.mxu0 0.0
      %5030 = vmatmul.mubr.f32.gmra.mrb[0].mxu0 %v4828
      %v5031 = vpop.f32.mrb[0].mxu0
      %v5032 = vadd.f32 0.0, %v5031
      %v5033 = vpop.f32.mrb[0].mxu0
      %5034 = vmatprep.mubr.f32.mxu0 0.0
      %5035 = vmatmul.mubr.f32.gmra.mrb[0].mxu0 %v4831
      %v5036 = vpop.f32.mrb[0].mxu0
      %v5037 = vadd.f32 0.0, %v5036
      %v5038 = vpop.f32.mrb[0].mxu0
      %5039 = vmatprep.mubr.f32.mxu0 0.0
      %5040 = vmatmul.mubr.f32.gmra.mrb[0].mxu0 %v4834
      %v5041 = vpop.f32.mrb[0].mxu0
      %v5042 = vadd.f32 0.0, %v5041
      %v5043 = vpop.f32.mrb[0].mxu0
      %5044 = vmatprep.mubr.f32.mxu0 0.0
      %5045 = vmatmul.mubr.f32.gmra.mrb[0].mxu0 %v4837
      %v5046 = vpop.f32.mrb[0].mxu0
      %v5047 = vadd.f32 0.0, %v5046
      %v5048 = vpop.f32.mrb[0].mxu0
      %5049 = vmatprep.mubr.f32.mxu0 0.0
      %5050 = vmatmul.mubr.f32.gmra.mrb[0].mxu0 %v4840
      %v5051 = vpop.f32.mrb[0].mxu0
      %v5052 = vadd.f32 0.0, %v5051
      %v5053 = vpop.f32.mrb[0].mxu0
      %5054 = vmatprep.mubr.f32.mxu0 0.0
      %5055 = vmatmul.mubr.f32.gmra.mrb[0].mxu0 %v4843
      %v5056 = vpop.f32.mrb[0].mxu0
      %v5057 = vadd.f32 0.0, %v5056
      %v5058 = vpop.f32.mrb[0].mxu0
      %5059 = vmatprep.mubr.f32.mxu0 0.0
      %5060 = vmatmul.mubr.f32.gmra.mrb[0].mxu0 %v4846
      %v5061 = vpop.f32.mrb[0].mxu0
      %v5062 = vadd.f32 0.0, %v5061
      %v5063 = vpop.f32.mrb[0].mxu0
      %5064 = vmatprep.mubr.f32.mxu0 0.0
      %5065 = vmatmul.mubr.f32.gmra.mrb[0].mxu0 %v4849
      %v5066 = vpop.f32.mrb[0].mxu0
      %v5067 = vadd.f32 0.0, %v5066
      %v5068 = vpop.f32.mrb[0].mxu0
      %5069 = vmatprep.mubr.f32.mxu0 0.0
      %5070 = vmatmul.mubr.f32.gmra.mrb[0].mxu0 %v4852
      %v5071 = vpop.f32.mrb[0].mxu0
      %v5072 = vadd.f32 0.0, %v5071
      %v5073 = vpop.f32.mrb[0].mxu0
      %5074 = vmatprep.mubr.f32.mxu0 0.0
      %5075 = vmatmul.mubr.f32.gmra.mrb[0].mxu0 %v4855
      %v5076 = vpop.f32.mrb[0].mxu0
      %v5077 = vadd.f32 0.0, %v5076
      %v5078 = vpop.f32.mrb[0].mxu0
      %5079 = vmatprep.mubr.f32.mxu0 0.0
      %5080 = vmatmul.mubr.f32.gmra.mrb[0].mxu0 %v4858
      %v5081 = vpop.f32.mrb[0].mxu0
      %v5082 = vadd.f32 0.0, %v5081
      %v5083 = vpop.f32.mrb[0].mxu0
      %5084 = vdwg.mxu0
      %v5085 = vadd.f32 %v4666, %v4927
      %v5086 = vadd.f32 %v4667, %v4932
      %v5087 = vadd.f32 %v4668, %v4937
      %v5088 = vadd.f32 %v4669, %v4942
      %v5089 = vadd.f32 %v4670, %v4947
      %v5090 = vadd.f32 %v4671, %v4952
      %v5091 = vadd.f32 %v4672, %v4957
      %v5092 = vadd.f32 %v4673, %v4962
      %v5093 = vadd.f32 %v4674, %v4967
      %v5094 = vadd.f32 %v4675, %v4972
      %v5095 = vadd.f32 %v4676, %v4977
      %v5096 = vadd.f32 %v4677, %v4982
      %v5097 = vadd.f32 %v4678, %v4987
      %v5098 = vadd.f32 %v4679, %v4992
      %v5099 = vadd.f32 %v4680, %v4997
      %v5100 = vadd.f32 %v4681, %v5002
      %v5101 = vadd.f32 %v4682, %v5007
      %v5102 = vadd.f32 %v4683, %v5012
      %v5103 = vadd.f32 %v4684, %v5017
      %v5104 = vadd.f32 %v4685, %v5022
      %v5105 = vadd.f32 %v4686, %v5027
      %v5106 = vadd.f32 %v4687, %v5032
      %v5107 = vadd.f32 %v4688, %v5037
      %v5108 = vadd.f32 %v4689, %v5042
      %v5109 = vadd.f32 %v4690, %v5047
      %v5110 = vadd.f32 %v4691, %v5052
      %v5111 = vadd.f32 %v4692, %v5057
      %v5112 = vadd.f32 %v4693, %v5062
      %v5113 = vadd.f32 %v4694, %v5067
      %v5114 = vadd.f32 %v4695, %v5072
      %v5115 = vadd.f32 %v4696, %v5077
      %v5116 = vadd.f32 %v4697, %v5082
      %v5117 = vld [vmem:[%s6] sm:$0x1]
      %v5119 = vlaneseq
      %v5120 = vshrl.u32 %v5119, 7
      %v5121 = vsub.s32 0, %v5120
      %v5122 = vrot.slane %v5117, %v5121
      %v5124 = vmul.f32 %v5085, %v5122
      %v5125 = vmul.f32 %v5086, %v5122
      %v5126 = vmul.f32 %v5087, %v5122
      %v5127 = vmul.f32 %v5088, %v5122
      %v5128 = vmul.f32 %v5089, %v5122
      %v5129 = vmul.f32 %v5090, %v5122
      %v5130 = vmul.f32 %v5091, %v5122
      %v5131 = vmul.f32 %v5092, %v5122
      %v5132 = vmul.f32 %v5093, %v5122
      %v5133 = vmul.f32 %v5094, %v5122
      %v5134 = vmul.f32 %v5095, %v5122
      %v5135 = vmul.f32 %v5096, %v5122
      %v5136 = vmul.f32 %v5097, %v5122
      %v5137 = vmul.f32 %v5098, %v5122
      %v5138 = vmul.f32 %v5099, %v5122
      %v5139 = vmul.f32 %v5100, %v5122
      %v5140 = vmul.f32 %v5101, %v5122
      %v5141 = vmul.f32 %v5102, %v5122
      %v5142 = vmul.f32 %v5103, %v5122
      %v5143 = vmul.f32 %v5104, %v5122
      %v5144 = vmul.f32 %v5105, %v5122
      %v5145 = vmul.f32 %v5106, %v5122
      %v5146 = vmul.f32 %v5107, %v5122
      %v5147 = vmul.f32 %v5108, %v5122
      %v5148 = vmul.f32 %v5109, %v5122
      %v5149 = vmul.f32 %v5110, %v5122
      %v5150 = vmul.f32 %v5111, %v5122
      %v5151 = vmul.f32 %v5112, %v5122
      %v5152 = vmul.f32 %v5113, %v5122
      %v5153 = vmul.f32 %v5114, %v5122
      %v5154 = vmul.f32 %v5115, %v5122
      %v5155 = vmul.f32 %v5116, %v5122
      %v5156 = vld [vmem:[%s7] sm:$0x1]
      %v5158 = vlaneseq
      %v5159 = vshrl.u32 %v5158, 7
      %v5160 = vsub.s32 0, %v5159
      %v5161 = vrot.slane %v5156, %v5160
      %v5163 = vadd.f32 %v5124, %v5161
      %v5164 = vadd.f32 %v5125, %v5161
      %v5165 = vadd.f32 %v5126, %v5161
      %v5166 = vadd.f32 %v5127, %v5161
      %v5167 = vadd.f32 %v5128, %v5161
      %v5168 = vadd.f32 %v5129, %v5161
      %v5169 = vadd.f32 %v5130, %v5161
      %v5170 = vadd.f32 %v5131, %v5161
      %v5171 = vadd.f32 %v5132, %v5161
      %v5172 = vadd.f32 %v5133, %v5161
      %v5173 = vadd.f32 %v5134, %v5161
      %v5174 = vadd.f32 %v5135, %v5161
      %v5175 = vadd.f32 %v5136, %v5161
      %v5176 = vadd.f32 %v5137, %v5161
      %v5177 = vadd.f32 %v5138, %v5161
      %v5178 = vadd.f32 %v5139, %v5161
      %v5179 = vadd.f32 %v5140, %v5161
      %v5180 = vadd.f32 %v5141, %v5161
      %v5181 = vadd.f32 %v5142, %v5161
      %v5182 = vadd.f32 %v5143, %v5161
      %v5183 = vadd.f32 %v5144, %v5161
      %v5184 = vadd.f32 %v5145, %v5161
      %v5185 = vadd.f32 %v5146, %v5161
      %v5186 = vadd.f32 %v5147, %v5161
      %v5187 = vadd.f32 %v5148, %v5161
      %v5188 = vadd.f32 %v5149, %v5161
      %v5189 = vadd.f32 %v5150, %v5161
      %v5190 = vadd.f32 %v5151, %v5161
      %v5191 = vadd.f32 %v5152, %v5161
      %v5192 = vadd.f32 %v5153, %v5161
      %v5193 = vadd.f32 %v5154, %v5161
      %v5194 = vadd.f32 %v5155, %v5161
      %v5195 = vmax.f32 %v5163, 0.0
      %v5196 = vmax.f32 %v5164, 0.0
      %v5197 = vmax.f32 %v5165, 0.0
      %v5198 = vmax.f32 %v5166, 0.0
      %v5199 = vmax.f32 %v5167, 0.0
      %v5200 = vmax.f32 %v5168, 0.0
      %v5201 = vmax.f32 %v5169, 0.0
      %v5202 = vmax.f32 %v5170, 0.0
      %v5203 = vmax.f32 %v5171, 0.0
      %v5204 = vmax.f32 %v5172, 0.0
      %v5205 = vmax.f32 %v5173, 0.0
      %v5206 = vmax.f32 %v5174, 0.0
      %v5207 = vmax.f32 %v5175, 0.0
      %v5208 = vmax.f32 %v5176, 0.0
      %v5209 = vmax.f32 %v5177, 0.0
      %v5210 = vmax.f32 %v5178, 0.0
      %v5211 = vmax.f32 %v5179, 0.0
      %v5212 = vmax.f32 %v5180, 0.0
      %v5213 = vmax.f32 %v5181, 0.0
      %v5214 = vmax.f32 %v5182, 0.0
      %v5215 = vmax.f32 %v5183, 0.0
      %v5216 = vmax.f32 %v5184, 0.0
      %v5217 = vmax.f32 %v5185, 0.0
      %v5218 = vmax.f32 %v5186, 0.0
      %v5219 = vmax.f32 %v5187, 0.0
      %v5220 = vmax.f32 %v5188, 0.0
      %v5221 = vmax.f32 %v5189, 0.0
      %v5222 = vmax.f32 %v5190, 0.0
      %v5223 = vmax.f32 %v5191, 0.0
      %v5224 = vmax.f32 %v5192, 0.0
      %v5225 = vmax.f32 %v5193, 0.0
      %v5226 = vmax.f32 %v5194, 0.0
      %v5227 = vld [vmem:[%s3] sm:$0xff]
      %v5229 = vsel %vm826, %v5195, 0
      %v5232 = vsel %vm826, %v5196, 0
      %v5235 = vsel %vm826, %v5197, 0
      %v5238 = vsel %vm826, %v5198, 0
      %v5241 = vsel %vm826, %v5199, 0
      %v5244 = vsel %vm826, %v5200, 0
      %v5247 = vsel %vm826, %v5201, 0
      %v5250 = vsel %vm826, %v5202, 0
      %v5253 = vsel %vm826, %v5203, 0
      %v5256 = vsel %vm826, %v5204, 0
      %v5259 = vsel %vm826, %v5205, 0
      %v5262 = vsel %vm826, %v5206, 0
      %v5265 = vsel %vm826, %v5207, 0
      %v5268 = vsel %vm826, %v5208, 0
      %v5271 = vsel %vm826, %v5209, 0
      %v5274 = vsel %vm826, %v5210, 0
      %v5277 = vsel %vm826, %v5211, 0
      %v5280 = vsel %vm826, %v5212, 0
      %v5283 = vsel %vm826, %v5213, 0
      %v5286 = vsel %vm826, %v5214, 0
      %v5289 = vsel %vm826, %v5215, 0
      %v5292 = vsel %vm826, %v5216, 0
      %v5295 = vsel %vm826, %v5217, 0
      %v5298 = vsel %vm826, %v5218, 0
      %v5301 = vsel %vm826, %v5219, 0
      %v5304 = vsel %vm826, %v5220, 0
      %v5307 = vsel %vm826, %v5221, 0
      %v5310 = vsel %vm826, %v5222, 0
      %v5313 = vsel %vm826, %v5223, 0
      %v5316 = vsel %vm826, %v5224, 0
      %v5319 = vsel %vm826, %v5225, 0
      %v5322 = vsel %vm826, %v5226, 0
      %5324 = vmatprep.subr.mxu0 0.0
      %5325 = vmatpush1.msra.mxu0 %v5227
      %5326 = vmatprep.subr.mxu0 0.0
      %5327 = vmatpush1.msra.mxu0 0.0
      %5328 = vmatprep.subr.mxu0 0.0
      %5329 = vmatpush1.msra.mxu0 0.0
      %5330 = vmatprep.subr.mxu0 0.0
      %5331 = vmatpush1.msra.mxu0 0.0
      %5332 = vmatprep.subr.mxu0 0.0
      %5333 = vmatpush1.msra.mxu0 0.0
      %5334 = vmatprep.subr.mxu0 0.0
      %5335 = vmatpush1.msra.mxu0 0.0
      %5336 = vmatprep.subr.mxu0 0.0
      %5337 = vmatpush1.msra.mxu0 0.0
      %5338 = vmatprep.subr.mxu0 0.0
      %5339 = vmatpush1.msra.mxu0 0.0
      %5340 = vmatprep.subr.mxu0 0.0
      %5341 = vmatpush1.msra.mxu0 0.0
      %5342 = vmatprep.subr.mxu0 0.0
      %5343 = vmatpush1.msra.mxu0 0.0
      %5344 = vmatprep.subr.mxu0 0.0
      %5345 = vmatpush1.msra.mxu0 0.0
      %5346 = vmatprep.subr.mxu0 0.0
      %5347 = vmatpush1.msra.mxu0 0.0
      %5348 = vmatprep.subr.mxu0 0.0
      %5349 = vmatpush1.msra.mxu0 0.0
      %5350 = vmatprep.subr.mxu0 0.0
      %5351 = vmatpush1.msra.mxu0 0.0
      %5352 = vmatprep.subr.mxu0 0.0
      %5353 = vmatpush1.msra.mxu0 0.0
      %5354 = vmatprep.subr.mxu0 0.0
      %5355 = vmatpush1.msra.mxu0 0.0
      %5356 = vmatprep.subr.mxu0 0.0
      %5357 = vmatpush1.msra.mxu0 0.0
      %5358 = vmatprep.subr.mxu0 0.0
      %5359 = vmatpush1.msra.mxu0 0.0
      %5360 = vmatprep.subr.mxu0 0.0
      %5361 = vmatpush1.msra.mxu0 0.0
      %5362 = vmatprep.subr.mxu0 0.0
      %5363 = vmatpush1.msra.mxu0 0.0
      %5364 = vmatprep.subr.mxu0 0.0
      %5365 = vmatpush1.msra.mxu0 0.0
      %5366 = vmatprep.subr.mxu0 0.0
      %5367 = vmatpush1.msra.mxu0 0.0
      %5368 = vmatprep.subr.mxu0 0.0
      %5369 = vmatpush1.msra.mxu0 0.0
      %5370 = vmatprep.subr.mxu0 0.0
      %5371 = vmatpush1.msra.mxu0 0.0
      %5372 = vmatprep.subr.mxu0 0.0
      %5373 = vmatpush1.msra.mxu0 0.0
      %5374 = vmatprep.subr.mxu0 0.0
      %5375 = vmatpush1.msra.mxu0 0.0
      %5376 = vmatprep.subr.mxu0 0.0
      %5377 = vmatpush1.msra.mxu0 0.0
      %5378 = vmatprep.subr.mxu0 0.0
      %5379 = vmatpush1.msra.mxu0 0.0
      %5380 = vmatprep.subr.mxu0 0.0
      %5381 = vmatpush1.msra.mxu0 0.0
      %5382 = vmatprep.subr.mxu0 0.0
      %5383 = vmatpush1.msra.mxu0 0.0
      %5384 = vmatprep.subr.mxu0 0.0
      %5385 = vmatpush1.msra.mxu0 0.0
      %5386 = vmatprep.subr.mxu0 0.0
      %5387 = vmatpush1.msra.mxu0 0.0
      %5388 = vmatprep.mubr.f32.mxu0 0.0
      %5389 = vmatmul.mubr.f32.gmra.mrb[0].mxu0 %v5229
      %v5390 = vpop.f32.mrb[0].mxu0
      %v5391 = vadd.f32 0.0, %v5390
      %v5392 = vpop.f32.mrb[0].mxu0
      %5393 = vmatprep.mubr.f32.mxu0 0.0
      %5394 = vmatmul.mubr.f32.gmra.mrb[0].mxu0 %v5232
      %v5395 = vpop.f32.mrb[0].mxu0
      %v5396 = vadd.f32 0.0, %v5395
      %v5397 = vpop.f32.mrb[0].mxu0
      %5398 = vmatprep.mubr.f32.mxu0 0.0
      %5399 = vmatmul.mubr.f32.gmra.mrb[0].mxu0 %v5235
      %v5400 = vpop.f32.mrb[0].mxu0
      %v5401 = vadd.f32 0.0, %v5400
      %v5402 = vpop.f32.mrb[0].mxu0
      %5403 = vmatprep.mubr.f32.mxu0 0.0
      %5404 = vmatmul.mubr.f32.gmra.mrb[0].mxu0 %v5238
      %v5405 = vpop.f32.mrb[0].mxu0
      %v5406 = vadd.f32 0.0, %v5405
      %v5407 = vpop.f32.mrb[0].mxu0
      %5408 = vmatprep.mubr.f32.mxu0 0.0
      %5409 = vmatmul.mubr.f32.gmra.mrb[0].mxu0 %v5241
      %v5410 = vpop.f32.mrb[0].mxu0
      %v5411 = vadd.f32 0.0, %v5410
      %v5412 = vpop.f32.mrb[0].mxu0
      %5413 = vmatprep.mubr.f32.mxu0 0.0
      %5414 = vmatmul.mubr.f32.gmra.mrb[0].mxu0 %v5244
      %v5415 = vpop.f32.mrb[0].mxu0
      %v5416 = vadd.f32 0.0, %v5415
      %v5417 = vpop.f32.mrb[0].mxu0
      %5418 = vmatprep.mubr.f32.mxu0 0.0
      %5419 = vmatmul.mubr.f32.gmra.mrb[0].mxu0 %v5247
      %v5420 = vpop.f32.mrb[0].mxu0
      %v5421 = vadd.f32 0.0, %v5420
      %v5422 = vpop.f32.mrb[0].mxu0
      %5423 = vmatprep.mubr.f32.mxu0 0.0
      %5424 = vmatmul.mubr.f32.gmra.mrb[0].mxu0 %v5250
      %v5425 = vpop.f32.mrb[0].mxu0
      %v5426 = vadd.f32 0.0, %v5425
      %v5427 = vpop.f32.mrb[0].mxu0
      %5428 = vmatprep.mubr.f32.mxu0 0.0
      %5429 = vmatmul.mubr.f32.gmra.mrb[0].mxu0 %v5253
      %v5430 = vpop.f32.mrb[0].mxu0
      %v5431 = vadd.f32 0.0, %v5430
      %v5432 = vpop.f32.mrb[0].mxu0
      %5433 = vmatprep.mubr.f32.mxu0 0.0
      %5434 = vmatmul.mubr.f32.gmra.mrb[0].mxu0 %v5256
      %v5435 = vpop.f32.mrb[0].mxu0
      %v5436 = vadd.f32 0.0, %v5435
      %v5437 = vpop.f32.mrb[0].mxu0
      %5438 = vmatprep.mubr.f32.mxu0 0.0
      %5439 = vmatmul.mubr.f32.gmra.mrb[0].mxu0 %v5259
      %v5440 = vpop.f32.mrb[0].mxu0
      %v5441 = vadd.f32 0.0, %v5440
      %v5442 = vpop.f32.mrb[0].mxu0
      %5443 = vmatprep.mubr.f32.mxu0 0.0
      %5444 = vmatmul.mubr.f32.gmra.mrb[0].mxu0 %v5262
      %v5445 = vpop.f32.mrb[0].mxu0
      %v5446 = vadd.f32 0.0, %v5445
      %v5447 = vpop.f32.mrb[0].mxu0
      %5448 = vmatprep.mubr.f32.mxu0 0.0
      %5449 = vmatmul.mubr.f32.gmra.mrb[0].mxu0 %v5265
      %v5450 = vpop.f32.mrb[0].mxu0
      %v5451 = vadd.f32 0.0, %v5450
      %v5452 = vpop.f32.mrb[0].mxu0
      %5453 = vmatprep.mubr.f32.mxu0 0.0
      %5454 = vmatmul.mubr.f32.gmra.mrb[0].mxu0 %v5268
      %v5455 = vpop.f32.mrb[0].mxu0
      %v5456 = vadd.f32 0.0, %v5455
      %v5457 = vpop.f32.mrb[0].mxu0
      %5458 = vmatprep.mubr.f32.mxu0 0.0
      %5459 = vmatmul.mubr.f32.gmra.mrb[0].mxu0 %v5271
      %v5460 = vpop.f32.mrb[0].mxu0
      %v5461 = vadd.f32 0.0, %v5460
      %v5462 = vpop.f32.mrb[0].mxu0
      %5463 = vmatprep.mubr.f32.mxu0 0.0
      %5464 = vmatmul.mubr.f32.gmra.mrb[0].mxu0 %v5274
      %v5465 = vpop.f32.mrb[0].mxu0
      %v5466 = vadd.f32 0.0, %v5465
      %v5467 = vpop.f32.mrb[0].mxu0
      %5468 = vmatprep.mubr.f32.mxu0 0.0
      %5469 = vmatmul.mubr.f32.gmra.mrb[0].mxu0 %v5277
      %v5470 = vpop.f32.mrb[0].mxu0
      %v5471 = vadd.f32 0.0, %v5470
      %v5472 = vpop.f32.mrb[0].mxu0
      %5473 = vmatprep.mubr.f32.mxu0 0.0
      %5474 = vmatmul.mubr.f32.gmra.mrb[0].mxu0 %v5280
      %v5475 = vpop.f32.mrb[0].mxu0
      %v5476 = vadd.f32 0.0, %v5475
      %v5477 = vpop.f32.mrb[0].mxu0
      %5478 = vmatprep.mubr.f32.mxu0 0.0
      %5479 = vmatmul.mubr.f32.gmra.mrb[0].mxu0 %v5283
      %v5480 = vpop.f32.mrb[0].mxu0
      %v5481 = vadd.f32 0.0, %v5480
      %v5482 = vpop.f32.mrb[0].mxu0
      %5483 = vmatprep.mubr.f32.mxu0 0.0
      %5484 = vmatmul.mubr.f32.gmra.mrb[0].mxu0 %v5286
      %v5485 = vpop.f32.mrb[0].mxu0
      %v5486 = vadd.f32 0.0, %v5485
      %v5487 = vpop.f32.mrb[0].mxu0
      %5488 = vmatprep.mubr.f32.mxu0 0.0
      %5489 = vmatmul.mubr.f32.gmra.mrb[0].mxu0 %v5289
      %v5490 = vpop.f32.mrb[0].mxu0
      %v5491 = vadd.f32 0.0, %v5490
      %v5492 = vpop.f32.mrb[0].mxu0
      %5493 = vmatprep.mubr.f32.mxu0 0.0
      %5494 = vmatmul.mubr.f32.gmra.mrb[0].mxu0 %v5292
      %v5495 = vpop.f32.mrb[0].mxu0
      %v5496 = vadd.f32 0.0, %v5495
      %v5497 = vpop.f32.mrb[0].mxu0
      %5498 = vmatprep.mubr.f32.mxu0 0.0
      %5499 = vmatmul.mubr.f32.gmra.mrb[0].mxu0 %v5295
      %v5500 = vpop.f32.mrb[0].mxu0
      %v5501 = vadd.f32 0.0, %v5500
      %v5502 = vpop.f32.mrb[0].mxu0
      %5503 = vmatprep.mubr.f32.mxu0 0.0
      %5504 = vmatmul.mubr.f32.gmra.mrb[0].mxu0 %v5298
      %v5505 = vpop.f32.mrb[0].mxu0
      %v5506 = vadd.f32 0.0, %v5505
      %v5507 = vpop.f32.mrb[0].mxu0
      %5508 = vmatprep.mubr.f32.mxu0 0.0
      %5509 = vmatmul.mubr.f32.gmra.mrb[0].mxu0 %v5301
      %v5510 = vpop.f32.mrb[0].mxu0
      %v5511 = vadd.f32 0.0, %v5510
      %v5512 = vpop.f32.mrb[0].mxu0
      %5513 = vmatprep.mubr.f32.mxu0 0.0
      %5514 = vmatmul.mubr.f32.gmra.mrb[0].mxu0 %v5304
      %v5515 = vpop.f32.mrb[0].mxu0
      %v5516 = vadd.f32 0.0, %v5515
      %v5517 = vpop.f32.mrb[0].mxu0
      %5518 = vmatprep.mubr.f32.mxu0 0.0
      %5519 = vmatmul.mubr.f32.gmra.mrb[0].mxu0 %v5307
      %v5520 = vpop.f32.mrb[0].mxu0
      %v5521 = vadd.f32 0.0, %v5520
      %v5522 = vpop.f32.mrb[0].mxu0
      %5523 = vmatprep.mubr.f32.mxu0 0.0
      %5524 = vmatmul.mubr.f32.gmra.mrb[0].mxu0 %v5310
      %v5525 = vpop.f32.mrb[0].mxu0
      %v5526 = vadd.f32 0.0, %v5525
      %v5527 = vpop.f32.mrb[0].mxu0
      %5528 = vmatprep.mubr.f32.mxu0 0.0
      %5529 = vmatmul.mubr.f32.gmra.mrb[0].mxu0 %v5313
      %v5530 = vpop.f32.mrb[0].mxu0
      %v5531 = vadd.f32 0.0, %v5530
      %v5532 = vpop.f32.mrb[0].mxu0
      %5533 = vmatprep.mubr.f32.mxu0 0.0
      %5534 = vmatmul.mubr.f32.gmra.mrb[0].mxu0 %v5316
      %v5535 = vpop.f32.mrb[0].mxu0
      %v5536 = vadd.f32 0.0, %v5535
      %v5537 = vpop.f32.mrb[0].mxu0
      %5538 = vmatprep.mubr.f32.mxu0 0.0
      %5539 = vmatmul.mubr.f32.gmra.mrb[0].mxu0 %v5319
      %v5540 = vpop.f32.mrb[0].mxu0
      %v5541 = vadd.f32 0.0, %v5540
      %v5542 = vpop.f32.mrb[0].mxu0
      %5543 = vmatprep.mubr.f32.mxu0 0.0
      %5544 = vmatmul.mubr.f32.gmra.mrb[0].mxu0 %v5322
      %v5545 = vpop.f32.mrb[0].mxu0
      %v5546 = vadd.f32 0.0, %v5545
      %v5547 = vpop.f32.mrb[0].mxu0
      %5548 = vdwg.mxu0
      %v5549 = vld [vmem:[%s8] sm:$0x1]
      %v5551 = vlaneseq
      %v5552 = vshrl.u32 %v5551, 7
      %v5553 = vsub.s32 0, %v5552
      %v5554 = vrot.slane %v5549, %v5553
      %v5556 = vmul.f32 %v5391, %v5554
      %v5557 = vmul.f32 %v5396, %v5554
      %v5558 = vmul.f32 %v5401, %v5554
      %v5559 = vmul.f32 %v5406, %v5554
      %v5560 = vmul.f32 %v5411, %v5554
      %v5561 = vmul.f32 %v5416, %v5554
      %v5562 = vmul.f32 %v5421, %v5554
      %v5563 = vmul.f32 %v5426, %v5554
      %v5564 = vmul.f32 %v5431, %v5554
      %v5565 = vmul.f32 %v5436, %v5554
      %v5566 = vmul.f32 %v5441, %v5554
      %v5567 = vmul.f32 %v5446, %v5554
      %v5568 = vmul.f32 %v5451, %v5554
      %v5569 = vmul.f32 %v5456, %v5554
      %v5570 = vmul.f32 %v5461, %v5554
      %v5571 = vmul.f32 %v5466, %v5554
      %v5572 = vmul.f32 %v5471, %v5554
      %v5573 = vmul.f32 %v5476, %v5554
      %v5574 = vmul.f32 %v5481, %v5554
      %v5575 = vmul.f32 %v5486, %v5554
      %v5576 = vmul.f32 %v5491, %v5554
      %v5577 = vmul.f32 %v5496, %v5554
      %v5578 = vmul.f32 %v5501, %v5554
      %v5579 = vmul.f32 %v5506, %v5554
      %v5580 = vmul.f32 %v5511, %v5554
      %v5581 = vmul.f32 %v5516, %v5554
      %v5582 = vmul.f32 %v5521, %v5554
      %v5583 = vmul.f32 %v5526, %v5554
      %v5584 = vmul.f32 %v5531, %v5554
      %v5585 = vmul.f32 %v5536, %v5554
      %v5586 = vmul.f32 %v5541, %v5554
      %v5587 = vmul.f32 %v5546, %v5554
      %v5588 = vld [vmem:[%s9] sm:$0x1]
      %v5590 = vlaneseq
      %v5591 = vshrl.u32 %v5590, 7
      %v5592 = vsub.s32 0, %v5591
      %v5593 = vrot.slane %v5588, %v5592
      %v5595 = vadd.f32 %v5556, %v5593
      %v5596 = vadd.f32 %v5557, %v5593
      %v5597 = vadd.f32 %v5558, %v5593
      %v5598 = vadd.f32 %v5559, %v5593
      %v5599 = vadd.f32 %v5560, %v5593
      %v5600 = vadd.f32 %v5561, %v5593
      %v5601 = vadd.f32 %v5562, %v5593
      %v5602 = vadd.f32 %v5563, %v5593
      %v5603 = vadd.f32 %v5564, %v5593
      %v5604 = vadd.f32 %v5565, %v5593
      %v5605 = vadd.f32 %v5566, %v5593
      %v5606 = vadd.f32 %v5567, %v5593
      %v5607 = vadd.f32 %v5568, %v5593
      %v5608 = vadd.f32 %v5569, %v5593
      %v5609 = vadd.f32 %v5570, %v5593
      %v5610 = vadd.f32 %v5571, %v5593
      %v5611 = vadd.f32 %v5572, %v5593
      %v5612 = vadd.f32 %v5573, %v5593
      %v5613 = vadd.f32 %v5574, %v5593
      %v5614 = vadd.f32 %v5575, %v5593
      %v5615 = vadd.f32 %v5576, %v5593
      %v5616 = vadd.f32 %v5577, %v5593
      %v5617 = vadd.f32 %v5578, %v5593
      %v5618 = vadd.f32 %v5579, %v5593
      %v5619 = vadd.f32 %v5580, %v5593
      %v5620 = vadd.f32 %v5581, %v5593
      %v5621 = vadd.f32 %v5582, %v5593
      %v5622 = vadd.f32 %v5583, %v5593
      %v5623 = vadd.f32 %v5584, %v5593
      %v5624 = vadd.f32 %v5585, %v5593
      %v5625 = vadd.f32 %v5586, %v5593
      %v5626 = vadd.f32 %v5587, %v5593
      %v5627 = vadd.f32 %v5595, %v360
      %v5628 = vadd.f32 %v5596, %v361
      %v5629 = vadd.f32 %v5597, %v362
      %v5630 = vadd.f32 %v5598, %v363
      %v5631 = vadd.f32 %v5599, %v364
      %v5632 = vadd.f32 %v5600, %v365
      %v5633 = vadd.f32 %v5601, %v366
      %v5634 = vadd.f32 %v5602, %v367
      %v5635 = vadd.f32 %v5603, %v368
      %v5636 = vadd.f32 %v5604, %v369
      %v5637 = vadd.f32 %v5605, %v370
      %v5638 = vadd.f32 %v5606, %v371
      %v5639 = vadd.f32 %v5607, %v372
      %v5640 = vadd.f32 %v5608, %v373
      %v5641 = vadd.f32 %v5609, %v374
      %v5642 = vadd.f32 %v5610, %v375
      %v5643 = vadd.f32 %v5611, %v376
      %v5644 = vadd.f32 %v5612, %v377
      %v5645 = vadd.f32 %v5613, %v378
      %v5646 = vadd.f32 %v5614, %v379
      %v5647 = vadd.f32 %v5615, %v380
      %v5648 = vadd.f32 %v5616, %v381
      %v5649 = vadd.f32 %v5617, %v382
      %v5650 = vadd.f32 %v5618, %v383
      %v5651 = vadd.f32 %v5619, %v384
      %v5652 = vadd.f32 %v5620, %v385
      %v5653 = vadd.f32 %v5621, %v386
      %v5654 = vadd.f32 %v5622, %v387
      %v5655 = vadd.f32 %v5623, %v388
      %v5656 = vadd.f32 %v5624, %v389
      %v5657 = vadd.f32 %v5625, %v390
      %v5658 = vadd.f32 %v5626, %v391
      %5659 = vst.msk [vmem:[%s359] sm:$0xff] %vm394, %v5627
      %5660 = vst.msk [vmem:[%s359 + $0x8] sm:$0xff] %vm394, %v5628
      %5661 = vst.msk [vmem:[%s359 + $0x10] sm:$0xff] %vm394, %v5629
      %5662 = vst.msk [vmem:[%s359 + $0x18] sm:$0xff] %vm394, %v5630
      %5663 = vst.msk [vmem:[%s359 + $0x20] sm:$0xff] %vm394, %v5631
      %5664 = vst.msk [vmem:[%s359 + $0x28] sm:$0xff] %vm394, %v5632
      %5665 = vst.msk [vmem:[%s359 + $0x30] sm:$0xff] %vm394, %v5633
      %5666 = vst.msk [vmem:[%s359 + $0x38] sm:$0xff] %vm394, %v5634
      %5667 = vst.msk [vmem:[%s359 + $0x40] sm:$0xff] %vm394, %v5635
      %5668 = vst.msk [vmem:[%s359 + $0x48] sm:$0xff] %vm394, %v5636
      %5669 = vst.msk [vmem:[%s359 + $0x50] sm:$0xff] %vm394, %v5637
      %5670 = vst.msk [vmem:[%s359 + $0x58] sm:$0xff] %vm394, %v5638
      %5671 = vst.msk [vmem:[%s359 + $0x60] sm:$0xff] %vm394, %v5639
      %5672 = vst.msk [vmem:[%s359 + $0x68] sm:$0xff] %vm394, %v5640
      %5673 = vst.msk [vmem:[%s359 + $0x70] sm:$0xff] %vm394, %v5641
      %5674 = vst.msk [vmem:[%s359 + $0x78] sm:$0xff] %vm394, %v5642
      %5675 = vst.msk [vmem:[%s359 + $0x80] sm:$0xff] %vm394, %v5643
      %5676 = vst.msk [vmem:[%s359 + $0x88] sm:$0xff] %vm394, %v5644
      %5677 = vst.msk [vmem:[%s359 + $0x90] sm:$0xff] %vm394, %v5645
      %5678 = vst.msk [vmem:[%s359 + $0x98] sm:$0xff] %vm394, %v5646
      %5679 = vst.msk [vmem:[%s359 + $0xa0] sm:$0xff] %vm394, %v5647
      %5680 = vst.msk [vmem:[%s359 + $0xa8] sm:$0xff] %vm394, %v5648
      %5681 = vst.msk [vmem:[%s359 + $0xb0] sm:$0xff] %vm394, %v5649
      %5682 = vst.msk [vmem:[%s359 + $0xb8] sm:$0xff] %vm394, %v5650
      %5683 = vst.msk [vmem:[%s359 + $0xc0] sm:$0xff] %vm394, %v5651
      %5684 = vst.msk [vmem:[%s359 + $0xc8] sm:$0xff] %vm394, %v5652
      %5685 = vst.msk [vmem:[%s359 + $0xd0] sm:$0xff] %vm394, %v5653
      %5686 = vst.msk [vmem:[%s359 + $0xd8] sm:$0xff] %vm394, %v5654
      %5687 = vst.msk [vmem:[%s359 + $0xe0] sm:$0xff] %vm394, %v5655
      %5688 = vst.msk [vmem:[%s359 + $0xe8] sm:$0xff] %vm394, %v5656
      %5689 = vst.msk [vmem:[%s359 + $0xf0] sm:$0xff] %vm394, %v5657
      %5690 = vst.msk [vmem:[%s359 + $0xf8] sm:$0xff] %vm394, %v5658
      %p5691 = scmp.lt.s32.totalorder %s21, 1
      %s5692 = scalar_select %p5691, %s21, 1
      %s5693 = smul.addr %s5692, 32
      %s5694 = smul.addr %s5693, 8
      %s5695 = scalar_lea.vmem %s10, %s5694
      // Predicated region
      $region61: #{tpu_custom_call.1} parent=59 // pred_check
        %p5696 = pneg %p254
      $region62: #{tpu_custom_call.1} parent=59 // pred_check_branch
        %5698 = sbr.rel (%p5696) target = $region64
      $region63: #{tpu_custom_call.1} parent=59 // pred_region
        _
      $region64: #{tpu_custom_call.1} parent=59 // pred_fallthru
        _
    $region60: #{tpu_custom_call.1} parent=5 // pred_fallthru
      _
    %p5699 = scmp.le.s32.totalorder 2, %s16
    // Predicated region
    $region65: #{tpu_custom_call.1} parent=5 // pred_check
      %p5700 = pneg %p5699
    $region66: #{tpu_custom_call.1} parent=5 // pred_check_branch
      %5702 = sbr.rel (%p5700) target = $region68
    $region67: #{tpu_custom_call.1} parent=5 // pred_region
      %s5703 = ssub.s32 %s16, 2
      // Predicated region
      $region69: #{tpu_custom_call.1} parent=67 // pred_check
        %p5704 = pneg %p260
      $region70: #{tpu_custom_call.1} parent=67 // pred_check_branch
        %5706 = sbr.rel (%p5704) target = $region72
      $region71: #{tpu_custom_call.1} parent=67 // pred_region
        %p5707 = scmp.lt.s32.totalorder %s22, 1
        %s5708 = scalar_select %p5707, %s22, 1
        %s5709 = smul.addr %s5708, 32
        %s5710 = smul.addr %s5709, 8
        %s5711 = scalar_lea.vmem %s10, %s5710
      $region72: #{tpu_custom_call.1} parent=67 // pred_fallthru
        _
    $region68: #{tpu_custom_call.1} parent=5 // pred_fallthru
      _
  $region6: #{tpu_custom_call.1} parent=0 // loop_footer
    %s20 = sadd.s32 1, %s16
  $region7: #{tpu_custom_call.1} parent=0 // loop_footer_branch
    %15 = sbr.rel target = $region3
  $region8: #{tpu_custom_call.1} parent=0 // loop_exit
    _

</llo_original>
